<compile_context>
chip_gen: v5e
topology: v5e:2x2
jax: 0.10.0
libtpu: 0.0.40
codegen_flags: <defaults>
</compile_context>

<pallas_src>
import functools
import math

import jax
import jax.numpy as jnp
from jax import lax
from jax.experimental import pallas as pl
from jax.experimental.pallas import tpu as pltpu


def _round_up(x, m):
    return (x + m - 1) // m * m


def _vmem_capacity_bytes():
    """Physical VMEM of the attached TPU (conservative 64 MiB fallback)."""
    try:
        cap = getattr(pltpu.get_tpu_info(), "vmem_capacity_bytes", None)
        if cap:
            return int(cap)
    except Exception:
        pass
    return 64 * 1024 * 1024


def _unet_down_kernel(ph_ref, w_ref, m_ref, o_ref, *, wp, inv_count,
                      normalize, leaky, eps):
    """One (batch, C_out-tile) grid step of Conv4x4/s2 + InstanceNorm + LeakyReLU.

    ph_ref : (4*C_pad, F)        bf16, four stride-2 phase images of the padded
                                 input stacked along the contraction axis,
                                 spatially flattened with row pitch `wp`.
    w_ref  : (4, C_tile, 4*C_pad) bf16, filter taps grouped by output shift
                                 (qh, qw); contraction axis laid out phase-major
                                 to match ph_ref.
    m_ref  : (1, F)              f32, 1.0 on valid output columns, 0.0 on padding.
    o_ref  : (C_tile, F)         pitch-`wp` flattened output (lane-dense).
    """
    f_cols = o_ref.shape[-1]

    # Conv as 4 deep MXU matmuls (K = 4*C_pad), one per output shift group,
    # combined with 3 static lane rotations (XLU slot, ~free).
    acc = None
    for qh in range(2):
        for qw in range(2):
            g = 2 * qh + qw
            part = jnp.dot(w_ref[g], ph_ref[...],
                           preferred_element_type=jnp.float32)
            off = qh * wp + qw                           # static column shift
            if off:
                # want shifted[m] == part[m + off]  (jnp.roll semantics)
                part = pltpu.roll(part, f_cols - off, 1)
            acc = part if acc is None else acc + part

    if normalize:
        # InstanceNorm2d (no affine, biased variance, eps inside rsqrt):
        # single-pass masked sum / sum-of-squares in f32.
        mask = m_ref[...]                                # (1, F)
        am = acc * mask
        s = jnp.sum(am, axis=1, keepdims=True)           # (C_tile, 1)
        ss = jnp.sum(am * acc, axis=1, keepdims=True)
        mean = s * inv_count
        var = jnp.maximum(ss * inv_count - mean * mean, 0.0)
        acc = (acc - mean) * lax.rsqrt(var + eps)

    # LeakyReLU(0.2); TODO(synk): training-mode Dropout(0.5) is identity in eval.
    acc = jnp.where(acc > 0, acc, leaky * acc)
    o_ref[...] = acc.astype(o_ref.dtype)


def unet_down(x, weight, *, normalize=True, kernel_size=4, stride=2, padding=1,
              leaky=0.2, eps=1e-5, out_dtype=None):
    """UNetDown forward (eval mode).

    x: (N, C_in, H, W) NCHW;  weight: (C_out, C_in, 4, 4) OIHW.
    Returns (N, C_out, H//2, W//2) in `out_dtype` (default: x.dtype).
    """
    assert kernel_size == 4 and stride == 2 and padding == 1, (
        "phase decomposition is specialised to the UNet 4/2/1 convolution")
    n, c_in, h, w = x.shape
    c_out = weight.shape[0]
    assert weight.shape == (c_out, c_in, 4, 4)
    assert h % 2 == 0 and w % 2 == 0

    out_dtype = x.dtype if out_dtype is None else out_dtype
    compute_dtype = jnp.bfloat16          # MXU-native operands, f32 accumulation

    h_out, w_out = h // 2, w // 2
    hp, wp = h_out + 1, w_out + 1         # phase-image extents
    c_pad = _round_up(c_in, 16)           # bf16 sublane packing
    f_cols = _round_up(hp * wp, 128)      # lane-dense flattened spatial extent

    # ---- phase images: xpad[:, :, rh::2, rw::2], stacked along the contraction
    #      axis (phase-major) and flattened with row pitch wp -------------------
    xp = jnp.pad(x, ((0, 0), (0, 0), (1, 1), (1, 1)))
    if c_pad != c_in:
        xp = jnp.pad(xp, ((0, 0), (0, c_pad - c_in), (0, 0), (0, 0)))
    phases = jnp.concatenate(
        [xp[:, :, rh::2, rw::2] for rh in range(2) for rw in range(2)], axis=1)
    phases = phases.reshape(n, 4 * c_pad, hp * wp)
    if f_cols != hp * wp:
        phases = jnp.pad(phases, ((0, 0), (0, 0), (0, f_cols - hp * wp)))
    phases = phases.astype(compute_dtype)

    # ---- filter taps grouped by output shift (qh, qw): (4, C_out, 4*C_pad),
    #      contraction axis laid out phase-major (rh*2 + rw) --------------------
    wt = weight
    if c_pad != c_in:
        wt = jnp.pad(wt, ((0, 0), (0, c_pad - c_in), (0, 0), (0, 0)))
    w_khkw = jnp.transpose(wt, (2, 3, 0, 1))              # (kh, kw, C_out, C_pad)
    w_groups = jnp.stack(
        [jnp.concatenate([w_khkw[2 * qh + rh, 2 * qw + rw]
                          for rh in range(2) for rw in range(2)], axis=-1)
         for qh in range(2) for qw in range(2)], axis=0)  # (4, C_out, 4*C_pad)
    w_groups = w_groups.astype(compute_dtype)

    # ---- validity mask over the pitch-wp flattened output ---------------------
    col = jnp.arange(f_cols, dtype=jnp.int32)
    mask = ((col < h_out * wp) & ((col % wp) < w_out)).astype(jnp.float32)
    mask = mask.reshape(1, f_cols)

    # ---- C_out tiling + VMEM budget (real block bytes, capped below physical) -
    in_b = 2
    out_b = jnp.dtype(out_dtype).itemsize
    cap = _vmem_capacity_bytes()
    budget = (cap * 3) // 4               # headroom for compiler scratch/spills

    def block_bytes(ct):
        blk_ph = 4 * c_pad * f_cols * in_b
        blk_w = 16 * ct * c_pad * in_b
        blk_m = f_cols * 4
        blk_o = ct * f_cols * out_b
        live_f32 = 2 * ct * f_cols * 4    # f32 accumulator + in-flight partial
        return 2 * (blk_ph + blk_w + blk_m + blk_o) + live_f32

    margin = 4 << 20
    if c_out % 128 == 0 and block_bytes(128) + margin <= budget:
        c_tile = 128
    elif c_out % 64 == 0:
        c_tile = 64
    else:
        c_tile = c_out
    vmem_limit = int(max(16 << 20, min(block_bytes(c_tile) + margin, budget)))

    grid = (n, c_out // c_tile)

    kernel = functools.partial(
        _unet_down_kernel, wp=wp, inv_count=1.0 / float(h_out * w_out),
        normalize=normalize, leaky=leaky, eps=eps)

    cost = pl.CostEstimate(
        flops=2 * n * c_out * c_in * 16 * h_out * w_out,
        transcendentals=n * c_out if normalize else 0,
        bytes_accessed=(phases.size * in_b + w_groups.size * in_b
                        + mask.size * 4 + n * c_out * f_cols * out_b))

    out = pl.pallas_call(
        kernel,
        out_shape=jax.ShapeDtypeStruct((n, c_out, f_cols), out_dtype),
        grid_spec=pltpu.PrefetchScalarGridSpec(
            num_scalar_prefetch=0,
            grid=grid,
            in_specs=[
                pl.BlockSpec((pl.Squeezed(), 4 * c_pad, f_cols),
                             lambda b, ct: (b, 0, 0)),
                pl.BlockSpec((4, c_tile, 4 * c_pad), lambda b, ct: (0, ct, 0)),
                pl.BlockSpec((1, f_cols), lambda b, ct: (0, 0)),
            ],
            out_specs=pl.BlockSpec((pl.Squeezed(), c_tile, f_cols),
                                   lambda b, ct: (b, ct, 0)),
        ),
        compiler_params=pltpu.CompilerParams(
            dimension_semantics=("parallel", "parallel"),
            vmem_limit_bytes=vmem_limit,
            allow_input_fusion=[True, False, False],
        ),
        cost_estimate=cost,
    )(phases, w_groups, mask)

    # pitch-wp flattened (lane-dense) -> (N, C_out, H_out, W_out); cheap slice,
    # no NCHW transpose of the output needed.
    out = out[:, :, :h_out * wp].reshape(n, c_out, h_out, wp)[:, :, :, :w_out]
    return out


def _reference_unet_down(x, weight, *, normalize=True, leaky=0.2, eps=1e-5):
    # bf16 operands / f32 accumulation to mirror the kernel's MXU precision.
    y = lax.conv_general_dilated(
        x.astype(jnp.bfloat16), weight.astype(jnp.bfloat16),
        window_strides=(2, 2), padding=((1, 1), (1, 1)),
        dimension_numbers=("NCHW", "OIHW", "NCHW"),
        preferred_element_type=jnp.float32)
    if normalize:
        mean = jnp.mean(y, axis=(2, 3), keepdims=True)
        var = jnp.mean((y - mean) ** 2, axis=(2, 3), keepdims=True)
        y = (y - mean) * lax.rsqrt(var + eps)
    return jnp.where(y > 0, y, leaky * y)


if __name__ == "__main__":
    key = jax.random.PRNGKey(0)
    kx, kw1, kw2 = jax.random.split(key, 3)

    # GeneratorFeedbackUNet front end: in_channels = 6 + 1 = 7, down1 -> 64, down2 -> 128.
    N, C_IN, H, W = 2, 7, 32, 32
    x = jax.random.normal(kx, (N, C_IN, H, W), dtype=jnp.float32)

    def conv_weight(k, c_out, c_in, ksize=4):
        bound = 1.0 / math.sqrt(c_in * ksize * ksize)
        return jax.random.uniform(k, (c_out, c_in, ksize, ksize), jnp.float32,
                                  -bound, bound)

    w1 = conv_weight(kw1, 64, C_IN)     # down1 = UNetDown(7, 64, normalize=False)
    w2 = conv_weight(kw2, 128, 64)      # down2 = UNetDown(64, 128)

    # TODO(synk): GeneratorFeedbackUNet.forward also concatenates the stateful
    # feedback map self.h (zeros on the first call) before down1; the original
    # module's channel arithmetic for that cat is inconsistent with
    # down1(in_size=7), so the demo feeds the 7-channel input directly.

    @jax.jit
    def forward(x, w1, w2):
        d1 = unet_down(x, w1, normalize=False)   # down1: Conv -> LeakyReLU
        d2 = unet_down(d1, w2, normalize=True)   # down2: Conv -> IN -> LeakyReLU
        return d1, d2

    d1, d2 = jax.block_until_ready(forward(x, w1, w2))

    r1 = _reference_unet_down(x, w1, normalize=False)
    r2 = _reference_unet_down(d1, w2, normalize=True)

    assert d1.shape == (N, 64, H // 2, W // 2), d1.shape
    assert d2.shape == (N, 128, H // 4, W // 4), d2.shape
    err1 = float(jnp.max(jnp.abs(d1 - r1)))
    err2 = float(jnp.max(jnp.abs(d2 - r2)))
    assert err1 < 2e-3, err1
    assert err2 < 2e-3, err2
    print("KERNEL_OK")
</pallas_src>

<mosaic_0001>
module attributes {stable_mosaic.version = 11 : i64} {
  func.func @_unet_down_kernel(%arg0: i32, %arg1: i32, %arg2: memref<1x64x384xbf16, #tpu.memory_space<vmem>>, %arg3: memref<4x64x64xbf16, #tpu.memory_space<vmem>>, %arg4: memref<1x384xf32, #tpu.memory_space<vmem>>, %arg5: memref<1x64x384xf32, #tpu.memory_space<vmem>>) attributes {dimension_semantics = [#tpu.dimension_semantics<parallel>, #tpu.dimension_semantics<parallel>], iteration_bounds = array<i64: 2, 1>, scalar_prefetch = 0 : i64, scratch_operands = 0 : i64, tpu.core_type = #tpu.core_type<tc>, window_params = [{transform_indices = @transform_0, window_bounds = array<i64: 1, 64, 384>}, {transform_indices = @transform_1, window_bounds = array<i64: 4, 64, 64>}, {pipeline_mode = #tpu.pipeline_mode<synchronous>, transform_indices = @transform_2, window_bounds = array<i64: 1, 384>}, {transform_indices = @transform_3, window_bounds = array<i64: 1, 64, 384>}]} {
    %c0 = arith.constant 0 : index
    %c0_0 = arith.constant 0 : index
    %c0_1 = arith.constant 0 : index
    %0 = vector.load %arg3[%c0, %c0_0, %c0_1] : memref<4x64x64xbf16, #tpu.memory_space<vmem>>, vector<1x64x64xbf16>
    %1 = vector.shape_cast %0 : vector<1x64x64xbf16> to vector<64x64xbf16>
    %c0_2 = arith.constant 0 : index
    %c0_3 = arith.constant 0 : index
    %c0_4 = arith.constant 0 : index
    %2 = vector.load %arg2[%c0_2, %c0_3, %c0_4] : memref<1x64x384xbf16, #tpu.memory_space<vmem>>, vector<1x64x384xbf16>
    %3 = vector.shape_cast %2 : vector<1x64x384xbf16> to vector<64x384xbf16>
    %cst = arith.constant dense<0.000000e+00> : vector<64x384xf32>
    %4 = tpu.matmul %1, %3, %cst {dimension_numbers = #tpu.dot_dimension_numbers<[1], [0], [0], [1], [0, 0, 1, 1], [], []>} : vector<64x64xbf16>, vector<64x384xbf16>, vector<64x384xf32> -> vector<64x384xf32>
    %c1 = arith.constant 1 : index
    %c0_5 = arith.constant 0 : index
    %c0_6 = arith.constant 0 : index
    %5 = vector.load %arg3[%c1, %c0_5, %c0_6] : memref<4x64x64xbf16, #tpu.memory_space<vmem>>, vector<1x64x64xbf16>
    %6 = vector.shape_cast %5 : vector<1x64x64xbf16> to vector<64x64xbf16>
    %c0_7 = arith.constant 0 : index
    %c0_8 = arith.constant 0 : index
    %c0_9 = arith.constant 0 : index
    %7 = vector.load %arg2[%c0_7, %c0_8, %c0_9] : memref<1x64x384xbf16, #tpu.memory_space<vmem>>, vector<1x64x384xbf16>
    %8 = vector.shape_cast %7 : vector<1x64x384xbf16> to vector<64x384xbf16>
    %cst_10 = arith.constant dense<0.000000e+00> : vector<64x384xf32>
    %9 = tpu.matmul %6, %8, %cst_10 {dimension_numbers = #tpu.dot_dimension_numbers<[1], [0], [0], [1], [0, 0, 1, 1], [], []>} : vector<64x64xbf16>, vector<64x384xbf16>, vector<64x384xf32> -> vector<64x384xf32>
    %c383_i32 = arith.constant 383 : i32
    %10 = tpu.dynamic_rotate %9 by %c383_i32 dim 1 : vector<64x384xf32>, i32 -> vector<64x384xf32>
    %11 = arith.addf %4, %10 : vector<64x384xf32>
    %c2 = arith.constant 2 : index
    %c0_11 = arith.constant 0 : index
    %c0_12 = arith.constant 0 : index
    %12 = vector.load %arg3[%c2, %c0_11, %c0_12] : memref<4x64x64xbf16, #tpu.memory_space<vmem>>, vector<1x64x64xbf16>
    %13 = vector.shape_cast %12 : vector<1x64x64xbf16> to vector<64x64xbf16>
    %c0_13 = arith.constant 0 : index
    %c0_14 = arith.constant 0 : index
    %c0_15 = arith.constant 0 : index
    %14 = vector.load %arg2[%c0_13, %c0_14, %c0_15] : memref<1x64x384xbf16, #tpu.memory_space<vmem>>, vector<1x64x384xbf16>
    %15 = vector.shape_cast %14 : vector<1x64x384xbf16> to vector<64x384xbf16>
    %cst_16 = arith.constant dense<0.000000e+00> : vector<64x384xf32>
    %16 = tpu.matmul %13, %15, %cst_16 {dimension_numbers = #tpu.dot_dimension_numbers<[1], [0], [0], [1], [0, 0, 1, 1], [], []>} : vector<64x64xbf16>, vector<64x384xbf16>, vector<64x384xf32> -> vector<64x384xf32>
    %c367_i32 = arith.constant 367 : i32
    %17 = tpu.dynamic_rotate %16 by %c367_i32 dim 1 : vector<64x384xf32>, i32 -> vector<64x384xf32>
    %18 = arith.addf %11, %17 : vector<64x384xf32>
    %c3 = arith.constant 3 : index
    %c0_17 = arith.constant 0 : index
    %c0_18 = arith.constant 0 : index
    %19 = vector.load %arg3[%c3, %c0_17, %c0_18] : memref<4x64x64xbf16, #tpu.memory_space<vmem>>, vector<1x64x64xbf16>
    %20 = vector.shape_cast %19 : vector<1x64x64xbf16> to vector<64x64xbf16>
    %c0_19 = arith.constant 0 : index
    %c0_20 = arith.constant 0 : index
    %c0_21 = arith.constant 0 : index
    %21 = vector.load %arg2[%c0_19, %c0_20, %c0_21] : memref<1x64x384xbf16, #tpu.memory_space<vmem>>, vector<1x64x384xbf16>
    %22 = vector.shape_cast %21 : vector<1x64x384xbf16> to vector<64x384xbf16>
    %cst_22 = arith.constant dense<0.000000e+00> : vector<64x384xf32>
    %23 = tpu.matmul %20, %22, %cst_22 {dimension_numbers = #tpu.dot_dimension_numbers<[1], [0], [0], [1], [0, 0, 1, 1], [], []>} : vector<64x64xbf16>, vector<64x384xbf16>, vector<64x384xf32> -> vector<64x384xf32>
    %c366_i32 = arith.constant 366 : i32
    %24 = tpu.dynamic_rotate %23 by %c366_i32 dim 1 : vector<64x384xf32>, i32 -> vector<64x384xf32>
    %25 = arith.addf %18, %24 : vector<64x384xf32>
    %cst_23 = arith.constant 0.000000e+00 : f32
    %26 = vector.broadcast %cst_23 : f32 to vector<64x384xf32>
    %27 = arith.cmpf ogt, %25, %26 : vector<64x384xf32>
    %cst_24 = arith.constant 2.000000e-01 : f32
    %28 = vector.broadcast %cst_24 : f32 to vector<64x384xf32>
    %29 = arith.mulf %28, %25 : vector<64x384xf32>
    %30 = arith.select %27, %25, %29 : vector<64x384xi1>, vector<64x384xf32>
    %c0_25 = arith.constant 0 : index
    %c0_26 = arith.constant 0 : index
    %c0_27 = arith.constant 0 : index
    %31 = vector.load %arg5[%c0_25, %c0_26, %c0_27] : memref<1x64x384xf32, #tpu.memory_space<vmem>>, vector<1x64x384xf32>
    %32 = vector.shape_cast %31 : vector<1x64x384xf32> to vector<64x384xf32>
    %33 = vector.shape_cast %30 : vector<64x384xf32> to vector<1x64x384xf32>
    tpu.vector_store %arg5[%c0_25, %c0_26, %c0_27], %33 {strides = array<i32>} : memref<1x64x384xf32, #tpu.memory_space<vmem>>, vector<1x64x384xf32>,
    return
  }
  func.func @transform_0(%arg0: i32, %arg1: i32) -> (i32, i32, i32) {
    %c0_i32 = arith.constant 0 : i32
    %c0_i32_0 = arith.constant 0 : i32
    %c0_i32_1 = arith.constant 0 : i32
    return %arg0, %c0_i32, %c0_i32_0 : i32, i32, i32
  }
  func.func @transform_1(%arg0: i32, %arg1: i32) -> (i32, i32, i32) {
    %c0_i32 = arith.constant 0 : i32
    %c0_i32_0 = arith.constant 0 : i32
    %c0_i32_1 = arith.constant 0 : i32
    return %c0_i32, %arg1, %c0_i32_0 : i32, i32, i32
  }
  func.func @transform_2(%arg0: i32, %arg1: i32) -> (i32, i32) {
    %c0_i32 = arith.constant 0 : i32
    %c0_i32_0 = arith.constant 0 : i32
    %c0_i32_1 = arith.constant 0 : i32
    return %c0_i32, %c0_i32_0 : i32, i32
  }
  func.func @transform_3(%arg0: i32, %arg1: i32) -> (i32, i32, i32) {
    %c0_i32 = arith.constant 0 : i32
    %c0_i32_0 = arith.constant 0 : i32
    return %arg0, %arg1, %c0_i32 : i32, i32, i32
  }
}

module attributes {stable_mosaic.version = 11 : i64} {
  func.func @_unet_down_kernel(%arg0: i32, %arg1: i32, %arg2: memref<1x256x128xbf16, #tpu.memory_space<vmem>>, %arg3: memref<4x128x256xbf16, #tpu.memory_space<vmem>>, %arg4: memref<1x128xf32, #tpu.memory_space<vmem>>, %arg5: memref<1x128x128xf32, #tpu.memory_space<vmem>>) attributes {dimension_semantics = [#tpu.dimension_semantics<parallel>, #tpu.dimension_semantics<parallel>], iteration_bounds = array<i64: 2, 1>, scalar_prefetch = 0 : i64, scratch_operands = 0 : i64, tpu.core_type = #tpu.core_type<tc>, window_params = [{transform_indices = @transform_0, window_bounds = array<i64: 1, 256, 128>}, {transform_indices = @transform_1, window_bounds = array<i64: 4, 128, 256>}, {pipeline_mode = #tpu.pipeline_mode<synchronous>, transform_indices = @transform_2, window_bounds = array<i64: 1, 128>}, {transform_indices = @transform_3, window_bounds = array<i64: 1, 128, 128>}]} {
    %c0 = arith.constant 0 : index
    %c0_0 = arith.constant 0 : index
    %c0_1 = arith.constant 0 : index
    %0 = vector.load %arg3[%c0, %c0_0, %c0_1] : memref<4x128x256xbf16, #tpu.memory_space<vmem>>, vector<1x128x256xbf16>
    %1 = vector.shape_cast %0 : vector<1x128x256xbf16> to vector<128x256xbf16>
    %c0_2 = arith.constant 0 : index
    %c0_3 = arith.constant 0 : index
    %c0_4 = arith.constant 0 : index
    %2 = vector.load %arg2[%c0_2, %c0_3, %c0_4] : memref<1x256x128xbf16, #tpu.memory_space<vmem>>, vector<1x256x128xbf16>
    %3 = vector.shape_cast %2 : vector<1x256x128xbf16> to vector<256x128xbf16>
    %cst = arith.constant dense<0.000000e+00> : vector<128x128xf32>
    %4 = tpu.matmul %1, %3, %cst {dimension_numbers = #tpu.dot_dimension_numbers<[1], [0], [0], [1], [0, 0, 1, 1], [], []>} : vector<128x256xbf16>, vector<256x128xbf16>, vector<128x128xf32> -> vector<128x128xf32>
    %c1 = arith.constant 1 : index
    %c0_5 = arith.constant 0 : index
    %c0_6 = arith.constant 0 : index
    %5 = vector.load %arg3[%c1, %c0_5, %c0_6] : memref<4x128x256xbf16, #tpu.memory_space<vmem>>, vector<1x128x256xbf16>
    %6 = vector.shape_cast %5 : vector<1x128x256xbf16> to vector<128x256xbf16>
    %c0_7 = arith.constant 0 : index
    %c0_8 = arith.constant 0 : index
    %c0_9 = arith.constant 0 : index
    %7 = vector.load %arg2[%c0_7, %c0_8, %c0_9] : memref<1x256x128xbf16, #tpu.memory_space<vmem>>, vector<1x256x128xbf16>
    %8 = vector.shape_cast %7 : vector<1x256x128xbf16> to vector<256x128xbf16>
    %cst_10 = arith.constant dense<0.000000e+00> : vector<128x128xf32>
    %9 = tpu.matmul %6, %8, %cst_10 {dimension_numbers = #tpu.dot_dimension_numbers<[1], [0], [0], [1], [0, 0, 1, 1], [], []>} : vector<128x256xbf16>, vector<256x128xbf16>, vector<128x128xf32> -> vector<128x128xf32>
    %c127_i32 = arith.constant 127 : i32
    %10 = tpu.dynamic_rotate %9 by %c127_i32 dim 1 : vector<128x128xf32>, i32 -> vector<128x128xf32>
    %11 = arith.addf %4, %10 : vector<128x128xf32>
    %c2 = arith.constant 2 : index
    %c0_11 = arith.constant 0 : index
    %c0_12 = arith.constant 0 : index
    %12 = vector.load %arg3[%c2, %c0_11, %c0_12] : memref<4x128x256xbf16, #tpu.memory_space<vmem>>, vector<1x128x256xbf16>
    %13 = vector.shape_cast %12 : vector<1x128x256xbf16> to vector<128x256xbf16>
    %c0_13 = arith.constant 0 : index
    %c0_14 = arith.constant 0 : index
    %c0_15 = arith.constant 0 : index
    %14 = vector.load %arg2[%c0_13, %c0_14, %c0_15] : memref<1x256x128xbf16, #tpu.memory_space<vmem>>, vector<1x256x128xbf16>
    %15 = vector.shape_cast %14 : vector<1x256x128xbf16> to vector<256x128xbf16>
    %cst_16 = arith.constant dense<0.000000e+00> : vector<128x128xf32>
    %16 = tpu.matmul %13, %15, %cst_16 {dimension_numbers = #tpu.dot_dimension_numbers<[1], [0], [0], [1], [0, 0, 1, 1], [], []>} : vector<128x256xbf16>, vector<256x128xbf16>, vector<128x128xf32> -> vector<128x128xf32>
    %c119_i32 = arith.constant 119 : i32
    %17 = tpu.dynamic_rotate %16 by %c119_i32 dim 1 : vector<128x128xf32>, i32 -> vector<128x128xf32>
    %18 = arith.addf %11, %17 : vector<128x128xf32>
    %c3 = arith.constant 3 : index
    %c0_17 = arith.constant 0 : index
    %c0_18 = arith.constant 0 : index
    %19 = vector.load %arg3[%c3, %c0_17, %c0_18] : memref<4x128x256xbf16, #tpu.memory_space<vmem>>, vector<1x128x256xbf16>
    %20 = vector.shape_cast %19 : vector<1x128x256xbf16> to vector<128x256xbf16>
    %c0_19 = arith.constant 0 : index
    %c0_20 = arith.constant 0 : index
    %c0_21 = arith.constant 0 : index
    %21 = vector.load %arg2[%c0_19, %c0_20, %c0_21] : memref<1x256x128xbf16, #tpu.memory_space<vmem>>, vector<1x256x128xbf16>
    %22 = vector.shape_cast %21 : vector<1x256x128xbf16> to vector<256x128xbf16>
    %cst_22 = arith.constant dense<0.000000e+00> : vector<128x128xf32>
    %23 = tpu.matmul %20, %22, %cst_22 {dimension_numbers = #tpu.dot_dimension_numbers<[1], [0], [0], [1], [0, 0, 1, 1], [], []>} : vector<128x256xbf16>, vector<256x128xbf16>, vector<128x128xf32> -> vector<128x128xf32>
    %c118_i32 = arith.constant 118 : i32
    %24 = tpu.dynamic_rotate %23 by %c118_i32 dim 1 : vector<128x128xf32>, i32 -> vector<128x128xf32>
    %25 = arith.addf %18, %24 : vector<128x128xf32>
    %c0_23 = arith.constant 0 : index
    %c0_24 = arith.constant 0 : index
    %26 = vector.load %arg4[%c0_23, %c0_24] : memref<1x128xf32, #tpu.memory_space<vmem>>, vector<1x128xf32>
    %27 = vector.broadcast %26 : vector<1x128xf32> to vector<128x128xf32>
    %28 = arith.mulf %25, %27 : vector<128x128xf32>
    %cst_25 = arith.constant dense<0.000000e+00> : vector<128xf32>
    %29 = vector.multi_reduction <add>, %28, %cst_25 [1] : vector<128x128xf32> to vector<128xf32>
    %30 = vector.shape_cast %29 : vector<128xf32> to vector<128x1xf32>
    %31 = arith.mulf %28, %25 : vector<128x128xf32>
    %cst_26 = arith.constant dense<0.000000e+00> : vector<128xf32>
    %32 = vector.multi_reduction <add>, %31, %cst_26 [1] : vector<128x128xf32> to vector<128xf32>
    %33 = vector.shape_cast %32 : vector<128xf32> to vector<128x1xf32>
    %cst_27 = arith.constant 1.562500e-02 : f32
    %34 = vector.broadcast %cst_27 : f32 to vector<128x1xf32>
    %35 = arith.mulf %30, %34 : vector<128x1xf32>
    %cst_28 = arith.constant 1.562500e-02 : f32
    %36 = vector.broadcast %cst_28 : f32 to vector<128x1xf32>
    %37 = arith.mulf %33, %36 : vector<128x1xf32>
    %38 = arith.mulf %35, %35 : vector<128x1xf32>
    %39 = arith.subf %37, %38 : vector<128x1xf32>
    %cst_29 = arith.constant 0.000000e+00 : f32
    %40 = vector.broadcast %cst_29 : f32 to vector<128x1xf32>
    %41 = arith.maximumf %39, %40 : vector<128x1xf32>
    %42 = vector.broadcast %35 : vector<128x1xf32> to vector<128x128xf32>
    %43 = arith.subf %25, %42 : vector<128x128xf32>
    %cst_30 = arith.constant 9.99999974E-6 : f32
    %44 = vector.broadcast %cst_30 : f32 to vector<128x1xf32>
    %45 = arith.addf %41, %44 : vector<128x1xf32>
    %46 = math.rsqrt %45 : vector<128x1xf32>
    %47 = vector.broadcast %46 : vector<128x1xf32> to vector<128x128xf32>
    %48 = arith.mulf %43, %47 : vector<128x128xf32>
    %cst_31 = arith.constant 0.000000e+00 : f32
    %49 = vector.broadcast %cst_31 : f32 to vector<128x128xf32>
    %50 = arith.cmpf ogt, %48, %49 : vector<128x128xf32>
    %cst_32 = arith.constant 2.000000e-01 : f32
    %51 = vector.broadcast %cst_32 : f32 to vector<128x128xf32>
    %52 = arith.mulf %51, %48 : vector<128x128xf32>
    %53 = arith.select %50, %48, %52 : vector<128x128xi1>, vector<128x128xf32>
    %c0_33 = arith.constant 0 : index
    %c0_34 = arith.constant 0 : index
    %c0_35 = arith.constant 0 : index
    %54 = vector.load %arg5[%c0_33, %c0_34, %c0_35] : memref<1x128x128xf32, #tpu.memory_space<vmem>>, vector<1x128x128xf32>
    %55 = vector.shape_cast %54 : vector<1x128x128xf32> to vector<128x128xf32>
    %56 = vector.shape_cast %53 : vector<128x128xf32> to vector<1x128x128xf32>
    tpu.vector_store %arg5[%c0_33, %c0_34, %c0_35], %56 {strides = array<i32>} : memref<1x128x128xf32, #tpu.memory_space<vmem>>, vector<1x128x128xf32>,
    return
  }
  func.func @transform_0(%arg0: i32, %arg1: i32) -> (i32, i32, i32) {
    %c0_i32 = arith.constant 0 : i32
    %c0_i32_0 = arith.constant 0 : i32
    %c0_i32_1 = arith.constant 0 : i32
    return %arg0, %c0_i32, %c0_i32_0 : i32, i32, i32
  }
  func.func @transform_1(%arg0: i32, %arg1: i32) -> (i32, i32, i32) {
    %c0_i32 = arith.constant 0 : i32
    %c0_i32_0 = arith.constant 0 : i32
    %c0_i32_1 = arith.constant 0 : i32
    return %c0_i32, %arg1, %c0_i32_0 : i32, i32, i32
  }
  func.func @transform_2(%arg0: i32, %arg1: i32) -> (i32, i32) {
    %c0_i32 = arith.constant 0 : i32
    %c0_i32_0 = arith.constant 0 : i32
    %c0_i32_1 = arith.constant 0 : i32
    return %c0_i32, %c0_i32_0 : i32, i32
  }
  func.func @transform_3(%arg0: i32, %arg1: i32) -> (i32, i32, i32) {
    %c0_i32 = arith.constant 0 : i32
    %c0_i32_0 = arith.constant 0 : i32
    return %arg0, %arg1, %c0_i32 : i32, i32, i32
  }
}

</mosaic_0001>

<llo_original>
// kernel: forward.5
$region0: #{forward.5}
  #allocation0 [shape = 'u32[]', space=smem, size = 0x4, offset = 0x4, fixed_abs, tag = 'smem constant byte address 0x4 - core index']
  #allocation1 [shape = 'u32[72,128]{1,0:T(1,128)}', space=vmem, size = 0x9000, scoped, tag = 'internal scratch']
  #allocation2 [shape = 'u32[2048]{0}', space=vmem, size = 0x2000, scoped, tag = 'scoped memory for forward.5']
  #allocation3 [shape = 'u32[2048]{0}', space=vmem, size = 0x2000, scoped, tag = 'scoped memory for forward.5']
  #allocation4 [shape = 'u32[2048]{0}', space=vmem, size = 0x2000, scoped, tag = 'scoped memory for forward.5']
  #allocation5 [shape = 'u32[2048]{0}', space=vmem, size = 0x2000, scoped, tag = 'scoped memory for forward.5']
  #allocation6 [shape = 'u32[2048]{0}', space=vmem, size = 0x2000, scoped, tag = 'scoped memory for forward.5']
  %s0 = inlined_call_operand.vmem [shape: bf16[4,64,64], index: 0, kind: input, shape index: {}]
  %s1 = inlined_call_operand.vmem [shape: f32[1,384], index: 1, kind: input, shape index: {}]
  %s2 = inlined_call_operand.vmem [shape: bf16[2,64,289], index: 2, kind: input, shape index: {}]
  %s3 = inlined_call_operand.<no memory space> [shape: bf16[], index: 3, kind: input, shape index: {}]
  %s4 = inlined_call_operand.vmem [shape: f32[2,64,384], index: 4, kind: output, shape index: {}]
  %s5 = sld [smem:[#allocation0]]
  $region45: #{forward.5} parent=0
    _
  %s7 = ssub.s32 1, %s5
  %s8 = scalar_select 0, %s7, %s5
  %v9 = vstv %s3
  %v10 = vunpack.i.l.bf16 %v9
  %v12 = vunpack.i.h.bf16 %v9
  loop: start=0, step=1, limit=4
  $region2: #{forward.5} parent=0 // loop_pre_header
    _
  $region3: #{forward.5} parent=0 // loop_header
    %s15 = sphi 0, %s19
    %p16 = scmp.ge.s32.totalorder %s15, 4
    %s22 = sphi 0, %s34
    %s23 = sphi 0, %s30
    %s24 = sphi 0, %s22
    %s25 = sphi 0, %s23
    %s26 = sphi 0, %s24
    %s27 = sphi 0, %s25
    %s37 = sphi 0, %s39
    %s40 = sphi 0, %s37
    %s41 = sphi 0, %s40
    %s57 = sphi 0, %s41
    %s63 = sphi 0, %s65
    %s66 = sphi 0, %s63
    %s67 = sphi 0, %s66
    %s83 = sphi 0, %s67
    %s87 = sphi 0, %s87
    %s89 = sphi 0, %s87
    %s90 = sphi 0, %s89
    %s104 = sphi 0, %s90
    %s112 = sphi 0, %s114
    %s115 = sphi 0, %s112
    %s116 = sphi 0, %s115
    %s132 = sphi 0, %s116
  $region4: #{forward.5} parent=0 // loop_header_branch
    %18 = sbr.rel (%p16) target = $region8
  $region5: #{forward.5} parent=0 // loop_body
    %s20 = ssub.s32 %s15, 1
    %s21 = ssub.s32 %s15, 2
    %s28 = sadd.s32 1, %s23
    %p29 = scmp.ge.s32.totalorder %s28, 1
    %s30 = scalar_select %p29, 0, %s28
    %s31 = sadd.s32 1, %s22
    %s32 = scalar_select %p29, %s31, %s22
    %p33 = scmp.ge.s32.totalorder %s32, 2
    %s34 = scalar_select %p33, 0, %s32
    %s35 = ssub.s32 %s22, %s34
    %p36 = scmp.eq.s32.totalorder %s35, 0
    %s38 = sadd.s32 %s37, 1
    %s39 = scalar_select %p36, %s37, %s38
    %p42 = pneg %p36
    %p43 = scmp.eq.s32.totalorder %s15, 1
    %p44 = por %p42, %p43
    %p45 = scmp.ne.s32.totalorder %s37, %s40
    %p46 = scmp.eq.s32.totalorder %s15, 0
    %p47 = por %p45, %p46
    %p48 = scmp.ne.s32.totalorder %s37, %s40
    %p49 = scmp.eq.s32.totalorder %s20, 1
    %p50 = por %p48, %p49
    %p51 = scmp.ne.s32.totalorder %s40, %s41
    %p52 = scmp.eq.s32.totalorder %s20, 0
    %p53 = por %p51, %p52
    %p54 = scmp.ne.s32.totalorder %s40, %s41
    %p55 = scmp.eq.s32.totalorder %s21, 1
    %p56 = por %p54, %p55
    %p58 = scmp.ne.s32.totalorder %s41, %s57
    %p59 = scmp.eq.s32.totalorder %s21, 0
    %p60 = por %p58, %p59
    %s61 = ssub.s32 %s23, %s30
    %p62 = scmp.eq.s32.totalorder %s61, 0
    %s64 = sadd.s32 %s63, 1
    %s65 = scalar_select %p62, %s63, %s64
    %p68 = pneg %p62
    %p69 = scmp.eq.s32.totalorder %s15, 1
    %p70 = por %p68, %p69
    %p71 = scmp.ne.s32.totalorder %s63, %s66
    %p72 = scmp.eq.s32.totalorder %s15, 0
    %p73 = por %p71, %p72
    %p74 = scmp.ne.s32.totalorder %s63, %s66
    %p75 = scmp.eq.s32.totalorder %s20, 1
    %p76 = por %p74, %p75
    %p77 = scmp.ne.s32.totalorder %s66, %s67
    %p78 = scmp.eq.s32.totalorder %s20, 0
    %p79 = por %p77, %p78
    %p80 = scmp.ne.s32.totalorder %s66, %s67
    %p81 = scmp.eq.s32.totalorder %s21, 1
    %p82 = por %p80, %p81
    %p84 = scmp.ne.s32.totalorder %s67, %s83
    %p85 = scmp.eq.s32.totalorder %s21, 0
    %p86 = por %p84, %p85
    %s88 = sadd.s32 %s87, 1
    %p91 = scmp.eq.s32.totalorder %s15, 1
    %p92 = scmp.ne.s32.totalorder %s87, %s89
    %p93 = scmp.eq.s32.totalorder %s15, 0
    %p94 = por %p92, %p93
    %p95 = scmp.ne.s32.totalorder %s87, %s89
    %p96 = scmp.eq.s32.totalorder %s20, 1
    %p97 = por %p95, %p96
    %p98 = scmp.ne.s32.totalorder %s89, %s90
    %p99 = scmp.eq.s32.totalorder %s20, 0
    %p100 = por %p98, %p99
    %p101 = scmp.ne.s32.totalorder %s89, %s90
    %p102 = scmp.eq.s32.totalorder %s21, 1
    %p103 = por %p101, %p102
    %p105 = scmp.ne.s32.totalorder %s90, %s104
    %p106 = scmp.eq.s32.totalorder %s21, 0
    %p107 = por %p105, %p106
    %s108 = ssub.s32 %s22, %s34
    %s109 = ssub.s32 %s23, %s30
    %s110 = sor.u32 %s108, %s109
    %p111 = scmp.eq.s32.totalorder %s110, 0
    %s113 = sadd.s32 %s112, 1
    %s114 = scalar_select %p111, %s112, %s113
    %p117 = pneg %p111
    %p118 = scmp.eq.s32.totalorder %s15, 1
    %p119 = por %p117, %p118
    %p120 = scmp.ne.s32.totalorder %s112, %s115
    %p121 = scmp.eq.s32.totalorder %s15, 0
    %p122 = por %p120, %p121
    %p123 = scmp.ne.s32.totalorder %s112, %s115
    %p124 = scmp.eq.s32.totalorder %s20, 1
    %p125 = por %p123, %p124
    %p126 = scmp.ne.s32.totalorder %s115, %s116
    %p127 = scmp.eq.s32.totalorder %s20, 0
    %p128 = por %p126, %p127
    %p129 = scmp.ne.s32.totalorder %s115, %s116
    %p130 = scmp.eq.s32.totalorder %s21, 1
    %p131 = por %p129, %p130
    %p133 = scmp.ne.s32.totalorder %s116, %s132
    %p134 = scmp.eq.s32.totalorder %s21, 0
    %p135 = por %p133, %p134
    %p136 = scmp.le.s32.totalorder 1, %s15
    %p137 = scmp.lt.s32.totalorder %s15, 3
    %p138 = pnand %p136, %p137
    %p139 = pneg %p138
    // Predicated region
    $region9: #{forward.5} parent=5 // pred_check
      _
    $region10: #{forward.5} parent=5 // pred_check_branch
      %141 = sbr.rel (%p138) target = $region12
    $region11: #{forward.5} parent=5 // pred_region
      %s142 = ssub.s32 %s15, 1
      // Predicated region
      $region13: #{forward.5} parent=11 // pred_check
        %p143 = pneg %p79
      $region14: #{forward.5} parent=11 // pred_check_branch
        %145 = sbr.rel (%p143) target = $region16
      $region15: #{forward.5} parent=11 // pred_region
        %s146 = smul.u32 8, %s25
        %p147 = scmp.lt.s32.totalorder %s146, 7
        %s148 = scalar_select %p147, %s146, 7
        %s149 = smul.addr %s148, 4
        %s150 = scalar_lea.vmem %s0, %s149
        %s151 = smul.u32 8, %s25
      $region16: #{forward.5} parent=11 // pred_fallthru
        _
      // Predicated region
      $region17: #{forward.5} parent=11 // pred_check
        %p152 = pneg %p100
      $region18: #{forward.5} parent=11 // pred_check_branch
        %154 = sbr.rel (%p152) target = $region20
      $region19: #{forward.5} parent=11 // pred_region
        _
      $region20: #{forward.5} parent=11 // pred_fallthru
        _
    $region12: #{forward.5} parent=5 // pred_fallthru
      _
    %p155 = scmp.lt.s32.totalorder %s15, 2
    // Predicated region
    $region21: #{forward.5} parent=5 // pred_check
      %p156 = pneg %p155
    $region22: #{forward.5} parent=5 // pred_check_branch
      %158 = sbr.rel (%p156) target = $region24
    $region23: #{forward.5} parent=5 // pred_region
      // Predicated region
      $region25: #{forward.5} parent=23 // pred_check
        %p159 = pneg %p47
      $region26: #{forward.5} parent=23 // pred_check_branch
        %161 = sbr.rel (%p159) target = $region28
      $region27: #{forward.5} parent=23 // pred_region
        %p162 = scmp.lt.s32.totalorder %s22, 1
        %s163 = scalar_select %p162, %s22, 1
        %s164 = smul.addr %s163, 24
        %s165 = smul.addr %s164, 4
        %s166 = scalar_lea.vmem %s2, %s165
      $region28: #{forward.5} parent=23 // pred_fallthru
        _
    $region24: #{forward.5} parent=5 // pred_fallthru
      _
    %p167 = scmp.le.s32.totalorder 1, %s15
    %p168 = scmp.lt.s32.totalorder %s15, 3
    %p169 = pnand %p167, %p168
    %p170 = pneg %p169
    // Predicated region
    $region29: #{forward.5} parent=5 // pred_check
      _
    $region30: #{forward.5} parent=5 // pred_check_branch
      %172 = sbr.rel (%p169) target = $region32
    $region31: #{forward.5} parent=5 // pred_region
      #allocation7 [shape = 'u8[49152]{0}', space=vmem, size = 0xc000, dematerialized = true, scoped, tag = 'FusionAdapter Buffer %fusion.4 = bf16[2,64,384]{2,1,0:T(8,128)(2,1)} fusion(%param_2.9, %param_3.9), kind=kLoop, calls=%fused_computation.10.clone, metadata={op_name="jit(forward)/jit(_pad)/pad" stack_frame_id=19}']
      %s173 = ssub.s32 %s15, 1
      %p174 = scmp.lt.s32.totalorder %s24, 1
      %s175 = scalar_select %p174, %s24, 1
      %s176 = smul.addr %s175, 24
      %s177 = smul.addr %s176, 4
      %s178 = scalar_lea.vmem %s2, %s177
      %p179 = pneg %p53
      %p180 = pneg %p50
      %s181 = smul.u32 8, %s25
      %p182 = scmp.lt.s32.totalorder %s181, 7
      %s183 = scalar_select %p182, %s181, 7
      %s184 = smul.addr %s183, 4
      %s185 = scalar_lea.vmem %s0, %s184
      %p186 = pneg %p79
      %p187 = pneg %p76
      %p188 = pneg %p100
      %p189 = pneg %p97
      %p190 = pneg %p128
      %p191 = pneg %p125
      %s192 = smul.u32 8, %s25
      %p193 = scmp.lt.s32.totalorder %s24, 1
      %s194 = scalar_select %p193, %s24, 1
      %p195 = scmp.lt.s32.totalorder %s192, 7
      %s196 = scalar_select %p195, %s192, 7
      %s197 = smul.addr %s196, 3
      %s198 = smul.addr %s194, 24
      %s199 = sadd.s32 %s197, %s198
      %s200 = smul.addr %s199, 8
      %s201 = scalar_lea.vmem %s4, %s200
      %p202 = scmp.lt.s32.totalorder %s24, 1
      %s203 = scalar_select %p202, %s24, 1
      %s204 = smul.addr %s203, 24
      %s205 = smul.addr %s204, 4
      %s206 = scalar_lea.vmem %s2, %s205
      %s207 = smul.u32 8, %s25
      %p208 = scmp.lt.s32.totalorder %s207, 7
      %s209 = scalar_select %p208, %s207, 7
      %s210 = smul.addr %s209, 4
      %s211 = scalar_lea.vmem %s0, %s210
      %s212 = smul.u32 8, %s25
      %s213 = smul.u32 8, %s25
      %p214 = scmp.lt.s32.totalorder %s24, 1
      %s215 = scalar_select %p214, %s24, 1
      %p216 = scmp.lt.s32.totalorder %s213, 7
      %s217 = scalar_select %p216, %s213, 7
      %s218 = smul.addr %s217, 3
      %s219 = smul.addr %s215, 24
      %s220 = sadd.s32 %s218, %s219
      %s221 = smul.addr %s220, 8
      %s222 = scalar_lea.vmem %s4, %s221
      %s223 = smul.u32 8, %s25
      %v224 = vld [vmem:[%s206] sm:$0xf]
      %v225 = vunpack.c.l.bf16 %v224
      %v226 = vunpack.c.h.bf16 %v224
      %v227 = vlaneseq
      %v228 = vand.u32 %v227, 127
      %vm230 = vcmp.lt.s32.totalorder %v228, 289
      %v231 = vsel %vm230, %v225, %v10
      %v232 = vpack.c.bf16 0.0, %v231
      %s234 = ssub.s32 16, 1
      %235 = vst [vmem:[#allocation7] sm:%s234] %v232
      %s236 = scalar_lea.vmem %s206, 4
      %v237 = vld [vmem:[%s236] sm:$0xf]
      %v238 = vunpack.c.l.bf16 %v237
      %v239 = vunpack.c.h.bf16 %v237
      %v240 = vlaneseq
      %v241 = vand.u32 %v240, 127
      %v242 = vadd.s32 %v241, 128
      %vm243 = vcmp.lt.s32.totalorder %v242, 289
      %v244 = vsel %vm243, %v238, %v10
      %s245 = scalar_lea.vmem [#allocation7], 4
      %v246 = vpack.c.bf16 0.0, %v244
      %s248 = ssub.s32 16, 1
      %249 = vst [vmem:[%s245] sm:%s248] %v246
      %s250 = scalar_lea.vmem %s206, 8
      %s252 = sor.u32 255, 127
      %s253 = sand.u32 %s252, 85
      %s254 = sshrl.u32 %s253, 1
      %s255 = sor.u32 %s253, %s254
      %s256 = sand.u32 51, %s255
      %s257 = sshrl.u32 %s256, 2
      %s258 = sor.u32 %s256, %s257
      %s259 = sand.u32 15, %s258
      %v260 = vld [vmem:[%s250] sm:%s259]
      %v261 = vunpack.c.l.bf16 %v260
      %v262 = vunpack.c.h.bf16 %v260
      %v263 = vlaneseq
      %v264 = vand.u32 %v263, 127
      %v265 = vadd.s32 %v264, 256
      %vm266 = vcmp.lt.s32.totalorder %v265, 289
      %v267 = vsel %vm266, %v261, %v10
      %s268 = scalar_lea.vmem [#allocation7], 8
      %v269 = vpack.c.bf16 0.0, %v267
      %s271 = ssub.s32 16, 1
      %272 = vst [vmem:[%s268] sm:%s271] %v269
      %s273 = scalar_lea.vmem %s206, 12
      %v274 = vld [vmem:[%s273] sm:$0xf]
      %v275 = vunpack.c.l.bf16 %v274
      %v276 = vunpack.c.h.bf16 %v274
      %v277 = vlaneseq
      %v278 = vand.u32 %v277, 127
      %vm280 = vcmp.lt.s32.totalorder %v278, 289
      %v281 = vsel %vm280, %v275, %v10
      %s282 = scalar_lea.vmem [#allocation7], 12
      %v283 = vpack.c.bf16 0.0, %v281
      %s285 = ssub.s32 16, 1
      %286 = vst [vmem:[%s282] sm:%s285] %v283
      %s287 = scalar_lea.vmem %s206, 16
      %v288 = vld [vmem:[%s287] sm:$0xf]
      %v289 = vunpack.c.l.bf16 %v288
      %v290 = vunpack.c.h.bf16 %v288
      %v291 = vlaneseq
      %v292 = vand.u32 %v291, 127
      %v293 = vadd.s32 %v292, 128
      %vm294 = vcmp.lt.s32.totalorder %v293, 289
      %v295 = vsel %vm294, %v289, %v10
      %s296 = scalar_lea.vmem [#allocation7], 16
      %v297 = vpack.c.bf16 0.0, %v295
      %s299 = ssub.s32 16, 1
      %300 = vst [vmem:[%s296] sm:%s299] %v297
      %s301 = scalar_lea.vmem %s206, 20
      %s303 = sor.u32 255, 127
      %s304 = sand.u32 %s303, 85
      %s305 = sshrl.u32 %s304, 1
      %s306 = sor.u32 %s304, %s305
      %s307 = sand.u32 51, %s306
      %s308 = sshrl.u32 %s307, 2
      %s309 = sor.u32 %s307, %s308
      %s310 = sand.u32 15, %s309
      %v311 = vld [vmem:[%s301] sm:%s310]
      %v312 = vunpack.c.l.bf16 %v311
      %v313 = vunpack.c.h.bf16 %v311
      %v314 = vlaneseq
      %v315 = vand.u32 %v314, 127
      %v316 = vadd.s32 %v315, 256
      %vm317 = vcmp.lt.s32.totalorder %v316, 289
      %v318 = vsel %vm317, %v312, %v10
      %s319 = scalar_lea.vmem [#allocation7], 20
      %v320 = vpack.c.bf16 0.0, %v318
      %s322 = ssub.s32 16, 1
      %323 = vst [vmem:[%s319] sm:%s322] %v320
      %s324 = scalar_lea.vmem %s206, 24
      %v325 = vld [vmem:[%s324] sm:$0xf]
      %v326 = vunpack.c.l.bf16 %v325
      %v327 = vunpack.c.h.bf16 %v325
      %v328 = vlaneseq
      %v329 = vand.u32 %v328, 127
      %vm331 = vcmp.lt.s32.totalorder %v329, 289
      %v332 = vsel %vm331, %v326, %v10
      %s333 = scalar_lea.vmem [#allocation7], 24
      %v334 = vpack.c.bf16 0.0, %v332
      %s336 = ssub.s32 16, 1
      %337 = vst [vmem:[%s333] sm:%s336] %v334
      %s338 = scalar_lea.vmem %s206, 28
      %v339 = vld [vmem:[%s338] sm:$0xf]
      %v340 = vunpack.c.l.bf16 %v339
      %v341 = vunpack.c.h.bf16 %v339
      %v342 = vlaneseq
      %v343 = vand.u32 %v342, 127
      %v344 = vadd.s32 %v343, 128
      %vm345 = vcmp.lt.s32.totalorder %v344, 289
      %v346 = vsel %vm345, %v340, %v10
      %s347 = scalar_lea.vmem [#allocation7], 28
      %v348 = vpack.c.bf16 0.0, %v346
      %s350 = ssub.s32 16, 1
      %351 = vst [vmem:[%s347] sm:%s350] %v348
      %s352 = scalar_lea.vmem %s206, 32
      %s354 = sor.u32 255, 127
      %s355 = sand.u32 %s354, 85
      %s356 = sshrl.u32 %s355, 1
      %s357 = sor.u32 %s355, %s356
      %s358 = sand.u32 51, %s357
      %s359 = sshrl.u32 %s358, 2
      %s360 = sor.u32 %s358, %s359
      %s361 = sand.u32 15, %s360
      %v362 = vld [vmem:[%s352] sm:%s361]
      %v363 = vunpack.c.l.bf16 %v362
      %v364 = vunpack.c.h.bf16 %v362
      %v365 = vlaneseq
      %v366 = vand.u32 %v365, 127
      %v367 = vadd.s32 %v366, 256
      %vm368 = vcmp.lt.s32.totalorder %v367, 289
      %v369 = vsel %vm368, %v363, %v10
      %s370 = scalar_lea.vmem [#allocation7], 32
      %v371 = vpack.c.bf16 0.0, %v369
      %s373 = ssub.s32 16, 1
      %374 = vst [vmem:[%s370] sm:%s373] %v371
      %s375 = scalar_lea.vmem %s206, 36
      %v376 = vld [vmem:[%s375] sm:$0xf]
      %v377 = vunpack.c.l.bf16 %v376
      %v378 = vunpack.c.h.bf16 %v376
      %v379 = vlaneseq
      %v380 = vand.u32 %v379, 127
      %vm382 = vcmp.lt.s32.totalorder %v380, 289
      %v383 = vsel %vm382, %v377, %v10
      %s384 = scalar_lea.vmem [#allocation7], 36
      %v385 = vpack.c.bf16 0.0, %v383
      %s387 = ssub.s32 16, 1
      %388 = vst [vmem:[%s384] sm:%s387] %v385
      %s389 = scalar_lea.vmem %s206, 40
      %v390 = vld [vmem:[%s389] sm:$0xf]
      %v391 = vunpack.c.l.bf16 %v390
      %v392 = vunpack.c.h.bf16 %v390
      %v393 = vlaneseq
      %v394 = vand.u32 %v393, 127
      %v395 = vadd.s32 %v394, 128
      %vm396 = vcmp.lt.s32.totalorder %v395, 289
      %v397 = vsel %vm396, %v391, %v10
      %s398 = scalar_lea.vmem [#allocation7], 40
      %v399 = vpack.c.bf16 0.0, %v397
      %s401 = ssub.s32 16, 1
      %402 = vst [vmem:[%s398] sm:%s401] %v399
      %s403 = scalar_lea.vmem %s206, 44
      %s405 = sor.u32 255, 127
      %s406 = sand.u32 %s405, 85
      %s407 = sshrl.u32 %s406, 1
      %s408 = sor.u32 %s406, %s407
      %s409 = sand.u32 51, %s408
      %s410 = sshrl.u32 %s409, 2
      %s411 = sor.u32 %s409, %s410
      %s412 = sand.u32 15, %s411
      %v413 = vld [vmem:[%s403] sm:%s412]
      %v414 = vunpack.c.l.bf16 %v413
      %v415 = vunpack.c.h.bf16 %v413
      %v416 = vlaneseq
      %v417 = vand.u32 %v416, 127
      %v418 = vadd.s32 %v417, 256
      %vm419 = vcmp.lt.s32.totalorder %v418, 289
      %v420 = vsel %vm419, %v414, %v10
      %s421 = scalar_lea.vmem [#allocation7], 44
      %v422 = vpack.c.bf16 0.0, %v420
      %s424 = ssub.s32 16, 1
      %425 = vst [vmem:[%s421] sm:%s424] %v422
      %s426 = scalar_lea.vmem %s206, 48
      %v427 = vld [vmem:[%s426] sm:$0xf]
      %v428 = vunpack.c.l.bf16 %v427
      %v429 = vunpack.c.h.bf16 %v427
      %v430 = vlaneseq
      %v431 = vand.u32 %v430, 127
      %vm433 = vcmp.lt.s32.totalorder %v431, 289
      %v434 = vsel %vm433, %v428, %v10
      %s435 = scalar_lea.vmem [#allocation7], 48
      %v436 = vpack.c.bf16 0.0, %v434
      %s438 = ssub.s32 16, 1
      %439 = vst [vmem:[%s435] sm:%s438] %v436
      %s440 = scalar_lea.vmem %s206, 52
      %v441 = vld [vmem:[%s440] sm:$0xf]
      %v442 = vunpack.c.l.bf16 %v441
      %v443 = vunpack.c.h.bf16 %v441
      %v444 = vlaneseq
      %v445 = vand.u32 %v444, 127
      %v446 = vadd.s32 %v445, 128
      %vm447 = vcmp.lt.s32.totalorder %v446, 289
      %v448 = vsel %vm447, %v442, %v10
      %s449 = scalar_lea.vmem [#allocation7], 52
      %v450 = vpack.c.bf16 0.0, %v448
      %s452 = ssub.s32 16, 1
      %453 = vst [vmem:[%s449] sm:%s452] %v450
      %s454 = scalar_lea.vmem %s206, 56
      %s456 = sor.u32 255, 127
      %s457 = sand.u32 %s456, 85
      %s458 = sshrl.u32 %s457, 1
      %s459 = sor.u32 %s457, %s458
      %s460 = sand.u32 51, %s459
      %s461 = sshrl.u32 %s460, 2
      %s462 = sor.u32 %s460, %s461
      %s463 = sand.u32 15, %s462
      %v464 = vld [vmem:[%s454] sm:%s463]
      %v465 = vunpack.c.l.bf16 %v464
      %v466 = vunpack.c.h.bf16 %v464
      %v467 = vlaneseq
      %v468 = vand.u32 %v467, 127
      %v469 = vadd.s32 %v468, 256
      %vm470 = vcmp.lt.s32.totalorder %v469, 289
      %v471 = vsel %vm470, %v465, %v10
      %s472 = scalar_lea.vmem [#allocation7], 56
      %v473 = vpack.c.bf16 0.0, %v471
      %s475 = ssub.s32 16, 1
      %476 = vst [vmem:[%s472] sm:%s475] %v473
      %s477 = scalar_lea.vmem %s206, 60
      %v478 = vld [vmem:[%s477] sm:$0xf]
      %v479 = vunpack.c.l.bf16 %v478
      %v480 = vunpack.c.h.bf16 %v478
      %v481 = vlaneseq
      %v482 = vand.u32 %v481, 127
      %vm484 = vcmp.lt.s32.totalorder %v482, 289
      %v485 = vsel %vm484, %v479, %v10
      %s486 = scalar_lea.vmem [#allocation7], 60
      %v487 = vpack.c.bf16 0.0, %v485
      %s489 = ssub.s32 16, 1
      %490 = vst [vmem:[%s486] sm:%s489] %v487
      %s491 = scalar_lea.vmem %s206, 64
      %v492 = vld [vmem:[%s491] sm:$0xf]
      %v493 = vunpack.c.l.bf16 %v492
      %v494 = vunpack.c.h.bf16 %v492
      %v495 = vlaneseq
      %v496 = vand.u32 %v495, 127
      %v497 = vadd.s32 %v496, 128
      %vm498 = vcmp.lt.s32.totalorder %v497, 289
      %v499 = vsel %vm498, %v493, %v10
      %s500 = scalar_lea.vmem [#allocation7], 64
      %v501 = vpack.c.bf16 0.0, %v499
      %s503 = ssub.s32 16, 1
      %504 = vst [vmem:[%s500] sm:%s503] %v501
      %s505 = scalar_lea.vmem %s206, 68
      %s507 = sor.u32 255, 127
      %s508 = sand.u32 %s507, 85
      %s509 = sshrl.u32 %s508, 1
      %s510 = sor.u32 %s508, %s509
      %s511 = sand.u32 51, %s510
      %s512 = sshrl.u32 %s511, 2
      %s513 = sor.u32 %s511, %s512
      %s514 = sand.u32 15, %s513
      %v515 = vld [vmem:[%s505] sm:%s514]
      %v516 = vunpack.c.l.bf16 %v515
      %v517 = vunpack.c.h.bf16 %v515
      %v518 = vlaneseq
      %v519 = vand.u32 %v518, 127
      %v520 = vadd.s32 %v519, 256
      %vm521 = vcmp.lt.s32.totalorder %v520, 289
      %v522 = vsel %vm521, %v516, %v10
      %s523 = scalar_lea.vmem [#allocation7], 68
      %v524 = vpack.c.bf16 0.0, %v522
      %s526 = ssub.s32 16, 1
      %527 = vst [vmem:[%s523] sm:%s526] %v524
      %s528 = scalar_lea.vmem %s206, 72
      %v529 = vld [vmem:[%s528] sm:$0xf]
      %v530 = vunpack.c.l.bf16 %v529
      %v531 = vunpack.c.h.bf16 %v529
      %v532 = vlaneseq
      %v533 = vand.u32 %v532, 127
      %vm535 = vcmp.lt.s32.totalorder %v533, 289
      %v536 = vsel %vm535, %v530, %v10
      %s537 = scalar_lea.vmem [#allocation7], 72
      %v538 = vpack.c.bf16 0.0, %v536
      %s540 = ssub.s32 16, 1
      %541 = vst [vmem:[%s537] sm:%s540] %v538
      %s542 = scalar_lea.vmem %s206, 76
      %v543 = vld [vmem:[%s542] sm:$0xf]
      %v544 = vunpack.c.l.bf16 %v543
      %v545 = vunpack.c.h.bf16 %v543
      %v546 = vlaneseq
      %v547 = vand.u32 %v546, 127
      %v548 = vadd.s32 %v547, 128
      %vm549 = vcmp.lt.s32.totalorder %v548, 289
      %v550 = vsel %vm549, %v544, %v10
      %s551 = scalar_lea.vmem [#allocation7], 76
      %v552 = vpack.c.bf16 0.0, %v550
      %s554 = ssub.s32 16, 1
      %555 = vst [vmem:[%s551] sm:%s554] %v552
      %s556 = scalar_lea.vmem %s206, 80
      %s558 = sor.u32 255, 127
      %s559 = sand.u32 %s558, 85
      %s560 = sshrl.u32 %s559, 1
      %s561 = sor.u32 %s559, %s560
      %s562 = sand.u32 51, %s561
      %s563 = sshrl.u32 %s562, 2
      %s564 = sor.u32 %s562, %s563
      %s565 = sand.u32 15, %s564
      %v566 = vld [vmem:[%s556] sm:%s565]
      %v567 = vunpack.c.l.bf16 %v566
      %v568 = vunpack.c.h.bf16 %v566
      %v569 = vlaneseq
      %v570 = vand.u32 %v569, 127
      %v571 = vadd.s32 %v570, 256
      %vm572 = vcmp.lt.s32.totalorder %v571, 289
      %v573 = vsel %vm572, %v567, %v10
      %s574 = scalar_lea.vmem [#allocation7], 80
      %v575 = vpack.c.bf16 0.0, %v573
      %s577 = ssub.s32 16, 1
      %578 = vst [vmem:[%s574] sm:%s577] %v575
      %s579 = scalar_lea.vmem %s206, 84
      %v580 = vld [vmem:[%s579] sm:$0xf]
      %v581 = vunpack.c.l.bf16 %v580
      %v582 = vunpack.c.h.bf16 %v580
      %v583 = vlaneseq
      %v584 = vand.u32 %v583, 127
      %vm586 = vcmp.lt.s32.totalorder %v584, 289
      %v587 = vsel %vm586, %v581, %v10
      %s588 = scalar_lea.vmem [#allocation7], 84
      %v589 = vpack.c.bf16 0.0, %v587
      %s591 = ssub.s32 16, 1
      %592 = vst [vmem:[%s588] sm:%s591] %v589
      %s593 = scalar_lea.vmem %s206, 88
      %v594 = vld [vmem:[%s593] sm:$0xf]
      %v595 = vunpack.c.l.bf16 %v594
      %v596 = vunpack.c.h.bf16 %v594
      %v597 = vlaneseq
      %v598 = vand.u32 %v597, 127
      %v599 = vadd.s32 %v598, 128
      %vm600 = vcmp.lt.s32.totalorder %v599, 289
      %v601 = vsel %vm600, %v595, %v10
      %s602 = scalar_lea.vmem [#allocation7], 88
      %v603 = vpack.c.bf16 0.0, %v601
      %s605 = ssub.s32 16, 1
      %606 = vst [vmem:[%s602] sm:%s605] %v603
      %s607 = scalar_lea.vmem %s206, 92
      %s609 = sor.u32 255, 127
      %s610 = sand.u32 %s609, 85
      %s611 = sshrl.u32 %s610, 1
      %s612 = sor.u32 %s610, %s611
      %s613 = sand.u32 51, %s612
      %s614 = sshrl.u32 %s613, 2
      %s615 = sor.u32 %s613, %s614
      %s616 = sand.u32 15, %s615
      %v617 = vld [vmem:[%s607] sm:%s616]
      %v618 = vunpack.c.l.bf16 %v617
      %v619 = vunpack.c.h.bf16 %v617
      %v620 = vlaneseq
      %v621 = vand.u32 %v620, 127
      %v622 = vadd.s32 %v621, 256
      %vm623 = vcmp.lt.s32.totalorder %v622, 289
      %v624 = vsel %vm623, %v618, %v10
      %s625 = scalar_lea.vmem [#allocation7], 92
      %v626 = vpack.c.bf16 0.0, %v624
      %s628 = ssub.s32 16, 1
      %629 = vst [vmem:[%s625] sm:%s628] %v626
      %v631 = vld [vmem:[%s211] sm:$0xf]
      %v632 = vld [vmem:[%s211 + $0x4] sm:$0xf]
      %v633 = vld [vmem:[%s211 + $0x8] sm:$0xf]
      %v634 = vld [vmem:[%s211 + $0xc] sm:$0xf]
      %v635 = vld [vmem:[%s211 + $0x10] sm:$0xf]
      %v636 = vld [vmem:[%s211 + $0x14] sm:$0xf]
      %v637 = vld [vmem:[%s211 + $0x18] sm:$0xf]
      %v638 = vld [vmem:[%s211 + $0x1c] sm:$0xf]
      %v639 = vld [vmem:[#allocation7] sm:$0xff]
      %v640 = vld [vmem:[#allocation7 + $0x8] sm:$0xf]
      %v641 = vld [vmem:[#allocation7 + $0xc] sm:$0xff]
      %v642 = vld [vmem:[#allocation7 + $0x14] sm:$0xf]
      %v643 = vld [vmem:[#allocation7 + $0x18] sm:$0xff]
      %v644 = vld [vmem:[#allocation7 + $0x20] sm:$0xf]
      %v645 = vld [vmem:[#allocation7 + $0x24] sm:$0xff]
      %v646 = vld [vmem:[#allocation7 + $0x2c] sm:$0xf]
      %v647 = vld [vmem:[#allocation7 + $0x30] sm:$0xff]
      %v648 = vld [vmem:[#allocation7 + $0x38] sm:$0xf]
      %v649 = vld [vmem:[#allocation7 + $0x3c] sm:$0xff]
      %v650 = vld [vmem:[#allocation7 + $0x44] sm:$0xf]
      %v651 = vld [vmem:[#allocation7 + $0x48] sm:$0xff]
      %v652 = vld [vmem:[#allocation7 + $0x50] sm:$0xf]
      %v653 = vld [vmem:[#allocation7 + $0x54] sm:$0xff]
      %v654 = vld [vmem:[#allocation7 + $0x5c] sm:$0xf]
      %s655 = scalar_lea.vmem %s211, 32
      %v656 = vld [vmem:[%s655] sm:$0xf]
      %v657 = vld [vmem:[%s655 + $0x4] sm:$0xf]
      %v658 = vld [vmem:[%s655 + $0x8] sm:$0xf]
      %v659 = vld [vmem:[%s655 + $0xc] sm:$0xf]
      %v660 = vld [vmem:[%s655 + $0x10] sm:$0xf]
      %v661 = vld [vmem:[%s655 + $0x14] sm:$0xf]
      %v662 = vld [vmem:[%s655 + $0x18] sm:$0xf]
      %v663 = vld [vmem:[%s655 + $0x1c] sm:$0xf]
      %v672 = vunpack.c.l.b16 %v656
      %v673 = vunpack.c.l.b16 %v657
      %v674 = vunpack.c.l.b16 %v658
      %v675 = vunpack.c.l.b16 %v659
      %v676 = vunpack.c.l.b16 %v660
      %v677 = vunpack.c.l.b16 %v661
      %v678 = vunpack.c.l.b16 %v662
      %v679 = vunpack.c.l.b16 %v663
      %v680 = vpack.c.b16 %v673, %v672
      %v681 = vpack.c.b16 %v675, %v674
      %v682 = vpack.c.b16 %v677, %v676
      %v683 = vpack.c.b16 %v679, %v678
      %v700 = vunpack.c.l.b16 %v639
      %v701 = vunpack.c.h.b16 %v639
      %v702 = vunpack.c.l.b16 %v640
      %v703 = vunpack.c.l.b16 %v641
      %v704 = vunpack.c.h.b16 %v641
      %v705 = vunpack.c.l.b16 %v642
      %v706 = vunpack.c.l.b16 %v643
      %v707 = vunpack.c.h.b16 %v643
      %v708 = vunpack.c.l.b16 %v644
      %v709 = vunpack.c.l.b16 %v645
      %v710 = vunpack.c.h.b16 %v645
      %v711 = vunpack.c.l.b16 %v646
      %v712 = vunpack.c.l.b16 %v647
      %v713 = vunpack.c.h.b16 %v647
      %v714 = vunpack.c.l.b16 %v648
      %v715 = vunpack.c.l.b16 %v649
      %v716 = vunpack.c.h.b16 %v649
      %v717 = vunpack.c.l.b16 %v650
      %v718 = vunpack.c.l.b16 %v651
      %v719 = vunpack.c.h.b16 %v651
      %v720 = vunpack.c.l.b16 %v652
      %v721 = vunpack.c.l.b16 %v653
      %v722 = vunpack.c.h.b16 %v653
      %v723 = vunpack.c.l.b16 %v654
      %v724 = vpack.c.b16 %v703, %v700
      %v725 = vpack.c.b16 %v704, %v701
      %v726 = vpack.c.b16 %v705, %v702
      %v727 = vpack.c.b16 %v709, %v706
      %v728 = vpack.c.b16 %v710, %v707
      %v729 = vpack.c.b16 %v711, %v708
      %v730 = vpack.c.b16 %v715, %v712
      %v731 = vpack.c.b16 %v716, %v713
      %v732 = vpack.c.b16 %v717, %v714
      %v733 = vpack.c.b16 %v721, %v718
      %v734 = vpack.c.b16 %v722, %v719
      %v735 = vpack.c.b16 %v723, %v720
      %vm748 = vcmask 523264
      %v750 = vsel %vm748, %v680, 0
      %v753 = vsel %vm748, %v681, 0
      %v756 = vsel %vm748, %v682, 0
      %v759 = vsel %vm748, %v683, 0
      %761 = vmatpush.bf16.msra.mxu0 0
      %762 = vmatpush.bf16.msra.mxu0 0
      %763 = vmatpush.bf16.msra.mxu0 0
      %764 = vmatpush.bf16.msra.mxu0 0
      %765 = vmatpush.bf16.msra.mxu0 %v733
      %766 = vmatpush.bf16.msra.mxu0 %v730
      %767 = vmatpush.bf16.msra.mxu0 %v727
      %768 = vmatpush.bf16.msra.mxu0 %v724
      %769 = vmatmul.bf16.gmra.mxu0 %v750
      %v770 = vpop.f32.mrf.mxu0
      %v771 = vadd.f32 0.0, %v770
      %v772 = vpop.f32.mrf.mxu0
      %v773 = vadd.f32 0.0, %v772
      %774 = vmatmul.bf16.gmra.mxu0 %v753
      %v775 = vpop.f32.mrf.mxu0
      %v776 = vadd.f32 0.0, %v775
      %v777 = vpop.f32.mrf.mxu0
      %v778 = vadd.f32 0.0, %v777
      %779 = vmatmul.bf16.gmra.mxu0 %v756
      %v780 = vpop.f32.mrf.mxu0
      %v781 = vadd.f32 0.0, %v780
      %v782 = vpop.f32.mrf.mxu0
      %v783 = vadd.f32 0.0, %v782
      %784 = vmatmul.bf16.gmra.mxu0 %v759
      %v785 = vpop.f32.mrf.mxu0
      %v786 = vadd.f32 0.0, %v785
      %v787 = vpop.f32.mrf.mxu0
      %v788 = vadd.f32 0.0, %v787
      %789 = vdwg.mxu0
      %790 = vmatpush.bf16.msra.mxu0 0
      %791 = vmatpush.bf16.msra.mxu0 0
      %792 = vmatpush.bf16.msra.mxu0 0
      %793 = vmatpush.bf16.msra.mxu0 0
      %794 = vmatpush.bf16.msra.mxu0 %v734
      %795 = vmatpush.bf16.msra.mxu0 %v731
      %796 = vmatpush.bf16.msra.mxu0 %v728
      %797 = vmatpush.bf16.msra.mxu0 %v725
      %798 = vmatmul.bf16.gmra.mxu0 %v750
      %v799 = vpop.f32.mrf.mxu0
      %v800 = vadd.f32 0.0, %v799
      %v801 = vpop.f32.mrf.mxu0
      %v802 = vadd.f32 0.0, %v801
      %803 = vmatmul.bf16.gmra.mxu0 %v753
      %v804 = vpop.f32.mrf.mxu0
      %v805 = vadd.f32 0.0, %v804
      %v806 = vpop.f32.mrf.mxu0
      %v807 = vadd.f32 0.0, %v806
      %808 = vmatmul.bf16.gmra.mxu0 %v756
      %v809 = vpop.f32.mrf.mxu0
      %v810 = vadd.f32 0.0, %v809
      %v811 = vpop.f32.mrf.mxu0
      %v812 = vadd.f32 0.0, %v811
      %813 = vmatmul.bf16.gmra.mxu0 %v759
      %v814 = vpop.f32.mrf.mxu0
      %v815 = vadd.f32 0.0, %v814
      %v816 = vpop.f32.mrf.mxu0
      %v817 = vadd.f32 0.0, %v816
      %818 = vdwg.mxu0
      %819 = vmatpush.bf16.msra.mxu0 0
      %820 = vmatpush.bf16.msra.mxu0 0
      %821 = vmatpush.bf16.msra.mxu0 0
      %822 = vmatpush.bf16.msra.mxu0 0
      %823 = vmatpush.bf16.msra.mxu0 %v735
      %824 = vmatpush.bf16.msra.mxu0 %v732
      %825 = vmatpush.bf16.msra.mxu0 %v729
      %826 = vmatpush.bf16.msra.mxu0 %v726
      %827 = vmatmul.bf16.gmra.mxu0 %v750
      %v828 = vpop.f32.mrf.mxu0
      %v829 = vadd.f32 0.0, %v828
      %v830 = vpop.f32.mrf.mxu0
      %v831 = vadd.f32 0.0, %v830
      %832 = vmatmul.bf16.gmra.mxu0 %v753
      %v833 = vpop.f32.mrf.mxu0
      %v834 = vadd.f32 0.0, %v833
      %v835 = vpop.f32.mrf.mxu0
      %v836 = vadd.f32 0.0, %v835
      %837 = vmatmul.bf16.gmra.mxu0 %v756
      %v838 = vpop.f32.mrf.mxu0
      %v839 = vadd.f32 0.0, %v838
      %v840 = vpop.f32.mrf.mxu0
      %v841 = vadd.f32 0.0, %v840
      %842 = vmatmul.bf16.gmra.mxu0 %v759
      %v843 = vpop.f32.mrf.mxu0
      %v844 = vadd.f32 0.0, %v843
      %v845 = vpop.f32.mrf.mxu0
      %v846 = vadd.f32 0.0, %v845
      %847 = vdwg.mxu0
      %848 = vrot.lane.b32.xlu0 %v771, 127
      %v849 = vpop.permute.xlu0 %848
      %850 = vrot.lane.b32.xlu0 %v773, 127
      %v851 = vpop.permute.xlu0 %850
      %852 = vrot.lane.b32.xlu0 %v776, 127
      %v853 = vpop.permute.xlu0 %852
      %854 = vrot.lane.b32.xlu0 %v778, 127
      %v855 = vpop.permute.xlu0 %854
      %856 = vrot.lane.b32.xlu0 %v781, 127
      %v857 = vpop.permute.xlu0 %856
      %858 = vrot.lane.b32.xlu0 %v783, 127
      %v859 = vpop.permute.xlu0 %858
      %860 = vrot.lane.b32.xlu0 %v786, 127
      %v861 = vpop.permute.xlu0 %860
      %862 = vrot.lane.b32.xlu0 %v788, 127
      %v863 = vpop.permute.xlu0 %862
      %864 = vrot.lane.b32.xlu0 %v800, 127
      %v865 = vpop.permute.xlu0 %864
      %866 = vrot.lane.b32.xlu0 %v802, 127
      %v867 = vpop.permute.xlu0 %866
      %868 = vrot.lane.b32.xlu0 %v805, 127
      %v869 = vpop.permute.xlu0 %868
      %870 = vrot.lane.b32.xlu0 %v807, 127
      %v871 = vpop.permute.xlu0 %870
      %872 = vrot.lane.b32.xlu0 %v810, 127
      %v873 = vpop.permute.xlu0 %872
      %874 = vrot.lane.b32.xlu0 %v812, 127
      %v875 = vpop.permute.xlu0 %874
      %876 = vrot.lane.b32.xlu0 %v815, 127
      %v877 = vpop.permute.xlu0 %876
      %878 = vrot.lane.b32.xlu0 %v817, 127
      %v879 = vpop.permute.xlu0 %878
      %880 = vrot.lane.b32.xlu0 %v829, 127
      %v881 = vpop.permute.xlu0 %880
      %882 = vrot.lane.b32.xlu0 %v831, 127
      %v883 = vpop.permute.xlu0 %882
      %884 = vrot.lane.b32.xlu0 %v834, 127
      %v885 = vpop.permute.xlu0 %884
      %886 = vrot.lane.b32.xlu0 %v836, 127
      %v887 = vpop.permute.xlu0 %886
      %888 = vrot.lane.b32.xlu0 %v839, 127
      %v889 = vpop.permute.xlu0 %888
      %890 = vrot.lane.b32.xlu0 %v841, 127
      %v891 = vpop.permute.xlu0 %890
      %892 = vrot.lane.b32.xlu0 %v844, 127
      %v893 = vpop.permute.xlu0 %892
      %894 = vrot.lane.b32.xlu0 %v846, 127
      %v895 = vpop.permute.xlu0 %894
      %v896 = vlaneseq
      %v897 = vand.u32 %v896, 127
      %vm898 = vcmp.lt.s32.totalorder %v897, 127
      %v899 = vsel %vm898, %v865, %v881
      %v900 = vsel %vm898, %v867, %v883
      %v901 = vsel %vm898, %v869, %v885
      %v902 = vsel %vm898, %v871, %v887
      %v903 = vsel %vm898, %v873, %v889
      %v904 = vsel %vm898, %v875, %v891
      %v905 = vsel %vm898, %v877, %v893
      %v906 = vsel %vm898, %v879, %v895
      %v907 = vsel %vm898, %v849, %v865
      %v908 = vsel %vm898, %v851, %v867
      %v909 = vsel %vm898, %v853, %v869
      %v910 = vsel %vm898, %v855, %v871
      %v911 = vsel %vm898, %v857, %v873
      %v912 = vsel %vm898, %v859, %v875
      %v913 = vsel %vm898, %v861, %v877
      %v914 = vsel %vm898, %v863, %v879
      %v915 = vsel %vm898, %v881, %v849
      %v916 = vsel %vm898, %v883, %v851
      %v917 = vsel %vm898, %v885, %v853
      %v918 = vsel %vm898, %v887, %v855
      %v919 = vsel %vm898, %v889, %v857
      %v920 = vsel %vm898, %v891, %v859
      %v921 = vsel %vm898, %v893, %v861
      %v922 = vsel %vm898, %v895, %v863
      %v931 = vunpack.c.l.b16 %v631
      %v932 = vunpack.c.l.b16 %v632
      %v933 = vunpack.c.l.b16 %v633
      %v934 = vunpack.c.l.b16 %v634
      %v935 = vunpack.c.l.b16 %v635
      %v936 = vunpack.c.l.b16 %v636
      %v937 = vunpack.c.l.b16 %v637
      %v938 = vunpack.c.l.b16 %v638
      %v939 = vpack.c.b16 %v932, %v931
      %v940 = vpack.c.b16 %v934, %v933
      %v941 = vpack.c.b16 %v936, %v935
      %v942 = vpack.c.b16 %v938, %v937
      %v944 = vsel %vm748, %v939, 0
      %v947 = vsel %vm748, %v940, 0
      %v950 = vsel %vm748, %v941, 0
      %v953 = vsel %vm748, %v942, 0
      %955 = vmatpush.bf16.msra.mxu0 0
      %956 = vmatpush.bf16.msra.mxu0 0
      %957 = vmatpush.bf16.msra.mxu0 0
      %958 = vmatpush.bf16.msra.mxu0 0
      %959 = vmatpush.bf16.msra.mxu0 %v733
      %960 = vmatpush.bf16.msra.mxu0 %v730
      %961 = vmatpush.bf16.msra.mxu0 %v727
      %962 = vmatpush.bf16.msra.mxu0 %v724
      %963 = vmatmul.bf16.gmra.mxu0 %v944
      %v964 = vpop.f32.mrf.mxu0
      %v965 = vadd.f32 %v907, %v964
      %v966 = vpop.f32.mrf.mxu0
      %v967 = vadd.f32 %v908, %v966
      %968 = vmatmul.bf16.gmra.mxu0 %v947
      %v969 = vpop.f32.mrf.mxu0
      %v970 = vadd.f32 %v909, %v969
      %v971 = vpop.f32.mrf.mxu0
      %v972 = vadd.f32 %v910, %v971
      %973 = vmatmul.bf16.gmra.mxu0 %v950
      %v974 = vpop.f32.mrf.mxu0
      %v975 = vadd.f32 %v911, %v974
      %v976 = vpop.f32.mrf.mxu0
      %v977 = vadd.f32 %v912, %v976
      %978 = vmatmul.bf16.gmra.mxu0 %v953
      %v979 = vpop.f32.mrf.mxu0
      %v980 = vadd.f32 %v913, %v979
      %v981 = vpop.f32.mrf.mxu0
      %v982 = vadd.f32 %v914, %v981
      %983 = vdwg.mxu0
      %984 = vmatpush.bf16.msra.mxu0 0
      %985 = vmatpush.bf16.msra.mxu0 0
      %986 = vmatpush.bf16.msra.mxu0 0
      %987 = vmatpush.bf16.msra.mxu0 0
      %988 = vmatpush.bf16.msra.mxu0 %v734
      %989 = vmatpush.bf16.msra.mxu0 %v731
      %990 = vmatpush.bf16.msra.mxu0 %v728
      %991 = vmatpush.bf16.msra.mxu0 %v725
      %992 = vmatmul.bf16.gmra.mxu0 %v944
      %v993 = vpop.f32.mrf.mxu0
      %v994 = vadd.f32 %v899, %v993
      %v995 = vpop.f32.mrf.mxu0
      %v996 = vadd.f32 %v900, %v995
      %997 = vmatmul.bf16.gmra.mxu0 %v947
      %v998 = vpop.f32.mrf.mxu0
      %v999 = vadd.f32 %v901, %v998
      %v1000 = vpop.f32.mrf.mxu0
      %v1001 = vadd.f32 %v902, %v1000
      %1002 = vmatmul.bf16.gmra.mxu0 %v950
      %v1003 = vpop.f32.mrf.mxu0
      %v1004 = vadd.f32 %v903, %v1003
      %v1005 = vpop.f32.mrf.mxu0
      %v1006 = vadd.f32 %v904, %v1005
      %1007 = vmatmul.bf16.gmra.mxu0 %v953
      %v1008 = vpop.f32.mrf.mxu0
      %v1009 = vadd.f32 %v905, %v1008
      %v1010 = vpop.f32.mrf.mxu0
      %v1011 = vadd.f32 %v906, %v1010
      %1012 = vdwg.mxu0
      %1013 = vmatpush.bf16.msra.mxu0 0
      %1014 = vmatpush.bf16.msra.mxu0 0
      %1015 = vmatpush.bf16.msra.mxu0 0
      %1016 = vmatpush.bf16.msra.mxu0 0
      %1017 = vmatpush.bf16.msra.mxu0 %v735
      %1018 = vmatpush.bf16.msra.mxu0 %v732
      %1019 = vmatpush.bf16.msra.mxu0 %v729
      %1020 = vmatpush.bf16.msra.mxu0 %v726
      %1021 = vmatmul.bf16.gmra.mxu0 %v944
      %v1022 = vpop.f32.mrf.mxu0
      %v1023 = vadd.f32 %v915, %v1022
      %v1024 = vpop.f32.mrf.mxu0
      %v1025 = vadd.f32 %v916, %v1024
      %1026 = vmatmul.bf16.gmra.mxu0 %v947
      %v1027 = vpop.f32.mrf.mxu0
      %v1028 = vadd.f32 %v917, %v1027
      %v1029 = vpop.f32.mrf.mxu0
      %v1030 = vadd.f32 %v918, %v1029
      %1031 = vmatmul.bf16.gmra.mxu0 %v950
      %v1032 = vpop.f32.mrf.mxu0
      %v1033 = vadd.f32 %v919, %v1032
      %v1034 = vpop.f32.mrf.mxu0
      %v1035 = vadd.f32 %v920, %v1034
      %1036 = vmatmul.bf16.gmra.mxu0 %v953
      %v1037 = vpop.f32.mrf.mxu0
      %v1038 = vadd.f32 %v921, %v1037
      %v1039 = vpop.f32.mrf.mxu0
      %v1040 = vadd.f32 %v922, %v1039
      %1041 = vdwg.mxu0
      %s1042 = scalar_lea.vmem %s211, 64
      %v1043 = vld [vmem:[%s1042] sm:$0xf]
      %v1044 = vld [vmem:[%s1042 + $0x4] sm:$0xf]
      %v1045 = vld [vmem:[%s1042 + $0x8] sm:$0xf]
      %v1046 = vld [vmem:[%s1042 + $0xc] sm:$0xf]
      %v1047 = vld [vmem:[%s1042 + $0x10] sm:$0xf]
      %v1048 = vld [vmem:[%s1042 + $0x14] sm:$0xf]
      %v1049 = vld [vmem:[%s1042 + $0x18] sm:$0xf]
      %v1050 = vld [vmem:[%s1042 + $0x1c] sm:$0xf]
      %v1059 = vunpack.c.l.b16 %v1043
      %v1060 = vunpack.c.l.b16 %v1044
      %v1061 = vunpack.c.l.b16 %v1045
      %v1062 = vunpack.c.l.b16 %v1046
      %v1063 = vunpack.c.l.b16 %v1047
      %v1064 = vunpack.c.l.b16 %v1048
      %v1065 = vunpack.c.l.b16 %v1049
      %v1066 = vunpack.c.l.b16 %v1050
      %v1067 = vpack.c.b16 %v1060, %v1059
      %v1068 = vpack.c.b16 %v1062, %v1061
      %v1069 = vpack.c.b16 %v1064, %v1063
      %v1070 = vpack.c.b16 %v1066, %v1065
      %v1072 = vsel %vm748, %v1067, 0
      %v1075 = vsel %vm748, %v1068, 0
      %v1078 = vsel %vm748, %v1069, 0
      %v1081 = vsel %vm748, %v1070, 0
      %1083 = vmatpush.bf16.msra.mxu0 0
      %1084 = vmatpush.bf16.msra.mxu0 0
      %1085 = vmatpush.bf16.msra.mxu0 0
      %1086 = vmatpush.bf16.msra.mxu0 0
      %1087 = vmatpush.bf16.msra.mxu0 %v733
      %1088 = vmatpush.bf16.msra.mxu0 %v730
      %1089 = vmatpush.bf16.msra.mxu0 %v727
      %1090 = vmatpush.bf16.msra.mxu0 %v724
      %1091 = vmatmul.bf16.gmra.mxu0 %v1072
      %v1092 = vpop.f32.mrf.mxu0
      %v1093 = vadd.f32 0.0, %v1092
      %v1094 = vpop.f32.mrf.mxu0
      %v1095 = vadd.f32 0.0, %v1094
      %1096 = vmatmul.bf16.gmra.mxu0 %v1075
      %v1097 = vpop.f32.mrf.mxu0
      %v1098 = vadd.f32 0.0, %v1097
      %v1099 = vpop.f32.mrf.mxu0
      %v1100 = vadd.f32 0.0, %v1099
      %1101 = vmatmul.bf16.gmra.mxu0 %v1078
      %v1102 = vpop.f32.mrf.mxu0
      %v1103 = vadd.f32 0.0, %v1102
      %v1104 = vpop.f32.mrf.mxu0
      %v1105 = vadd.f32 0.0, %v1104
      %1106 = vmatmul.bf16.gmra.mxu0 %v1081
      %v1107 = vpop.f32.mrf.mxu0
      %v1108 = vadd.f32 0.0, %v1107
      %v1109 = vpop.f32.mrf.mxu0
      %v1110 = vadd.f32 0.0, %v1109
      %1111 = vdwg.mxu0
      %1112 = vmatpush.bf16.msra.mxu0 0
      %1113 = vmatpush.bf16.msra.mxu0 0
      %1114 = vmatpush.bf16.msra.mxu0 0
      %1115 = vmatpush.bf16.msra.mxu0 0
      %1116 = vmatpush.bf16.msra.mxu0 %v734
      %1117 = vmatpush.bf16.msra.mxu0 %v731
      %1118 = vmatpush.bf16.msra.mxu0 %v728
      %1119 = vmatpush.bf16.msra.mxu0 %v725
      %1120 = vmatmul.bf16.gmra.mxu0 %v1072
      %v1121 = vpop.f32.mrf.mxu0
      %v1122 = vadd.f32 0.0, %v1121
      %v1123 = vpop.f32.mrf.mxu0
      %v1124 = vadd.f32 0.0, %v1123
      %1125 = vmatmul.bf16.gmra.mxu0 %v1075
      %v1126 = vpop.f32.mrf.mxu0
      %v1127 = vadd.f32 0.0, %v1126
      %v1128 = vpop.f32.mrf.mxu0
      %v1129 = vadd.f32 0.0, %v1128
      %1130 = vmatmul.bf16.gmra.mxu0 %v1078
      %v1131 = vpop.f32.mrf.mxu0
      %v1132 = vadd.f32 0.0, %v1131
      %v1133 = vpop.f32.mrf.mxu0
      %v1134 = vadd.f32 0.0, %v1133
      %1135 = vmatmul.bf16.gmra.mxu0 %v1081
      %v1136 = vpop.f32.mrf.mxu0
      %v1137 = vadd.f32 0.0, %v1136
      %v1138 = vpop.f32.mrf.mxu0
      %v1139 = vadd.f32 0.0, %v1138
      %1140 = vdwg.mxu0
      %1141 = vmatpush.bf16.msra.mxu0 0
      %1142 = vmatpush.bf16.msra.mxu0 0
      %1143 = vmatpush.bf16.msra.mxu0 0
      %1144 = vmatpush.bf16.msra.mxu0 0
      %1145 = vmatpush.bf16.msra.mxu0 %v735
      %1146 = vmatpush.bf16.msra.mxu0 %v732
      %1147 = vmatpush.bf16.msra.mxu0 %v729
      %1148 = vmatpush.bf16.msra.mxu0 %v726
      %1149 = vmatmul.bf16.gmra.mxu0 %v1072
      %v1150 = vpop.f32.mrf.mxu0
      %v1151 = vadd.f32 0.0, %v1150
      %v1152 = vpop.f32.mrf.mxu0
      %v1153 = vadd.f32 0.0, %v1152
      %1154 = vmatmul.bf16.gmra.mxu0 %v1075
      %v1155 = vpop.f32.mrf.mxu0
      %v1156 = vadd.f32 0.0, %v1155
      %v1157 = vpop.f32.mrf.mxu0
      %v1158 = vadd.f32 0.0, %v1157
      %1159 = vmatmul.bf16.gmra.mxu0 %v1078
      %v1160 = vpop.f32.mrf.mxu0
      %v1161 = vadd.f32 0.0, %v1160
      %v1162 = vpop.f32.mrf.mxu0
      %v1163 = vadd.f32 0.0, %v1162
      %1164 = vmatmul.bf16.gmra.mxu0 %v1081
      %v1165 = vpop.f32.mrf.mxu0
      %v1166 = vadd.f32 0.0, %v1165
      %v1167 = vpop.f32.mrf.mxu0
      %v1168 = vadd.f32 0.0, %v1167
      %1169 = vdwg.mxu0
      %1170 = vrot.lane.b32.xlu0 %v1093, 111
      %v1171 = vpop.permute.xlu0 %1170
      %1172 = vrot.lane.b32.xlu0 %v1095, 111
      %v1173 = vpop.permute.xlu0 %1172
      %1174 = vrot.lane.b32.xlu0 %v1098, 111
      %v1175 = vpop.permute.xlu0 %1174
      %1176 = vrot.lane.b32.xlu0 %v1100, 111
      %v1177 = vpop.permute.xlu0 %1176
      %1178 = vrot.lane.b32.xlu0 %v1103, 111
      %v1179 = vpop.permute.xlu0 %1178
      %1180 = vrot.lane.b32.xlu0 %v1105, 111
      %v1181 = vpop.permute.xlu0 %1180
      %1182 = vrot.lane.b32.xlu0 %v1108, 111
      %v1183 = vpop.permute.xlu0 %1182
      %1184 = vrot.lane.b32.xlu0 %v1110, 111
      %v1185 = vpop.permute.xlu0 %1184
      %1186 = vrot.lane.b32.xlu0 %v1122, 111
      %v1187 = vpop.permute.xlu0 %1186
      %1188 = vrot.lane.b32.xlu0 %v1124, 111
      %v1189 = vpop.permute.xlu0 %1188
      %1190 = vrot.lane.b32.xlu0 %v1127, 111
      %v1191 = vpop.permute.xlu0 %1190
      %1192 = vrot.lane.b32.xlu0 %v1129, 111
      %v1193 = vpop.permute.xlu0 %1192
      %1194 = vrot.lane.b32.xlu0 %v1132, 111
      %v1195 = vpop.permute.xlu0 %1194
      %1196 = vrot.lane.b32.xlu0 %v1134, 111
      %v1197 = vpop.permute.xlu0 %1196
      %1198 = vrot.lane.b32.xlu0 %v1137, 111
      %v1199 = vpop.permute.xlu0 %1198
      %1200 = vrot.lane.b32.xlu0 %v1139, 111
      %v1201 = vpop.permute.xlu0 %1200
      %1202 = vrot.lane.b32.xlu0 %v1151, 111
      %v1203 = vpop.permute.xlu0 %1202
      %1204 = vrot.lane.b32.xlu0 %v1153, 111
      %v1205 = vpop.permute.xlu0 %1204
      %1206 = vrot.lane.b32.xlu0 %v1156, 111
      %v1207 = vpop.permute.xlu0 %1206
      %1208 = vrot.lane.b32.xlu0 %v1158, 111
      %v1209 = vpop.permute.xlu0 %1208
      %1210 = vrot.lane.b32.xlu0 %v1161, 111
      %v1211 = vpop.permute.xlu0 %1210
      %1212 = vrot.lane.b32.xlu0 %v1163, 111
      %v1213 = vpop.permute.xlu0 %1212
      %1214 = vrot.lane.b32.xlu0 %v1166, 111
      %v1215 = vpop.permute.xlu0 %1214
      %1216 = vrot.lane.b32.xlu0 %v1168, 111
      %v1217 = vpop.permute.xlu0 %1216
      %vm1218 = vcmp.lt.s32.totalorder %v897, 111
      %v1219 = vsel %vm1218, %v1187, %v1203
      %v1220 = vsel %vm1218, %v1189, %v1205
      %v1221 = vsel %vm1218, %v1191, %v1207
      %v1222 = vsel %vm1218, %v1193, %v1209
      %v1223 = vsel %vm1218, %v1195, %v1211
      %v1224 = vsel %vm1218, %v1197, %v1213
      %v1225 = vsel %vm1218, %v1199, %v1215
      %v1226 = vsel %vm1218, %v1201, %v1217
      %v1227 = vsel %vm1218, %v1171, %v1187
      %v1228 = vsel %vm1218, %v1173, %v1189
      %v1229 = vsel %vm1218, %v1175, %v1191
      %v1230 = vsel %vm1218, %v1177, %v1193
      %v1231 = vsel %vm1218, %v1179, %v1195
      %v1232 = vsel %vm1218, %v1181, %v1197
      %v1233 = vsel %vm1218, %v1183, %v1199
      %v1234 = vsel %vm1218, %v1185, %v1201
      %v1235 = vsel %vm1218, %v1203, %v1171
      %v1236 = vsel %vm1218, %v1205, %v1173
      %v1237 = vsel %vm1218, %v1207, %v1175
      %v1238 = vsel %vm1218, %v1209, %v1177
      %v1239 = vsel %vm1218, %v1211, %v1179
      %v1240 = vsel %vm1218, %v1213, %v1181
      %v1241 = vsel %vm1218, %v1215, %v1183
      %v1242 = vsel %vm1218, %v1217, %v1185
      %v1243 = vadd.f32 %v965, %v1227
      %v1244 = vadd.f32 %v994, %v1219
      %v1245 = vadd.f32 %v1023, %v1235
      %v1246 = vadd.f32 %v967, %v1228
      %v1247 = vadd.f32 %v996, %v1220
      %v1248 = vadd.f32 %v1025, %v1236
      %v1249 = vadd.f32 %v970, %v1229
      %v1250 = vadd.f32 %v999, %v1221
      %v1251 = vadd.f32 %v1028, %v1237
      %v1252 = vadd.f32 %v972, %v1230
      %v1253 = vadd.f32 %v1001, %v1222
      %v1254 = vadd.f32 %v1030, %v1238
      %v1255 = vadd.f32 %v975, %v1231
      %v1256 = vadd.f32 %v1004, %v1223
      %v1257 = vadd.f32 %v1033, %v1239
      %v1258 = vadd.f32 %v977, %v1232
      %v1259 = vadd.f32 %v1006, %v1224
      %v1260 = vadd.f32 %v1035, %v1240
      %v1261 = vadd.f32 %v980, %v1233
      %v1262 = vadd.f32 %v1009, %v1225
      %v1263 = vadd.f32 %v1038, %v1241
      %v1264 = vadd.f32 %v982, %v1234
      %v1265 = vadd.f32 %v1011, %v1226
      %v1266 = vadd.f32 %v1040, %v1242
      %s1267 = scalar_lea.vmem %s211, 96
      %v1268 = vld [vmem:[%s1267] sm:$0xf]
      %v1269 = vld [vmem:[%s1267 + $0x4] sm:$0xf]
      %v1270 = vld [vmem:[%s1267 + $0x8] sm:$0xf]
      %v1271 = vld [vmem:[%s1267 + $0xc] sm:$0xf]
      %v1272 = vld [vmem:[%s1267 + $0x10] sm:$0xf]
      %v1273 = vld [vmem:[%s1267 + $0x14] sm:$0xf]
      %v1274 = vld [vmem:[%s1267 + $0x18] sm:$0xf]
      %v1275 = vld [vmem:[%s1267 + $0x1c] sm:$0xf]
      %v1284 = vunpack.c.l.b16 %v1268
      %v1285 = vunpack.c.l.b16 %v1269
      %v1286 = vunpack.c.l.b16 %v1270
      %v1287 = vunpack.c.l.b16 %v1271
      %v1288 = vunpack.c.l.b16 %v1272
      %v1289 = vunpack.c.l.b16 %v1273
      %v1290 = vunpack.c.l.b16 %v1274
      %v1291 = vunpack.c.l.b16 %v1275
      %v1292 = vpack.c.b16 %v1285, %v1284
      %v1293 = vpack.c.b16 %v1287, %v1286
      %v1294 = vpack.c.b16 %v1289, %v1288
      %v1295 = vpack.c.b16 %v1291, %v1290
      %v1297 = vsel %vm748, %v1292, 0
      %v1300 = vsel %vm748, %v1293, 0
      %v1303 = vsel %vm748, %v1294, 0
      %v1306 = vsel %vm748, %v1295, 0
      %1308 = vmatpush.bf16.msra.mxu0 0
      %1309 = vmatpush.bf16.msra.mxu0 0
      %1310 = vmatpush.bf16.msra.mxu0 0
      %1311 = vmatpush.bf16.msra.mxu0 0
      %1312 = vmatpush.bf16.msra.mxu0 %v733
      %1313 = vmatpush.bf16.msra.mxu0 %v730
      %1314 = vmatpush.bf16.msra.mxu0 %v727
      %1315 = vmatpush.bf16.msra.mxu0 %v724
      %1316 = vmatmul.bf16.gmra.mxu0 %v1297
      %v1317 = vpop.f32.mrf.mxu0
      %v1318 = vadd.f32 0.0, %v1317
      %v1319 = vpop.f32.mrf.mxu0
      %v1320 = vadd.f32 0.0, %v1319
      %1321 = vmatmul.bf16.gmra.mxu0 %v1300
      %v1322 = vpop.f32.mrf.mxu0
      %v1323 = vadd.f32 0.0, %v1322
      %v1324 = vpop.f32.mrf.mxu0
      %v1325 = vadd.f32 0.0, %v1324
      %1326 = vmatmul.bf16.gmra.mxu0 %v1303
      %v1327 = vpop.f32.mrf.mxu0
      %v1328 = vadd.f32 0.0, %v1327
      %v1329 = vpop.f32.mrf.mxu0
      %v1330 = vadd.f32 0.0, %v1329
      %1331 = vmatmul.bf16.gmra.mxu0 %v1306
      %v1332 = vpop.f32.mrf.mxu0
      %v1333 = vadd.f32 0.0, %v1332
      %v1334 = vpop.f32.mrf.mxu0
      %v1335 = vadd.f32 0.0, %v1334
      %1336 = vdwg.mxu0
      %1337 = vmatpush.bf16.msra.mxu0 0
      %1338 = vmatpush.bf16.msra.mxu0 0
      %1339 = vmatpush.bf16.msra.mxu0 0
      %1340 = vmatpush.bf16.msra.mxu0 0
      %1341 = vmatpush.bf16.msra.mxu0 %v734
      %1342 = vmatpush.bf16.msra.mxu0 %v731
      %1343 = vmatpush.bf16.msra.mxu0 %v728
      %1344 = vmatpush.bf16.msra.mxu0 %v725
      %1345 = vmatmul.bf16.gmra.mxu0 %v1297
      %v1346 = vpop.f32.mrf.mxu0
      %v1347 = vadd.f32 0.0, %v1346
      %v1348 = vpop.f32.mrf.mxu0
      %v1349 = vadd.f32 0.0, %v1348
      %1350 = vmatmul.bf16.gmra.mxu0 %v1300
      %v1351 = vpop.f32.mrf.mxu0
      %v1352 = vadd.f32 0.0, %v1351
      %v1353 = vpop.f32.mrf.mxu0
      %v1354 = vadd.f32 0.0, %v1353
      %1355 = vmatmul.bf16.gmra.mxu0 %v1303
      %v1356 = vpop.f32.mrf.mxu0
      %v1357 = vadd.f32 0.0, %v1356
      %v1358 = vpop.f32.mrf.mxu0
      %v1359 = vadd.f32 0.0, %v1358
      %1360 = vmatmul.bf16.gmra.mxu0 %v1306
      %v1361 = vpop.f32.mrf.mxu0
      %v1362 = vadd.f32 0.0, %v1361
      %v1363 = vpop.f32.mrf.mxu0
      %v1364 = vadd.f32 0.0, %v1363
      %1365 = vdwg.mxu0
      %1366 = vmatpush.bf16.msra.mxu0 0
      %1367 = vmatpush.bf16.msra.mxu0 0
      %1368 = vmatpush.bf16.msra.mxu0 0
      %1369 = vmatpush.bf16.msra.mxu0 0
      %1370 = vmatpush.bf16.msra.mxu0 %v735
      %1371 = vmatpush.bf16.msra.mxu0 %v732
      %1372 = vmatpush.bf16.msra.mxu0 %v729
      %1373 = vmatpush.bf16.msra.mxu0 %v726
      %1374 = vmatmul.bf16.gmra.mxu0 %v1297
      %v1375 = vpop.f32.mrf.mxu0
      %v1376 = vadd.f32 0.0, %v1375
      %v1377 = vpop.f32.mrf.mxu0
      %v1378 = vadd.f32 0.0, %v1377
      %1379 = vmatmul.bf16.gmra.mxu0 %v1300
      %v1380 = vpop.f32.mrf.mxu0
      %v1381 = vadd.f32 0.0, %v1380
      %v1382 = vpop.f32.mrf.mxu0
      %v1383 = vadd.f32 0.0, %v1382
      %1384 = vmatmul.bf16.gmra.mxu0 %v1303
      %v1385 = vpop.f32.mrf.mxu0
      %v1386 = vadd.f32 0.0, %v1385
      %v1387 = vpop.f32.mrf.mxu0
      %v1388 = vadd.f32 0.0, %v1387
      %1389 = vmatmul.bf16.gmra.mxu0 %v1306
      %v1390 = vpop.f32.mrf.mxu0
      %v1391 = vadd.f32 0.0, %v1390
      %v1392 = vpop.f32.mrf.mxu0
      %v1393 = vadd.f32 0.0, %v1392
      %1394 = vdwg.mxu0
      %1395 = vrot.lane.b32.xlu0 %v1318, 110
      %v1396 = vpop.permute.xlu0 %1395
      %1397 = vrot.lane.b32.xlu0 %v1320, 110
      %v1398 = vpop.permute.xlu0 %1397
      %1399 = vrot.lane.b32.xlu0 %v1323, 110
      %v1400 = vpop.permute.xlu0 %1399
      %1401 = vrot.lane.b32.xlu0 %v1325, 110
      %v1402 = vpop.permute.xlu0 %1401
      %1403 = vrot.lane.b32.xlu0 %v1328, 110
      %v1404 = vpop.permute.xlu0 %1403
      %1405 = vrot.lane.b32.xlu0 %v1330, 110
      %v1406 = vpop.permute.xlu0 %1405
      %1407 = vrot.lane.b32.xlu0 %v1333, 110
      %v1408 = vpop.permute.xlu0 %1407
      %1409 = vrot.lane.b32.xlu0 %v1335, 110
      %v1410 = vpop.permute.xlu0 %1409
      %1411 = vrot.lane.b32.xlu0 %v1347, 110
      %v1412 = vpop.permute.xlu0 %1411
      %1413 = vrot.lane.b32.xlu0 %v1349, 110
      %v1414 = vpop.permute.xlu0 %1413
      %1415 = vrot.lane.b32.xlu0 %v1352, 110
      %v1416 = vpop.permute.xlu0 %1415
      %1417 = vrot.lane.b32.xlu0 %v1354, 110
      %v1418 = vpop.permute.xlu0 %1417
      %1419 = vrot.lane.b32.xlu0 %v1357, 110
      %v1420 = vpop.permute.xlu0 %1419
      %1421 = vrot.lane.b32.xlu0 %v1359, 110
      %v1422 = vpop.permute.xlu0 %1421
      %1423 = vrot.lane.b32.xlu0 %v1362, 110
      %v1424 = vpop.permute.xlu0 %1423
      %1425 = vrot.lane.b32.xlu0 %v1364, 110
      %v1426 = vpop.permute.xlu0 %1425
      %1427 = vrot.lane.b32.xlu0 %v1376, 110
      %v1428 = vpop.permute.xlu0 %1427
      %1429 = vrot.lane.b32.xlu0 %v1378, 110
      %v1430 = vpop.permute.xlu0 %1429
      %1431 = vrot.lane.b32.xlu0 %v1381, 110
      %v1432 = vpop.permute.xlu0 %1431
      %1433 = vrot.lane.b32.xlu0 %v1383, 110
      %v1434 = vpop.permute.xlu0 %1433
      %1435 = vrot.lane.b32.xlu0 %v1386, 110
      %v1436 = vpop.permute.xlu0 %1435
      %1437 = vrot.lane.b32.xlu0 %v1388, 110
      %v1438 = vpop.permute.xlu0 %1437
      %1439 = vrot.lane.b32.xlu0 %v1391, 110
      %v1440 = vpop.permute.xlu0 %1439
      %1441 = vrot.lane.b32.xlu0 %v1393, 110
      %v1442 = vpop.permute.xlu0 %1441
      %vm1443 = vcmp.lt.s32.totalorder %v897, 110
      %v1444 = vsel %vm1443, %v1412, %v1428
      %v1445 = vsel %vm1443, %v1414, %v1430
      %v1446 = vsel %vm1443, %v1416, %v1432
      %v1447 = vsel %vm1443, %v1418, %v1434
      %v1448 = vsel %vm1443, %v1420, %v1436
      %v1449 = vsel %vm1443, %v1422, %v1438
      %v1450 = vsel %vm1443, %v1424, %v1440
      %v1451 = vsel %vm1443, %v1426, %v1442
      %v1452 = vsel %vm1443, %v1396, %v1412
      %v1453 = vsel %vm1443, %v1398, %v1414
      %v1454 = vsel %vm1443, %v1400, %v1416
      %v1455 = vsel %vm1443, %v1402, %v1418
      %v1456 = vsel %vm1443, %v1404, %v1420
      %v1457 = vsel %vm1443, %v1406, %v1422
      %v1458 = vsel %vm1443, %v1408, %v1424
      %v1459 = vsel %vm1443, %v1410, %v1426
      %v1460 = vsel %vm1443, %v1428, %v1396
      %v1461 = vsel %vm1443, %v1430, %v1398
      %v1462 = vsel %vm1443, %v1432, %v1400
      %v1463 = vsel %vm1443, %v1434, %v1402
      %v1464 = vsel %vm1443, %v1436, %v1404
      %v1465 = vsel %vm1443, %v1438, %v1406
      %v1466 = vsel %vm1443, %v1440, %v1408
      %v1467 = vsel %vm1443, %v1442, %v1410
      %v1468 = vadd.f32 %v1243, %v1452
      %v1469 = vadd.f32 %v1244, %v1444
      %v1470 = vadd.f32 %v1245, %v1460
      %v1471 = vadd.f32 %v1246, %v1453
      %v1472 = vadd.f32 %v1247, %v1445
      %v1473 = vadd.f32 %v1248, %v1461
      %v1474 = vadd.f32 %v1249, %v1454
      %v1475 = vadd.f32 %v1250, %v1446
      %v1476 = vadd.f32 %v1251, %v1462
      %v1477 = vadd.f32 %v1252, %v1455
      %v1478 = vadd.f32 %v1253, %v1447
      %v1479 = vadd.f32 %v1254, %v1463
      %v1480 = vadd.f32 %v1255, %v1456
      %v1481 = vadd.f32 %v1256, %v1448
      %v1482 = vadd.f32 %v1257, %v1464
      %v1483 = vadd.f32 %v1258, %v1457
      %v1484 = vadd.f32 %v1259, %v1449
      %v1485 = vadd.f32 %v1260, %v1465
      %v1486 = vadd.f32 %v1261, %v1458
      %v1487 = vadd.f32 %v1262, %v1450
      %v1488 = vadd.f32 %v1263, %v1466
      %v1489 = vadd.f32 %v1264, %v1459
      %v1490 = vadd.f32 %v1265, %v1451
      %v1491 = vadd.f32 %v1266, %v1467
      %vm1492 = vcmp.gt.f32.partialorder %v1468, 0.0
      %vm1493 = vcmp.gt.f32.partialorder %v1469, 0.0
      %vm1494 = vcmp.gt.f32.partialorder %v1470, 0.0
      %vm1495 = vcmp.gt.f32.partialorder %v1471, 0.0
      %vm1496 = vcmp.gt.f32.partialorder %v1472, 0.0
      %vm1497 = vcmp.gt.f32.partialorder %v1473, 0.0
      %vm1498 = vcmp.gt.f32.partialorder %v1474, 0.0
      %vm1499 = vcmp.gt.f32.partialorder %v1475, 0.0
      %vm1500 = vcmp.gt.f32.partialorder %v1476, 0.0
      %vm1501 = vcmp.gt.f32.partialorder %v1477, 0.0
      %vm1502 = vcmp.gt.f32.partialorder %v1478, 0.0
      %vm1503 = vcmp.gt.f32.partialorder %v1479, 0.0
      %vm1504 = vcmp.gt.f32.partialorder %v1480, 0.0
      %vm1505 = vcmp.gt.f32.partialorder %v1481, 0.0
      %vm1506 = vcmp.gt.f32.partialorder %v1482, 0.0
      %vm1507 = vcmp.gt.f32.partialorder %v1483, 0.0
      %vm1508 = vcmp.gt.f32.partialorder %v1484, 0.0
      %vm1509 = vcmp.gt.f32.partialorder %v1485, 0.0
      %vm1510 = vcmp.gt.f32.partialorder %v1486, 0.0
      %vm1511 = vcmp.gt.f32.partialorder %v1487, 0.0
      %vm1512 = vcmp.gt.f32.partialorder %v1488, 0.0
      %vm1513 = vcmp.gt.f32.partialorder %v1489, 0.0
      %vm1514 = vcmp.gt.f32.partialorder %v1490, 0.0
      %vm1515 = vcmp.gt.f32.partialorder %v1491, 0.0
      %v1516 = vmul.f32 %v1468, 0.2
      %v1517 = vmul.f32 %v1469, 0.2
      %v1518 = vmul.f32 %v1470, 0.2
      %v1519 = vmul.f32 %v1471, 0.2
      %v1520 = vmul.f32 %v1472, 0.2
      %v1521 = vmul.f32 %v1473, 0.2
      %v1522 = vmul.f32 %v1474, 0.2
      %v1523 = vmul.f32 %v1475, 0.2
      %v1524 = vmul.f32 %v1476, 0.2
      %v1525 = vmul.f32 %v1477, 0.2
      %v1526 = vmul.f32 %v1478, 0.2
      %v1527 = vmul.f32 %v1479, 0.2
      %v1528 = vmul.f32 %v1480, 0.2
      %v1529 = vmul.f32 %v1481, 0.2
      %v1530 = vmul.f32 %v1482, 0.2
      %v1531 = vmul.f32 %v1483, 0.2
      %v1532 = vmul.f32 %v1484, 0.2
      %v1533 = vmul.f32 %v1485, 0.2
      %v1534 = vmul.f32 %v1486, 0.2
      %v1535 = vmul.f32 %v1487, 0.2
      %v1536 = vmul.f32 %v1488, 0.2
      %v1537 = vmul.f32 %v1489, 0.2
      %v1538 = vmul.f32 %v1490, 0.2
      %v1539 = vmul.f32 %v1491, 0.2
      %v1540 = vsel %vm1492, %v1468, %v1516
      %v1541 = vsel %vm1493, %v1469, %v1517
      %v1542 = vsel %vm1494, %v1470, %v1518
      %v1543 = vsel %vm1495, %v1471, %v1519
      %v1544 = vsel %vm1496, %v1472, %v1520
      %v1545 = vsel %vm1497, %v1473, %v1521
      %v1546 = vsel %vm1498, %v1474, %v1522
      %v1547 = vsel %vm1499, %v1475, %v1523
      %v1548 = vsel %vm1500, %v1476, %v1524
      %v1549 = vsel %vm1501, %v1477, %v1525
      %v1550 = vsel %vm1502, %v1478, %v1526
      %v1551 = vsel %vm1503, %v1479, %v1527
      %v1552 = vsel %vm1504, %v1480, %v1528
      %v1553 = vsel %vm1505, %v1481, %v1529
      %v1554 = vsel %vm1506, %v1482, %v1530
      %v1555 = vsel %vm1507, %v1483, %v1531
      %v1556 = vsel %vm1508, %v1484, %v1532
      %v1557 = vsel %vm1509, %v1485, %v1533
      %v1558 = vsel %vm1510, %v1486, %v1534
      %v1559 = vsel %vm1511, %v1487, %v1535
      %v1560 = vsel %vm1512, %v1488, %v1536
      %v1561 = vsel %vm1513, %v1489, %v1537
      %v1562 = vsel %vm1514, %v1490, %v1538
      %v1563 = vsel %vm1515, %v1491, %v1539
      %1564 = vst [vmem:[%s222] sm:$0xff] %v1540
      %1565 = vst [vmem:[%s222 + $0x8] sm:$0xff] %v1541
      %1566 = vst [vmem:[%s222 + $0x10] sm:$0xff] %v1542
      %1567 = vst [vmem:[%s222 + $0x18] sm:$0xff] %v1543
      %1568 = vst [vmem:[%s222 + $0x20] sm:$0xff] %v1544
      %1569 = vst [vmem:[%s222 + $0x28] sm:$0xff] %v1545
      %1570 = vst [vmem:[%s222 + $0x30] sm:$0xff] %v1546
      %1571 = vst [vmem:[%s222 + $0x38] sm:$0xff] %v1547
      %1572 = vst [vmem:[%s222 + $0x40] sm:$0xff] %v1548
      %1573 = vst [vmem:[%s222 + $0x48] sm:$0xff] %v1549
      %1574 = vst [vmem:[%s222 + $0x50] sm:$0xff] %v1550
      %1575 = vst [vmem:[%s222 + $0x58] sm:$0xff] %v1551
      %1576 = vst [vmem:[%s222 + $0x60] sm:$0xff] %v1552
      %1577 = vst [vmem:[%s222 + $0x68] sm:$0xff] %v1553
      %1578 = vst [vmem:[%s222 + $0x70] sm:$0xff] %v1554
      %1579 = vst [vmem:[%s222 + $0x78] sm:$0xff] %v1555
      %1580 = vst [vmem:[%s222 + $0x80] sm:$0xff] %v1556
      %1581 = vst [vmem:[%s222 + $0x88] sm:$0xff] %v1557
      %1582 = vst [vmem:[%s222 + $0x90] sm:$0xff] %v1558
      %1583 = vst [vmem:[%s222 + $0x98] sm:$0xff] %v1559
      %1584 = vst [vmem:[%s222 + $0xa0] sm:$0xff] %v1560
      %1585 = vst [vmem:[%s222 + $0xa8] sm:$0xff] %v1561
      %1586 = vst [vmem:[%s222 + $0xb0] sm:$0xff] %v1562
      %1587 = vst [vmem:[%s222 + $0xb8] sm:$0xff] %v1563
      %s1588 = smul.u32 8, %s25
      %p1589 = scmp.lt.s32.totalorder %s24, 1
      %s1590 = scalar_select %p1589, %s24, 1
      %p1591 = scmp.lt.s32.totalorder %s1588, 7
      %s1592 = scalar_select %p1591, %s1588, 7
      %s1593 = smul.addr %s1592, 3
      %s1594 = smul.addr %s1590, 24
      %s1595 = sadd.s32 %s1593, %s1594
      %s1596 = smul.addr %s1595, 8
      %s1597 = scalar_lea.vmem %s4, %s1596
      // Predicated region
      $region33: #{forward.5} parent=31 // pred_check
        %p1598 = pneg %p125
      $region34: #{forward.5} parent=31 // pred_check_branch
        %1600 = sbr.rel (%p1598) target = $region36
      $region35: #{forward.5} parent=31 // pred_region
        %s1601 = smul.u32 8, %s25
      $region36: #{forward.5} parent=31 // pred_fallthru
        _
    $region32: #{forward.5} parent=5 // pred_fallthru
      _
    %p1602 = scmp.le.s32.totalorder 2, %s15
    // Predicated region
    $region37: #{forward.5} parent=5 // pred_check
      %p1603 = pneg %p1602
    $region38: #{forward.5} parent=5 // pred_check_branch
      %1605 = sbr.rel (%p1603) target = $region40
    $region39: #{forward.5} parent=5 // pred_region
      %s1606 = ssub.s32 %s15, 2
      // Predicated region
      $region41: #{forward.5} parent=39 // pred_check
        %p1607 = pneg %p131
      $region42: #{forward.5} parent=39 // pred_check_branch
        %1609 = sbr.rel (%p1607) target = $region44
      $region43: #{forward.5} parent=39 // pred_region
        %s1610 = smul.u32 8, %s27
        %p1611 = scmp.lt.s32.totalorder %s26, 1
        %s1612 = scalar_select %p1611, %s26, 1
        %p1613 = scmp.lt.s32.totalorder %s1610, 7
        %s1614 = scalar_select %p1613, %s1610, 7
        %s1615 = smul.addr %s1614, 3
        %s1616 = smul.addr %s1612, 24
        %s1617 = sadd.s32 %s1615, %s1616
        %s1618 = smul.addr %s1617, 8
        %s1619 = scalar_lea.vmem %s4, %s1618
      $region44: #{forward.5} parent=39 // pred_fallthru
        _
    $region40: #{forward.5} parent=5 // pred_fallthru
      _
  $region6: #{forward.5} parent=0 // loop_footer
    %s19 = sadd.s32 1, %s15
  $region7: #{forward.5} parent=0 // loop_footer_branch
    %14 = sbr.rel target = $region3
  $region8: #{forward.5} parent=0 // loop_exit
    _

// kernel: forward.4
$region0: #{forward.4}
  #allocation0 [shape = 'u32[]', space=smem, size = 0x4, offset = 0x4, fixed_abs, tag = 'smem constant byte address 0x4 - core index']
  #allocation1 [shape = 'u32[72,128]{1,0:T(1,128)}', space=vmem, size = 0x9000, scoped, tag = 'internal scratch']
  #allocation2 [shape = 'u32[2048]{0}', space=vmem, size = 0x2000, scoped, tag = 'scoped memory for forward.4']
  #allocation3 [shape = 'u32[2048]{0}', space=vmem, size = 0x2000, scoped, tag = 'scoped memory for forward.4']
  #allocation4 [shape = 'u32[2048]{0}', space=vmem, size = 0x2000, scoped, tag = 'scoped memory for forward.4']
  #allocation5 [shape = 'u32[2048]{0}', space=vmem, size = 0x2000, scoped, tag = 'scoped memory for forward.4']
  #allocation6 [shape = 'u32[2048]{0}', space=vmem, size = 0x2000, scoped, tag = 'scoped memory for forward.4']
  %s0 = inlined_call_operand.vmem [shape: bf16[4,128,256], index: 0, kind: input, shape index: {}]
  %s1 = inlined_call_operand.vmem [shape: f32[1,128], index: 1, kind: input, shape index: {}]
  %s2 = inlined_call_operand.vmem [shape: bf16[2,256,81], index: 2, kind: input, shape index: {}]
  %s3 = inlined_call_operand.<no memory space> [shape: bf16[], index: 3, kind: input, shape index: {}]
  %s4 = inlined_call_operand.vmem [shape: f32[2,128,128], index: 4, kind: output, shape index: {}]
  %s5 = sld [smem:[#allocation0]]
  $region45: #{forward.4} parent=0
    _
  %s7 = ssub.s32 1, %s5
  %s8 = scalar_select 0, %s7, %s5
  %v9 = vstv %s3
  %v10 = vunpack.i.l.bf16 %v9
  %v12 = vunpack.i.h.bf16 %v9
  loop: start=0, step=1, limit=4
  $region2: #{forward.4} parent=0 // loop_pre_header
    _
  $region3: #{forward.4} parent=0 // loop_header
    %s15 = sphi 0, %s19
    %p16 = scmp.ge.s32.totalorder %s15, 4
    %s22 = sphi 0, %s34
    %s23 = sphi 0, %s30
    %s24 = sphi 0, %s22
    %s25 = sphi 0, %s23
    %s26 = sphi 0, %s24
    %s27 = sphi 0, %s25
    %s37 = sphi 0, %s39
    %s40 = sphi 0, %s37
    %s41 = sphi 0, %s40
    %s57 = sphi 0, %s41
    %s63 = sphi 0, %s65
    %s66 = sphi 0, %s63
    %s67 = sphi 0, %s66
    %s83 = sphi 0, %s67
    %s87 = sphi 0, %s87
    %s89 = sphi 0, %s87
    %s90 = sphi 0, %s89
    %s104 = sphi 0, %s90
    %s112 = sphi 0, %s114
    %s115 = sphi 0, %s112
    %s116 = sphi 0, %s115
    %s132 = sphi 0, %s116
  $region4: #{forward.4} parent=0 // loop_header_branch
    %18 = sbr.rel (%p16) target = $region8
  $region5: #{forward.4} parent=0 // loop_body
    %s20 = ssub.s32 %s15, 1
    %s21 = ssub.s32 %s15, 2
    %s28 = sadd.s32 1, %s23
    %p29 = scmp.ge.s32.totalorder %s28, 1
    %s30 = scalar_select %p29, 0, %s28
    %s31 = sadd.s32 1, %s22
    %s32 = scalar_select %p29, %s31, %s22
    %p33 = scmp.ge.s32.totalorder %s32, 2
    %s34 = scalar_select %p33, 0, %s32
    %s35 = ssub.s32 %s22, %s34
    %p36 = scmp.eq.s32.totalorder %s35, 0
    %s38 = sadd.s32 %s37, 1
    %s39 = scalar_select %p36, %s37, %s38
    %p42 = pneg %p36
    %p43 = scmp.eq.s32.totalorder %s15, 1
    %p44 = por %p42, %p43
    %p45 = scmp.ne.s32.totalorder %s37, %s40
    %p46 = scmp.eq.s32.totalorder %s15, 0
    %p47 = por %p45, %p46
    %p48 = scmp.ne.s32.totalorder %s37, %s40
    %p49 = scmp.eq.s32.totalorder %s20, 1
    %p50 = por %p48, %p49
    %p51 = scmp.ne.s32.totalorder %s40, %s41
    %p52 = scmp.eq.s32.totalorder %s20, 0
    %p53 = por %p51, %p52
    %p54 = scmp.ne.s32.totalorder %s40, %s41
    %p55 = scmp.eq.s32.totalorder %s21, 1
    %p56 = por %p54, %p55
    %p58 = scmp.ne.s32.totalorder %s41, %s57
    %p59 = scmp.eq.s32.totalorder %s21, 0
    %p60 = por %p58, %p59
    %s61 = ssub.s32 %s23, %s30
    %p62 = scmp.eq.s32.totalorder %s61, 0
    %s64 = sadd.s32 %s63, 1
    %s65 = scalar_select %p62, %s63, %s64
    %p68 = pneg %p62
    %p69 = scmp.eq.s32.totalorder %s15, 1
    %p70 = por %p68, %p69
    %p71 = scmp.ne.s32.totalorder %s63, %s66
    %p72 = scmp.eq.s32.totalorder %s15, 0
    %p73 = por %p71, %p72
    %p74 = scmp.ne.s32.totalorder %s63, %s66
    %p75 = scmp.eq.s32.totalorder %s20, 1
    %p76 = por %p74, %p75
    %p77 = scmp.ne.s32.totalorder %s66, %s67
    %p78 = scmp.eq.s32.totalorder %s20, 0
    %p79 = por %p77, %p78
    %p80 = scmp.ne.s32.totalorder %s66, %s67
    %p81 = scmp.eq.s32.totalorder %s21, 1
    %p82 = por %p80, %p81
    %p84 = scmp.ne.s32.totalorder %s67, %s83
    %p85 = scmp.eq.s32.totalorder %s21, 0
    %p86 = por %p84, %p85
    %s88 = sadd.s32 %s87, 1
    %p91 = scmp.eq.s32.totalorder %s15, 1
    %p92 = scmp.ne.s32.totalorder %s87, %s89
    %p93 = scmp.eq.s32.totalorder %s15, 0
    %p94 = por %p92, %p93
    %p95 = scmp.ne.s32.totalorder %s87, %s89
    %p96 = scmp.eq.s32.totalorder %s20, 1
    %p97 = por %p95, %p96
    %p98 = scmp.ne.s32.totalorder %s89, %s90
    %p99 = scmp.eq.s32.totalorder %s20, 0
    %p100 = por %p98, %p99
    %p101 = scmp.ne.s32.totalorder %s89, %s90
    %p102 = scmp.eq.s32.totalorder %s21, 1
    %p103 = por %p101, %p102
    %p105 = scmp.ne.s32.totalorder %s90, %s104
    %p106 = scmp.eq.s32.totalorder %s21, 0
    %p107 = por %p105, %p106
    %s108 = ssub.s32 %s22, %s34
    %s109 = ssub.s32 %s23, %s30
    %s110 = sor.u32 %s108, %s109
    %p111 = scmp.eq.s32.totalorder %s110, 0
    %s113 = sadd.s32 %s112, 1
    %s114 = scalar_select %p111, %s112, %s113
    %p117 = pneg %p111
    %p118 = scmp.eq.s32.totalorder %s15, 1
    %p119 = por %p117, %p118
    %p120 = scmp.ne.s32.totalorder %s112, %s115
    %p121 = scmp.eq.s32.totalorder %s15, 0
    %p122 = por %p120, %p121
    %p123 = scmp.ne.s32.totalorder %s112, %s115
    %p124 = scmp.eq.s32.totalorder %s20, 1
    %p125 = por %p123, %p124
    %p126 = scmp.ne.s32.totalorder %s115, %s116
    %p127 = scmp.eq.s32.totalorder %s20, 0
    %p128 = por %p126, %p127
    %p129 = scmp.ne.s32.totalorder %s115, %s116
    %p130 = scmp.eq.s32.totalorder %s21, 1
    %p131 = por %p129, %p130
    %p133 = scmp.ne.s32.totalorder %s116, %s132
    %p134 = scmp.eq.s32.totalorder %s21, 0
    %p135 = por %p133, %p134
    %p136 = scmp.le.s32.totalorder 1, %s15
    %p137 = scmp.lt.s32.totalorder %s15, 3
    %p138 = pnand %p136, %p137
    %p139 = pneg %p138
    // Predicated region
    $region9: #{forward.4} parent=5 // pred_check
      _
    $region10: #{forward.4} parent=5 // pred_check_branch
      %141 = sbr.rel (%p138) target = $region12
    $region11: #{forward.4} parent=5 // pred_region
      %s142 = ssub.s32 %s15, 1
      // Predicated region
      $region13: #{forward.4} parent=11 // pred_check
        %p143 = pneg %p79
      $region14: #{forward.4} parent=11 // pred_check_branch
        %145 = sbr.rel (%p143) target = $region16
      $region15: #{forward.4} parent=11 // pred_region
        %s146 = smul.u32 16, %s25
        %p147 = scmp.lt.s32.totalorder %s146, 15
        %s148 = scalar_select %p147, %s146, 15
        %s149 = smul.addr %s148, 2
        %s150 = smul.addr %s149, 4
        %s151 = scalar_lea.vmem %s0, %s150
        %s152 = smul.u32 16, %s25
      $region16: #{forward.4} parent=11 // pred_fallthru
        _
      // Predicated region
      $region17: #{forward.4} parent=11 // pred_check
        %p153 = pneg %p100
      $region18: #{forward.4} parent=11 // pred_check_branch
        %155 = sbr.rel (%p153) target = $region20
      $region19: #{forward.4} parent=11 // pred_region
        _
      $region20: #{forward.4} parent=11 // pred_fallthru
        _
    $region12: #{forward.4} parent=5 // pred_fallthru
      _
    %p156 = scmp.lt.s32.totalorder %s15, 2
    // Predicated region
    $region21: #{forward.4} parent=5 // pred_check
      %p157 = pneg %p156
    $region22: #{forward.4} parent=5 // pred_check_branch
      %159 = sbr.rel (%p157) target = $region24
    $region23: #{forward.4} parent=5 // pred_region
      // Predicated region
      $region25: #{forward.4} parent=23 // pred_check
        %p160 = pneg %p47
      $region26: #{forward.4} parent=23 // pred_check_branch
        %162 = sbr.rel (%p160) target = $region28
      $region27: #{forward.4} parent=23 // pred_region
        %p163 = scmp.lt.s32.totalorder %s22, 1
        %s164 = scalar_select %p163, %s22, 1
        %s165 = smul.addr %s164, 32
        %s166 = smul.addr %s165, 4
        %s167 = scalar_lea.vmem %s2, %s166
      $region28: #{forward.4} parent=23 // pred_fallthru
        _
    $region24: #{forward.4} parent=5 // pred_fallthru
      _
    %p168 = scmp.le.s32.totalorder 1, %s15
    %p169 = scmp.lt.s32.totalorder %s15, 3
    %p170 = pnand %p168, %p169
    %p171 = pneg %p170
    // Predicated region
    $region29: #{forward.4} parent=5 // pred_check
      _
    $region30: #{forward.4} parent=5 // pred_check_branch
      %173 = sbr.rel (%p170) target = $region32
    $region31: #{forward.4} parent=5 // pred_region
      #allocation7 [shape = 'u8[65536]{0}', space=vmem, size = 0x10000, dematerialized = true, scoped, tag = 'FusionAdapter Buffer %fusion.2 = bf16[2,256,128]{2,1,0:T(8,128)(2,1)} fusion(%param_2.7, %param_3.8), kind=kLoop, calls=%fused_computation.8.clone, metadata={op_name="jit(forward)/jit(_pad)/pad" stack_frame_id=40}']
      %s174 = ssub.s32 %s15, 1
      %p175 = scmp.lt.s32.totalorder %s24, 1
      %s176 = scalar_select %p175, %s24, 1
      %s177 = smul.addr %s176, 32
      %s178 = smul.addr %s177, 4
      %s179 = scalar_lea.vmem %s2, %s178
      %p180 = pneg %p53
      %p181 = pneg %p50
      %s182 = smul.u32 16, %s25
      %p183 = scmp.lt.s32.totalorder %s182, 15
      %s184 = scalar_select %p183, %s182, 15
      %s185 = smul.addr %s184, 2
      %s186 = smul.addr %s185, 4
      %s187 = scalar_lea.vmem %s0, %s186
      %p188 = pneg %p79
      %p189 = pneg %p76
      %p190 = pneg %p100
      %p191 = pneg %p97
      %p192 = pneg %p128
      %p193 = pneg %p125
      %s194 = smul.u32 16, %s25
      %p195 = scmp.lt.s32.totalorder %s24, 1
      %s196 = scalar_select %p195, %s24, 1
      %p197 = scmp.lt.s32.totalorder %s194, 15
      %s198 = scalar_select %p197, %s194, 15
      %s199 = smul.addr %s196, 16
      %s200 = sadd.s32 %s198, %s199
      %s201 = smul.addr %s200, 8
      %s202 = scalar_lea.vmem %s4, %s201
      %p203 = scmp.lt.s32.totalorder %s24, 1
      %s204 = scalar_select %p203, %s24, 1
      %s205 = smul.addr %s204, 32
      %s206 = smul.addr %s205, 4
      %s207 = scalar_lea.vmem %s2, %s206
      %s208 = smul.u32 16, %s25
      %p209 = scmp.lt.s32.totalorder %s208, 15
      %s210 = scalar_select %p209, %s208, 15
      %s211 = smul.addr %s210, 2
      %s212 = smul.addr %s211, 4
      %s213 = scalar_lea.vmem %s0, %s212
      %s214 = smul.u32 16, %s25
      %s215 = smul.u32 16, %s25
      %p216 = scmp.lt.s32.totalorder %s24, 1
      %s217 = scalar_select %p216, %s24, 1
      %p218 = scmp.lt.s32.totalorder %s215, 15
      %s219 = scalar_select %p218, %s215, 15
      %s220 = smul.addr %s217, 16
      %s221 = sadd.s32 %s219, %s220
      %s222 = smul.addr %s221, 8
      %s223 = scalar_lea.vmem %s4, %s222
      %s224 = smul.u32 16, %s25
      %s226 = sor.u32 255, 127
      %s227 = sand.u32 %s226, 85
      %s228 = sshrl.u32 %s227, 1
      %s229 = sor.u32 %s227, %s228
      %s230 = sand.u32 51, %s229
      %s231 = sshrl.u32 %s230, 2
      %s232 = sor.u32 %s230, %s231
      %s233 = sand.u32 15, %s232
      %v234 = vld [vmem:[%s207] sm:%s233]
      %v235 = vunpack.c.l.bf16 %v234
      %v236 = vunpack.c.h.bf16 %v234
      %v237 = vlaneseq
      %v238 = vand.u32 %v237, 127
      %vm240 = vcmp.lt.s32.totalorder %v238, 81
      %v241 = vsel %vm240, %v235, %v10
      %v242 = vpack.c.bf16 0.0, %v241
      %s244 = ssub.s32 16, 1
      %245 = vst [vmem:[#allocation7] sm:%s244] %v242
      %s246 = scalar_lea.vmem %s207, 4
      %s248 = sor.u32 255, 127
      %s249 = sand.u32 %s248, 85
      %s250 = sshrl.u32 %s249, 1
      %s251 = sor.u32 %s249, %s250
      %s252 = sand.u32 51, %s251
      %s253 = sshrl.u32 %s252, 2
      %s254 = sor.u32 %s252, %s253
      %s255 = sand.u32 15, %s254
      %v256 = vld [vmem:[%s246] sm:%s255]
      %v257 = vunpack.c.l.bf16 %v256
      %v258 = vunpack.c.h.bf16 %v256
      %v259 = vlaneseq
      %v260 = vand.u32 %v259, 127
      %vm262 = vcmp.lt.s32.totalorder %v260, 81
      %v263 = vsel %vm262, %v257, %v10
      %s264 = scalar_lea.vmem [#allocation7], 4
      %v265 = vpack.c.bf16 0.0, %v263
      %s267 = ssub.s32 16, 1
      %268 = vst [vmem:[%s264] sm:%s267] %v265
      %s269 = scalar_lea.vmem %s207, 8
      %s271 = sor.u32 255, 127
      %s272 = sand.u32 %s271, 85
      %s273 = sshrl.u32 %s272, 1
      %s274 = sor.u32 %s272, %s273
      %s275 = sand.u32 51, %s274
      %s276 = sshrl.u32 %s275, 2
      %s277 = sor.u32 %s275, %s276
      %s278 = sand.u32 15, %s277
      %v279 = vld [vmem:[%s269] sm:%s278]
      %v280 = vunpack.c.l.bf16 %v279
      %v281 = vunpack.c.h.bf16 %v279
      %v282 = vlaneseq
      %v283 = vand.u32 %v282, 127
      %vm285 = vcmp.lt.s32.totalorder %v283, 81
      %v286 = vsel %vm285, %v280, %v10
      %s287 = scalar_lea.vmem [#allocation7], 8
      %v288 = vpack.c.bf16 0.0, %v286
      %s290 = ssub.s32 16, 1
      %291 = vst [vmem:[%s287] sm:%s290] %v288
      %s292 = scalar_lea.vmem %s207, 12
      %s294 = sor.u32 255, 127
      %s295 = sand.u32 %s294, 85
      %s296 = sshrl.u32 %s295, 1
      %s297 = sor.u32 %s295, %s296
      %s298 = sand.u32 51, %s297
      %s299 = sshrl.u32 %s298, 2
      %s300 = sor.u32 %s298, %s299
      %s301 = sand.u32 15, %s300
      %v302 = vld [vmem:[%s292] sm:%s301]
      %v303 = vunpack.c.l.bf16 %v302
      %v304 = vunpack.c.h.bf16 %v302
      %v305 = vlaneseq
      %v306 = vand.u32 %v305, 127
      %vm308 = vcmp.lt.s32.totalorder %v306, 81
      %v309 = vsel %vm308, %v303, %v10
      %s310 = scalar_lea.vmem [#allocation7], 12
      %v311 = vpack.c.bf16 0.0, %v309
      %s313 = ssub.s32 16, 1
      %314 = vst [vmem:[%s310] sm:%s313] %v311
      %s315 = scalar_lea.vmem %s207, 16
      %s317 = sor.u32 255, 127
      %s318 = sand.u32 %s317, 85
      %s319 = sshrl.u32 %s318, 1
      %s320 = sor.u32 %s318, %s319
      %s321 = sand.u32 51, %s320
      %s322 = sshrl.u32 %s321, 2
      %s323 = sor.u32 %s321, %s322
      %s324 = sand.u32 15, %s323
      %v325 = vld [vmem:[%s315] sm:%s324]
      %v326 = vunpack.c.l.bf16 %v325
      %v327 = vunpack.c.h.bf16 %v325
      %v328 = vlaneseq
      %v329 = vand.u32 %v328, 127
      %vm331 = vcmp.lt.s32.totalorder %v329, 81
      %v332 = vsel %vm331, %v326, %v10
      %s333 = scalar_lea.vmem [#allocation7], 16
      %v334 = vpack.c.bf16 0.0, %v332
      %s336 = ssub.s32 16, 1
      %337 = vst [vmem:[%s333] sm:%s336] %v334
      %s338 = scalar_lea.vmem %s207, 20
      %s340 = sor.u32 255, 127
      %s341 = sand.u32 %s340, 85
      %s342 = sshrl.u32 %s341, 1
      %s343 = sor.u32 %s341, %s342
      %s344 = sand.u32 51, %s343
      %s345 = sshrl.u32 %s344, 2
      %s346 = sor.u32 %s344, %s345
      %s347 = sand.u32 15, %s346
      %v348 = vld [vmem:[%s338] sm:%s347]
      %v349 = vunpack.c.l.bf16 %v348
      %v350 = vunpack.c.h.bf16 %v348
      %v351 = vlaneseq
      %v352 = vand.u32 %v351, 127
      %vm354 = vcmp.lt.s32.totalorder %v352, 81
      %v355 = vsel %vm354, %v349, %v10
      %s356 = scalar_lea.vmem [#allocation7], 20
      %v357 = vpack.c.bf16 0.0, %v355
      %s359 = ssub.s32 16, 1
      %360 = vst [vmem:[%s356] sm:%s359] %v357
      %s361 = scalar_lea.vmem %s207, 24
      %s363 = sor.u32 255, 127
      %s364 = sand.u32 %s363, 85
      %s365 = sshrl.u32 %s364, 1
      %s366 = sor.u32 %s364, %s365
      %s367 = sand.u32 51, %s366
      %s368 = sshrl.u32 %s367, 2
      %s369 = sor.u32 %s367, %s368
      %s370 = sand.u32 15, %s369
      %v371 = vld [vmem:[%s361] sm:%s370]
      %v372 = vunpack.c.l.bf16 %v371
      %v373 = vunpack.c.h.bf16 %v371
      %v374 = vlaneseq
      %v375 = vand.u32 %v374, 127
      %vm377 = vcmp.lt.s32.totalorder %v375, 81
      %v378 = vsel %vm377, %v372, %v10
      %s379 = scalar_lea.vmem [#allocation7], 24
      %v380 = vpack.c.bf16 0.0, %v378
      %s382 = ssub.s32 16, 1
      %383 = vst [vmem:[%s379] sm:%s382] %v380
      %s384 = scalar_lea.vmem %s207, 28
      %s386 = sor.u32 255, 127
      %s387 = sand.u32 %s386, 85
      %s388 = sshrl.u32 %s387, 1
      %s389 = sor.u32 %s387, %s388
      %s390 = sand.u32 51, %s389
      %s391 = sshrl.u32 %s390, 2
      %s392 = sor.u32 %s390, %s391
      %s393 = sand.u32 15, %s392
      %v394 = vld [vmem:[%s384] sm:%s393]
      %v395 = vunpack.c.l.bf16 %v394
      %v396 = vunpack.c.h.bf16 %v394
      %v397 = vlaneseq
      %v398 = vand.u32 %v397, 127
      %vm400 = vcmp.lt.s32.totalorder %v398, 81
      %v401 = vsel %vm400, %v395, %v10
      %s402 = scalar_lea.vmem [#allocation7], 28
      %v403 = vpack.c.bf16 0.0, %v401
      %s405 = ssub.s32 16, 1
      %406 = vst [vmem:[%s402] sm:%s405] %v403
      %s407 = scalar_lea.vmem %s207, 32
      %s409 = sor.u32 255, 127
      %s410 = sand.u32 %s409, 85
      %s411 = sshrl.u32 %s410, 1
      %s412 = sor.u32 %s410, %s411
      %s413 = sand.u32 51, %s412
      %s414 = sshrl.u32 %s413, 2
      %s415 = sor.u32 %s413, %s414
      %s416 = sand.u32 15, %s415
      %v417 = vld [vmem:[%s407] sm:%s416]
      %v418 = vunpack.c.l.bf16 %v417
      %v419 = vunpack.c.h.bf16 %v417
      %v420 = vlaneseq
      %v421 = vand.u32 %v420, 127
      %vm423 = vcmp.lt.s32.totalorder %v421, 81
      %v424 = vsel %vm423, %v418, %v10
      %s425 = scalar_lea.vmem [#allocation7], 32
      %v426 = vpack.c.bf16 0.0, %v424
      %s428 = ssub.s32 16, 1
      %429 = vst [vmem:[%s425] sm:%s428] %v426
      %s430 = scalar_lea.vmem %s207, 36
      %s432 = sor.u32 255, 127
      %s433 = sand.u32 %s432, 85
      %s434 = sshrl.u32 %s433, 1
      %s435 = sor.u32 %s433, %s434
      %s436 = sand.u32 51, %s435
      %s437 = sshrl.u32 %s436, 2
      %s438 = sor.u32 %s436, %s437
      %s439 = sand.u32 15, %s438
      %v440 = vld [vmem:[%s430] sm:%s439]
      %v441 = vunpack.c.l.bf16 %v440
      %v442 = vunpack.c.h.bf16 %v440
      %v443 = vlaneseq
      %v444 = vand.u32 %v443, 127
      %vm446 = vcmp.lt.s32.totalorder %v444, 81
      %v447 = vsel %vm446, %v441, %v10
      %s448 = scalar_lea.vmem [#allocation7], 36
      %v449 = vpack.c.bf16 0.0, %v447
      %s451 = ssub.s32 16, 1
      %452 = vst [vmem:[%s448] sm:%s451] %v449
      %s453 = scalar_lea.vmem %s207, 40
      %s455 = sor.u32 255, 127
      %s456 = sand.u32 %s455, 85
      %s457 = sshrl.u32 %s456, 1
      %s458 = sor.u32 %s456, %s457
      %s459 = sand.u32 51, %s458
      %s460 = sshrl.u32 %s459, 2
      %s461 = sor.u32 %s459, %s460
      %s462 = sand.u32 15, %s461
      %v463 = vld [vmem:[%s453] sm:%s462]
      %v464 = vunpack.c.l.bf16 %v463
      %v465 = vunpack.c.h.bf16 %v463
      %v466 = vlaneseq
      %v467 = vand.u32 %v466, 127
      %vm469 = vcmp.lt.s32.totalorder %v467, 81
      %v470 = vsel %vm469, %v464, %v10
      %s471 = scalar_lea.vmem [#allocation7], 40
      %v472 = vpack.c.bf16 0.0, %v470
      %s474 = ssub.s32 16, 1
      %475 = vst [vmem:[%s471] sm:%s474] %v472
      %s476 = scalar_lea.vmem %s207, 44
      %s478 = sor.u32 255, 127
      %s479 = sand.u32 %s478, 85
      %s480 = sshrl.u32 %s479, 1
      %s481 = sor.u32 %s479, %s480
      %s482 = sand.u32 51, %s481
      %s483 = sshrl.u32 %s482, 2
      %s484 = sor.u32 %s482, %s483
      %s485 = sand.u32 15, %s484
      %v486 = vld [vmem:[%s476] sm:%s485]
      %v487 = vunpack.c.l.bf16 %v486
      %v488 = vunpack.c.h.bf16 %v486
      %v489 = vlaneseq
      %v490 = vand.u32 %v489, 127
      %vm492 = vcmp.lt.s32.totalorder %v490, 81
      %v493 = vsel %vm492, %v487, %v10
      %s494 = scalar_lea.vmem [#allocation7], 44
      %v495 = vpack.c.bf16 0.0, %v493
      %s497 = ssub.s32 16, 1
      %498 = vst [vmem:[%s494] sm:%s497] %v495
      %s499 = scalar_lea.vmem %s207, 48
      %s501 = sor.u32 255, 127
      %s502 = sand.u32 %s501, 85
      %s503 = sshrl.u32 %s502, 1
      %s504 = sor.u32 %s502, %s503
      %s505 = sand.u32 51, %s504
      %s506 = sshrl.u32 %s505, 2
      %s507 = sor.u32 %s505, %s506
      %s508 = sand.u32 15, %s507
      %v509 = vld [vmem:[%s499] sm:%s508]
      %v510 = vunpack.c.l.bf16 %v509
      %v511 = vunpack.c.h.bf16 %v509
      %v512 = vlaneseq
      %v513 = vand.u32 %v512, 127
      %vm515 = vcmp.lt.s32.totalorder %v513, 81
      %v516 = vsel %vm515, %v510, %v10
      %s517 = scalar_lea.vmem [#allocation7], 48
      %v518 = vpack.c.bf16 0.0, %v516
      %s520 = ssub.s32 16, 1
      %521 = vst [vmem:[%s517] sm:%s520] %v518
      %s522 = scalar_lea.vmem %s207, 52
      %s524 = sor.u32 255, 127
      %s525 = sand.u32 %s524, 85
      %s526 = sshrl.u32 %s525, 1
      %s527 = sor.u32 %s525, %s526
      %s528 = sand.u32 51, %s527
      %s529 = sshrl.u32 %s528, 2
      %s530 = sor.u32 %s528, %s529
      %s531 = sand.u32 15, %s530
      %v532 = vld [vmem:[%s522] sm:%s531]
      %v533 = vunpack.c.l.bf16 %v532
      %v534 = vunpack.c.h.bf16 %v532
      %v535 = vlaneseq
      %v536 = vand.u32 %v535, 127
      %vm538 = vcmp.lt.s32.totalorder %v536, 81
      %v539 = vsel %vm538, %v533, %v10
      %s540 = scalar_lea.vmem [#allocation7], 52
      %v541 = vpack.c.bf16 0.0, %v539
      %s543 = ssub.s32 16, 1
      %544 = vst [vmem:[%s540] sm:%s543] %v541
      %s545 = scalar_lea.vmem %s207, 56
      %s547 = sor.u32 255, 127
      %s548 = sand.u32 %s547, 85
      %s549 = sshrl.u32 %s548, 1
      %s550 = sor.u32 %s548, %s549
      %s551 = sand.u32 51, %s550
      %s552 = sshrl.u32 %s551, 2
      %s553 = sor.u32 %s551, %s552
      %s554 = sand.u32 15, %s553
      %v555 = vld [vmem:[%s545] sm:%s554]
      %v556 = vunpack.c.l.bf16 %v555
      %v557 = vunpack.c.h.bf16 %v555
      %v558 = vlaneseq
      %v559 = vand.u32 %v558, 127
      %vm561 = vcmp.lt.s32.totalorder %v559, 81
      %v562 = vsel %vm561, %v556, %v10
      %s563 = scalar_lea.vmem [#allocation7], 56
      %v564 = vpack.c.bf16 0.0, %v562
      %s566 = ssub.s32 16, 1
      %567 = vst [vmem:[%s563] sm:%s566] %v564
      %s568 = scalar_lea.vmem %s207, 60
      %s570 = sor.u32 255, 127
      %s571 = sand.u32 %s570, 85
      %s572 = sshrl.u32 %s571, 1
      %s573 = sor.u32 %s571, %s572
      %s574 = sand.u32 51, %s573
      %s575 = sshrl.u32 %s574, 2
      %s576 = sor.u32 %s574, %s575
      %s577 = sand.u32 15, %s576
      %v578 = vld [vmem:[%s568] sm:%s577]
      %v579 = vunpack.c.l.bf16 %v578
      %v580 = vunpack.c.h.bf16 %v578
      %v581 = vlaneseq
      %v582 = vand.u32 %v581, 127
      %vm584 = vcmp.lt.s32.totalorder %v582, 81
      %v585 = vsel %vm584, %v579, %v10
      %s586 = scalar_lea.vmem [#allocation7], 60
      %v587 = vpack.c.bf16 0.0, %v585
      %s589 = ssub.s32 16, 1
      %590 = vst [vmem:[%s586] sm:%s589] %v587
      %s591 = scalar_lea.vmem %s207, 64
      %s593 = sor.u32 255, 127
      %s594 = sand.u32 %s593, 85
      %s595 = sshrl.u32 %s594, 1
      %s596 = sor.u32 %s594, %s595
      %s597 = sand.u32 51, %s596
      %s598 = sshrl.u32 %s597, 2
      %s599 = sor.u32 %s597, %s598
      %s600 = sand.u32 15, %s599
      %v601 = vld [vmem:[%s591] sm:%s600]
      %v602 = vunpack.c.l.bf16 %v601
      %v603 = vunpack.c.h.bf16 %v601
      %v604 = vlaneseq
      %v605 = vand.u32 %v604, 127
      %vm607 = vcmp.lt.s32.totalorder %v605, 81
      %v608 = vsel %vm607, %v602, %v10
      %s609 = scalar_lea.vmem [#allocation7], 64
      %v610 = vpack.c.bf16 0.0, %v608
      %s612 = ssub.s32 16, 1
      %613 = vst [vmem:[%s609] sm:%s612] %v610
      %s614 = scalar_lea.vmem %s207, 68
      %s616 = sor.u32 255, 127
      %s617 = sand.u32 %s616, 85
      %s618 = sshrl.u32 %s617, 1
      %s619 = sor.u32 %s617, %s618
      %s620 = sand.u32 51, %s619
      %s621 = sshrl.u32 %s620, 2
      %s622 = sor.u32 %s620, %s621
      %s623 = sand.u32 15, %s622
      %v624 = vld [vmem:[%s614] sm:%s623]
      %v625 = vunpack.c.l.bf16 %v624
      %v626 = vunpack.c.h.bf16 %v624
      %v627 = vlaneseq
      %v628 = vand.u32 %v627, 127
      %vm630 = vcmp.lt.s32.totalorder %v628, 81
      %v631 = vsel %vm630, %v625, %v10
      %s632 = scalar_lea.vmem [#allocation7], 68
      %v633 = vpack.c.bf16 0.0, %v631
      %s635 = ssub.s32 16, 1
      %636 = vst [vmem:[%s632] sm:%s635] %v633
      %s637 = scalar_lea.vmem %s207, 72
      %s639 = sor.u32 255, 127
      %s640 = sand.u32 %s639, 85
      %s641 = sshrl.u32 %s640, 1
      %s642 = sor.u32 %s640, %s641
      %s643 = sand.u32 51, %s642
      %s644 = sshrl.u32 %s643, 2
      %s645 = sor.u32 %s643, %s644
      %s646 = sand.u32 15, %s645
      %v647 = vld [vmem:[%s637] sm:%s646]
      %v648 = vunpack.c.l.bf16 %v647
      %v649 = vunpack.c.h.bf16 %v647
      %v650 = vlaneseq
      %v651 = vand.u32 %v650, 127
      %vm653 = vcmp.lt.s32.totalorder %v651, 81
      %v654 = vsel %vm653, %v648, %v10
      %s655 = scalar_lea.vmem [#allocation7], 72
      %v656 = vpack.c.bf16 0.0, %v654
      %s658 = ssub.s32 16, 1
      %659 = vst [vmem:[%s655] sm:%s658] %v656
      %s660 = scalar_lea.vmem %s207, 76
      %s662 = sor.u32 255, 127
      %s663 = sand.u32 %s662, 85
      %s664 = sshrl.u32 %s663, 1
      %s665 = sor.u32 %s663, %s664
      %s666 = sand.u32 51, %s665
      %s667 = sshrl.u32 %s666, 2
      %s668 = sor.u32 %s666, %s667
      %s669 = sand.u32 15, %s668
      %v670 = vld [vmem:[%s660] sm:%s669]
      %v671 = vunpack.c.l.bf16 %v670
      %v672 = vunpack.c.h.bf16 %v670
      %v673 = vlaneseq
      %v674 = vand.u32 %v673, 127
      %vm676 = vcmp.lt.s32.totalorder %v674, 81
      %v677 = vsel %vm676, %v671, %v10
      %s678 = scalar_lea.vmem [#allocation7], 76
      %v679 = vpack.c.bf16 0.0, %v677
      %s681 = ssub.s32 16, 1
      %682 = vst [vmem:[%s678] sm:%s681] %v679
      %s683 = scalar_lea.vmem %s207, 80
      %s685 = sor.u32 255, 127
      %s686 = sand.u32 %s685, 85
      %s687 = sshrl.u32 %s686, 1
      %s688 = sor.u32 %s686, %s687
      %s689 = sand.u32 51, %s688
      %s690 = sshrl.u32 %s689, 2
      %s691 = sor.u32 %s689, %s690
      %s692 = sand.u32 15, %s691
      %v693 = vld [vmem:[%s683] sm:%s692]
      %v694 = vunpack.c.l.bf16 %v693
      %v695 = vunpack.c.h.bf16 %v693
      %v696 = vlaneseq
      %v697 = vand.u32 %v696, 127
      %vm699 = vcmp.lt.s32.totalorder %v697, 81
      %v700 = vsel %vm699, %v694, %v10
      %s701 = scalar_lea.vmem [#allocation7], 80
      %v702 = vpack.c.bf16 0.0, %v700
      %s704 = ssub.s32 16, 1
      %705 = vst [vmem:[%s701] sm:%s704] %v702
      %s706 = scalar_lea.vmem %s207, 84
      %s708 = sor.u32 255, 127
      %s709 = sand.u32 %s708, 85
      %s710 = sshrl.u32 %s709, 1
      %s711 = sor.u32 %s709, %s710
      %s712 = sand.u32 51, %s711
      %s713 = sshrl.u32 %s712, 2
      %s714 = sor.u32 %s712, %s713
      %s715 = sand.u32 15, %s714
      %v716 = vld [vmem:[%s706] sm:%s715]
      %v717 = vunpack.c.l.bf16 %v716
      %v718 = vunpack.c.h.bf16 %v716
      %v719 = vlaneseq
      %v720 = vand.u32 %v719, 127
      %vm722 = vcmp.lt.s32.totalorder %v720, 81
      %v723 = vsel %vm722, %v717, %v10
      %s724 = scalar_lea.vmem [#allocation7], 84
      %v725 = vpack.c.bf16 0.0, %v723
      %s727 = ssub.s32 16, 1
      %728 = vst [vmem:[%s724] sm:%s727] %v725
      %s729 = scalar_lea.vmem %s207, 88
      %s731 = sor.u32 255, 127
      %s732 = sand.u32 %s731, 85
      %s733 = sshrl.u32 %s732, 1
      %s734 = sor.u32 %s732, %s733
      %s735 = sand.u32 51, %s734
      %s736 = sshrl.u32 %s735, 2
      %s737 = sor.u32 %s735, %s736
      %s738 = sand.u32 15, %s737
      %v739 = vld [vmem:[%s729] sm:%s738]
      %v740 = vunpack.c.l.bf16 %v739
      %v741 = vunpack.c.h.bf16 %v739
      %v742 = vlaneseq
      %v743 = vand.u32 %v742, 127
      %vm745 = vcmp.lt.s32.totalorder %v743, 81
      %v746 = vsel %vm745, %v740, %v10
      %s747 = scalar_lea.vmem [#allocation7], 88
      %v748 = vpack.c.bf16 0.0, %v746
      %s750 = ssub.s32 16, 1
      %751 = vst [vmem:[%s747] sm:%s750] %v748
      %s752 = scalar_lea.vmem %s207, 92
      %s754 = sor.u32 255, 127
      %s755 = sand.u32 %s754, 85
      %s756 = sshrl.u32 %s755, 1
      %s757 = sor.u32 %s755, %s756
      %s758 = sand.u32 51, %s757
      %s759 = sshrl.u32 %s758, 2
      %s760 = sor.u32 %s758, %s759
      %s761 = sand.u32 15, %s760
      %v762 = vld [vmem:[%s752] sm:%s761]
      %v763 = vunpack.c.l.bf16 %v762
      %v764 = vunpack.c.h.bf16 %v762
      %v765 = vlaneseq
      %v766 = vand.u32 %v765, 127
      %vm768 = vcmp.lt.s32.totalorder %v766, 81
      %v769 = vsel %vm768, %v763, %v10
      %s770 = scalar_lea.vmem [#allocation7], 92
      %v771 = vpack.c.bf16 0.0, %v769
      %s773 = ssub.s32 16, 1
      %774 = vst [vmem:[%s770] sm:%s773] %v771
      %s775 = scalar_lea.vmem %s207, 96
      %s777 = sor.u32 255, 127
      %s778 = sand.u32 %s777, 85
      %s779 = sshrl.u32 %s778, 1
      %s780 = sor.u32 %s778, %s779
      %s781 = sand.u32 51, %s780
      %s782 = sshrl.u32 %s781, 2
      %s783 = sor.u32 %s781, %s782
      %s784 = sand.u32 15, %s783
      %v785 = vld [vmem:[%s775] sm:%s784]
      %v786 = vunpack.c.l.bf16 %v785
      %v787 = vunpack.c.h.bf16 %v785
      %v788 = vlaneseq
      %v789 = vand.u32 %v788, 127
      %vm791 = vcmp.lt.s32.totalorder %v789, 81
      %v792 = vsel %vm791, %v786, %v10
      %s793 = scalar_lea.vmem [#allocation7], 96
      %v794 = vpack.c.bf16 0.0, %v792
      %s796 = ssub.s32 16, 1
      %797 = vst [vmem:[%s793] sm:%s796] %v794
      %s798 = scalar_lea.vmem %s207, 100
      %s800 = sor.u32 255, 127
      %s801 = sand.u32 %s800, 85
      %s802 = sshrl.u32 %s801, 1
      %s803 = sor.u32 %s801, %s802
      %s804 = sand.u32 51, %s803
      %s805 = sshrl.u32 %s804, 2
      %s806 = sor.u32 %s804, %s805
      %s807 = sand.u32 15, %s806
      %v808 = vld [vmem:[%s798] sm:%s807]
      %v809 = vunpack.c.l.bf16 %v808
      %v810 = vunpack.c.h.bf16 %v808
      %v811 = vlaneseq
      %v812 = vand.u32 %v811, 127
      %vm814 = vcmp.lt.s32.totalorder %v812, 81
      %v815 = vsel %vm814, %v809, %v10
      %s816 = scalar_lea.vmem [#allocation7], 100
      %v817 = vpack.c.bf16 0.0, %v815
      %s819 = ssub.s32 16, 1
      %820 = vst [vmem:[%s816] sm:%s819] %v817
      %s821 = scalar_lea.vmem %s207, 104
      %s823 = sor.u32 255, 127
      %s824 = sand.u32 %s823, 85
      %s825 = sshrl.u32 %s824, 1
      %s826 = sor.u32 %s824, %s825
      %s827 = sand.u32 51, %s826
      %s828 = sshrl.u32 %s827, 2
      %s829 = sor.u32 %s827, %s828
      %s830 = sand.u32 15, %s829
      %v831 = vld [vmem:[%s821] sm:%s830]
      %v832 = vunpack.c.l.bf16 %v831
      %v833 = vunpack.c.h.bf16 %v831
      %v834 = vlaneseq
      %v835 = vand.u32 %v834, 127
      %vm837 = vcmp.lt.s32.totalorder %v835, 81
      %v838 = vsel %vm837, %v832, %v10
      %s839 = scalar_lea.vmem [#allocation7], 104
      %v840 = vpack.c.bf16 0.0, %v838
      %s842 = ssub.s32 16, 1
      %843 = vst [vmem:[%s839] sm:%s842] %v840
      %s844 = scalar_lea.vmem %s207, 108
      %s846 = sor.u32 255, 127
      %s847 = sand.u32 %s846, 85
      %s848 = sshrl.u32 %s847, 1
      %s849 = sor.u32 %s847, %s848
      %s850 = sand.u32 51, %s849
      %s851 = sshrl.u32 %s850, 2
      %s852 = sor.u32 %s850, %s851
      %s853 = sand.u32 15, %s852
      %v854 = vld [vmem:[%s844] sm:%s853]
      %v855 = vunpack.c.l.bf16 %v854
      %v856 = vunpack.c.h.bf16 %v854
      %v857 = vlaneseq
      %v858 = vand.u32 %v857, 127
      %vm860 = vcmp.lt.s32.totalorder %v858, 81
      %v861 = vsel %vm860, %v855, %v10
      %s862 = scalar_lea.vmem [#allocation7], 108
      %v863 = vpack.c.bf16 0.0, %v861
      %s865 = ssub.s32 16, 1
      %866 = vst [vmem:[%s862] sm:%s865] %v863
      %s867 = scalar_lea.vmem %s207, 112
      %s869 = sor.u32 255, 127
      %s870 = sand.u32 %s869, 85
      %s871 = sshrl.u32 %s870, 1
      %s872 = sor.u32 %s870, %s871
      %s873 = sand.u32 51, %s872
      %s874 = sshrl.u32 %s873, 2
      %s875 = sor.u32 %s873, %s874
      %s876 = sand.u32 15, %s875
      %v877 = vld [vmem:[%s867] sm:%s876]
      %v878 = vunpack.c.l.bf16 %v877
      %v879 = vunpack.c.h.bf16 %v877
      %v880 = vlaneseq
      %v881 = vand.u32 %v880, 127
      %vm883 = vcmp.lt.s32.totalorder %v881, 81
      %v884 = vsel %vm883, %v878, %v10
      %s885 = scalar_lea.vmem [#allocation7], 112
      %v886 = vpack.c.bf16 0.0, %v884
      %s888 = ssub.s32 16, 1
      %889 = vst [vmem:[%s885] sm:%s888] %v886
      %s890 = scalar_lea.vmem %s207, 116
      %s892 = sor.u32 255, 127
      %s893 = sand.u32 %s892, 85
      %s894 = sshrl.u32 %s893, 1
      %s895 = sor.u32 %s893, %s894
      %s896 = sand.u32 51, %s895
      %s897 = sshrl.u32 %s896, 2
      %s898 = sor.u32 %s896, %s897
      %s899 = sand.u32 15, %s898
      %v900 = vld [vmem:[%s890] sm:%s899]
      %v901 = vunpack.c.l.bf16 %v900
      %v902 = vunpack.c.h.bf16 %v900
      %v903 = vlaneseq
      %v904 = vand.u32 %v903, 127
      %vm906 = vcmp.lt.s32.totalorder %v904, 81
      %v907 = vsel %vm906, %v901, %v10
      %s908 = scalar_lea.vmem [#allocation7], 116
      %v909 = vpack.c.bf16 0.0, %v907
      %s911 = ssub.s32 16, 1
      %912 = vst [vmem:[%s908] sm:%s911] %v909
      %s913 = scalar_lea.vmem %s207, 120
      %s915 = sor.u32 255, 127
      %s916 = sand.u32 %s915, 85
      %s917 = sshrl.u32 %s916, 1
      %s918 = sor.u32 %s916, %s917
      %s919 = sand.u32 51, %s918
      %s920 = sshrl.u32 %s919, 2
      %s921 = sor.u32 %s919, %s920
      %s922 = sand.u32 15, %s921
      %v923 = vld [vmem:[%s913] sm:%s922]
      %v924 = vunpack.c.l.bf16 %v923
      %v925 = vunpack.c.h.bf16 %v923
      %v926 = vlaneseq
      %v927 = vand.u32 %v926, 127
      %vm929 = vcmp.lt.s32.totalorder %v927, 81
      %v930 = vsel %vm929, %v924, %v10
      %s931 = scalar_lea.vmem [#allocation7], 120
      %v932 = vpack.c.bf16 0.0, %v930
      %s934 = ssub.s32 16, 1
      %935 = vst [vmem:[%s931] sm:%s934] %v932
      %s936 = scalar_lea.vmem %s207, 124
      %s938 = sor.u32 255, 127
      %s939 = sand.u32 %s938, 85
      %s940 = sshrl.u32 %s939, 1
      %s941 = sor.u32 %s939, %s940
      %s942 = sand.u32 51, %s941
      %s943 = sshrl.u32 %s942, 2
      %s944 = sor.u32 %s942, %s943
      %s945 = sand.u32 15, %s944
      %v946 = vld [vmem:[%s936] sm:%s945]
      %v947 = vunpack.c.l.bf16 %v946
      %v948 = vunpack.c.h.bf16 %v946
      %v949 = vlaneseq
      %v950 = vand.u32 %v949, 127
      %vm952 = vcmp.lt.s32.totalorder %v950, 81
      %v953 = vsel %vm952, %v947, %v10
      %s954 = scalar_lea.vmem [#allocation7], 124
      %v955 = vpack.c.bf16 0.0, %v953
      %s957 = ssub.s32 16, 1
      %958 = vst [vmem:[%s954] sm:%s957] %v955
      %v959 = vld [vmem:[%s213] sm:$0xff]
      %v960 = vld [vmem:[%s213 + $0x8] sm:$0xff]
      %v961 = vld [vmem:[%s213 + $0x10] sm:$0xff]
      %v962 = vld [vmem:[%s213 + $0x18] sm:$0xff]
      %v963 = vld [vmem:[%s213 + $0x20] sm:$0xff]
      %v964 = vld [vmem:[%s213 + $0x28] sm:$0xff]
      %v965 = vld [vmem:[%s213 + $0x30] sm:$0xff]
      %v966 = vld [vmem:[%s213 + $0x38] sm:$0xff]
      %v967 = vld [vmem:[%s213 + $0x40] sm:$0xff]
      %v968 = vld [vmem:[%s213 + $0x48] sm:$0xff]
      %v969 = vld [vmem:[%s213 + $0x50] sm:$0xff]
      %v970 = vld [vmem:[%s213 + $0x58] sm:$0xff]
      %v971 = vld [vmem:[%s213 + $0x60] sm:$0xff]
      %v972 = vld [vmem:[%s213 + $0x68] sm:$0xff]
      %v973 = vld [vmem:[%s213 + $0x70] sm:$0xff]
      %v974 = vld [vmem:[%s213 + $0x78] sm:$0xff]
      %v975 = vld [vmem:[#allocation7] sm:$0xf]
      %v976 = vld [vmem:[#allocation7 + $0x4] sm:$0xf]
      %v977 = vld [vmem:[#allocation7 + $0x8] sm:$0xf]
      %v978 = vld [vmem:[#allocation7 + $0xc] sm:$0xf]
      %v979 = vld [vmem:[#allocation7 + $0x10] sm:$0xf]
      %v980 = vld [vmem:[#allocation7 + $0x14] sm:$0xf]
      %v981 = vld [vmem:[#allocation7 + $0x18] sm:$0xf]
      %v982 = vld [vmem:[#allocation7 + $0x1c] sm:$0xf]
      %v983 = vld [vmem:[#allocation7 + $0x20] sm:$0xf]
      %v984 = vld [vmem:[#allocation7 + $0x24] sm:$0xf]
      %v985 = vld [vmem:[#allocation7 + $0x28] sm:$0xf]
      %v986 = vld [vmem:[#allocation7 + $0x2c] sm:$0xf]
      %v987 = vld [vmem:[#allocation7 + $0x30] sm:$0xf]
      %v988 = vld [vmem:[#allocation7 + $0x34] sm:$0xf]
      %v989 = vld [vmem:[#allocation7 + $0x38] sm:$0xf]
      %v990 = vld [vmem:[#allocation7 + $0x3c] sm:$0xf]
      %v991 = vld [vmem:[#allocation7 + $0x40] sm:$0xf]
      %v992 = vld [vmem:[#allocation7 + $0x44] sm:$0xf]
      %v993 = vld [vmem:[#allocation7 + $0x48] sm:$0xf]
      %v994 = vld [vmem:[#allocation7 + $0x4c] sm:$0xf]
      %v995 = vld [vmem:[#allocation7 + $0x50] sm:$0xf]
      %v996 = vld [vmem:[#allocation7 + $0x54] sm:$0xf]
      %v997 = vld [vmem:[#allocation7 + $0x58] sm:$0xf]
      %v998 = vld [vmem:[#allocation7 + $0x5c] sm:$0xf]
      %v999 = vld [vmem:[#allocation7 + $0x60] sm:$0xf]
      %v1000 = vld [vmem:[#allocation7 + $0x64] sm:$0xf]
      %v1001 = vld [vmem:[#allocation7 + $0x68] sm:$0xf]
      %v1002 = vld [vmem:[#allocation7 + $0x6c] sm:$0xf]
      %v1003 = vld [vmem:[#allocation7 + $0x70] sm:$0xf]
      %v1004 = vld [vmem:[#allocation7 + $0x74] sm:$0xf]
      %v1005 = vld [vmem:[#allocation7 + $0x78] sm:$0xf]
      %v1006 = vld [vmem:[#allocation7 + $0x7c] sm:$0xf]
      %s1007 = scalar_lea.vmem %s213, 128
      %v1008 = vld [vmem:[%s1007] sm:$0xff]
      %v1009 = vld [vmem:[%s1007 + $0x8] sm:$0xff]
      %v1010 = vld [vmem:[%s1007 + $0x10] sm:$0xff]
      %v1011 = vld [vmem:[%s1007 + $0x18] sm:$0xff]
      %v1012 = vld [vmem:[%s1007 + $0x20] sm:$0xff]
      %v1013 = vld [vmem:[%s1007 + $0x28] sm:$0xff]
      %v1014 = vld [vmem:[%s1007 + $0x30] sm:$0xff]
      %v1015 = vld [vmem:[%s1007 + $0x38] sm:$0xff]
      %v1016 = vld [vmem:[%s1007 + $0x40] sm:$0xff]
      %v1017 = vld [vmem:[%s1007 + $0x48] sm:$0xff]
      %v1018 = vld [vmem:[%s1007 + $0x50] sm:$0xff]
      %v1019 = vld [vmem:[%s1007 + $0x58] sm:$0xff]
      %v1020 = vld [vmem:[%s1007 + $0x60] sm:$0xff]
      %v1021 = vld [vmem:[%s1007 + $0x68] sm:$0xff]
      %v1022 = vld [vmem:[%s1007 + $0x70] sm:$0xff]
      %v1023 = vld [vmem:[%s1007 + $0x78] sm:$0xff]
      %v1040 = vunpack.c.l.b16 %v1008
      %v1041 = vunpack.c.h.b16 %v1008
      %v1042 = vunpack.c.l.b16 %v1009
      %v1043 = vunpack.c.h.b16 %v1009
      %v1044 = vunpack.c.l.b16 %v1010
      %v1045 = vunpack.c.h.b16 %v1010
      %v1046 = vunpack.c.l.b16 %v1011
      %v1047 = vunpack.c.h.b16 %v1011
      %v1048 = vunpack.c.l.b16 %v1012
      %v1049 = vunpack.c.h.b16 %v1012
      %v1050 = vunpack.c.l.b16 %v1013
      %v1051 = vunpack.c.h.b16 %v1013
      %v1052 = vunpack.c.l.b16 %v1014
      %v1053 = vunpack.c.h.b16 %v1014
      %v1054 = vunpack.c.l.b16 %v1015
      %v1055 = vunpack.c.h.b16 %v1015
      %v1056 = vunpack.c.l.b16 %v1016
      %v1057 = vunpack.c.h.b16 %v1016
      %v1058 = vunpack.c.l.b16 %v1017
      %v1059 = vunpack.c.h.b16 %v1017
      %v1060 = vunpack.c.l.b16 %v1018
      %v1061 = vunpack.c.h.b16 %v1018
      %v1062 = vunpack.c.l.b16 %v1019
      %v1063 = vunpack.c.h.b16 %v1019
      %v1064 = vunpack.c.l.b16 %v1020
      %v1065 = vunpack.c.h.b16 %v1020
      %v1066 = vunpack.c.l.b16 %v1021
      %v1067 = vunpack.c.h.b16 %v1021
      %v1068 = vunpack.c.l.b16 %v1022
      %v1069 = vunpack.c.h.b16 %v1022
      %v1070 = vunpack.c.l.b16 %v1023
      %v1071 = vunpack.c.h.b16 %v1023
      %v1072 = vpack.c.b16 %v1042, %v1040
      %v1073 = vpack.c.b16 %v1043, %v1041
      %v1074 = vpack.c.b16 %v1046, %v1044
      %v1075 = vpack.c.b16 %v1047, %v1045
      %v1076 = vpack.c.b16 %v1050, %v1048
      %v1077 = vpack.c.b16 %v1051, %v1049
      %v1078 = vpack.c.b16 %v1054, %v1052
      %v1079 = vpack.c.b16 %v1055, %v1053
      %v1080 = vpack.c.b16 %v1058, %v1056
      %v1081 = vpack.c.b16 %v1059, %v1057
      %v1082 = vpack.c.b16 %v1062, %v1060
      %v1083 = vpack.c.b16 %v1063, %v1061
      %v1084 = vpack.c.b16 %v1066, %v1064
      %v1085 = vpack.c.b16 %v1067, %v1065
      %v1086 = vpack.c.b16 %v1070, %v1068
      %v1087 = vpack.c.b16 %v1071, %v1069
      %v1136 = vunpack.c.l.b16 %v975
      %v1137 = vunpack.c.l.b16 %v976
      %v1138 = vunpack.c.l.b16 %v977
      %v1139 = vunpack.c.l.b16 %v978
      %v1140 = vunpack.c.l.b16 %v979
      %v1141 = vunpack.c.l.b16 %v980
      %v1142 = vunpack.c.l.b16 %v981
      %v1143 = vunpack.c.l.b16 %v982
      %v1144 = vunpack.c.l.b16 %v983
      %v1145 = vunpack.c.l.b16 %v984
      %v1146 = vunpack.c.l.b16 %v985
      %v1147 = vunpack.c.l.b16 %v986
      %v1148 = vunpack.c.l.b16 %v987
      %v1149 = vunpack.c.l.b16 %v988
      %v1150 = vunpack.c.l.b16 %v989
      %v1151 = vunpack.c.l.b16 %v990
      %v1152 = vunpack.c.l.b16 %v991
      %v1153 = vunpack.c.l.b16 %v992
      %v1154 = vunpack.c.l.b16 %v993
      %v1155 = vunpack.c.l.b16 %v994
      %v1156 = vunpack.c.l.b16 %v995
      %v1157 = vunpack.c.l.b16 %v996
      %v1158 = vunpack.c.l.b16 %v997
      %v1159 = vunpack.c.l.b16 %v998
      %v1160 = vunpack.c.l.b16 %v999
      %v1161 = vunpack.c.l.b16 %v1000
      %v1162 = vunpack.c.l.b16 %v1001
      %v1163 = vunpack.c.l.b16 %v1002
      %v1164 = vunpack.c.l.b16 %v1003
      %v1165 = vunpack.c.l.b16 %v1004
      %v1166 = vunpack.c.l.b16 %v1005
      %v1167 = vunpack.c.l.b16 %v1006
      %v1168 = vpack.c.b16 %v1137, %v1136
      %v1169 = vpack.c.b16 %v1139, %v1138
      %v1170 = vpack.c.b16 %v1141, %v1140
      %v1171 = vpack.c.b16 %v1143, %v1142
      %v1172 = vpack.c.b16 %v1145, %v1144
      %v1173 = vpack.c.b16 %v1147, %v1146
      %v1174 = vpack.c.b16 %v1149, %v1148
      %v1175 = vpack.c.b16 %v1151, %v1150
      %v1176 = vpack.c.b16 %v1153, %v1152
      %v1177 = vpack.c.b16 %v1155, %v1154
      %v1178 = vpack.c.b16 %v1157, %v1156
      %v1179 = vpack.c.b16 %v1159, %v1158
      %v1180 = vpack.c.b16 %v1161, %v1160
      %v1181 = vpack.c.b16 %v1163, %v1162
      %v1182 = vpack.c.b16 %v1165, %v1164
      %v1183 = vpack.c.b16 %v1167, %v1166
      %1200 = vmatpush.bf16.msra.mxu0 %v1175
      %1201 = vmatpush.bf16.msra.mxu0 %v1174
      %1202 = vmatpush.bf16.msra.mxu0 %v1173
      %1203 = vmatpush.bf16.msra.mxu0 %v1172
      %1204 = vmatpush.bf16.msra.mxu0 %v1171
      %1205 = vmatpush.bf16.msra.mxu0 %v1170
      %1206 = vmatpush.bf16.msra.mxu0 %v1169
      %1207 = vmatpush.bf16.msra.mxu0 %v1168
      %1208 = vmatmul.bf16.gmra.mxu0 %v1072
      %v1209 = vpop.f32.mrf.mxu0
      %v1210 = vadd.f32 0.0, %v1209
      %v1211 = vpop.f32.mrf.mxu0
      %v1212 = vadd.f32 0.0, %v1211
      %1213 = vmatmul.bf16.gmra.mxu0 %v1074
      %v1214 = vpop.f32.mrf.mxu0
      %v1215 = vadd.f32 0.0, %v1214
      %v1216 = vpop.f32.mrf.mxu0
      %v1217 = vadd.f32 0.0, %v1216
      %1218 = vmatmul.bf16.gmra.mxu0 %v1076
      %v1219 = vpop.f32.mrf.mxu0
      %v1220 = vadd.f32 0.0, %v1219
      %v1221 = vpop.f32.mrf.mxu0
      %v1222 = vadd.f32 0.0, %v1221
      %1223 = vmatmul.bf16.gmra.mxu0 %v1078
      %v1224 = vpop.f32.mrf.mxu0
      %v1225 = vadd.f32 0.0, %v1224
      %v1226 = vpop.f32.mrf.mxu0
      %v1227 = vadd.f32 0.0, %v1226
      %1228 = vmatmul.bf16.gmra.mxu0 %v1080
      %v1229 = vpop.f32.mrf.mxu0
      %v1230 = vadd.f32 0.0, %v1229
      %v1231 = vpop.f32.mrf.mxu0
      %v1232 = vadd.f32 0.0, %v1231
      %1233 = vmatmul.bf16.gmra.mxu0 %v1082
      %v1234 = vpop.f32.mrf.mxu0
      %v1235 = vadd.f32 0.0, %v1234
      %v1236 = vpop.f32.mrf.mxu0
      %v1237 = vadd.f32 0.0, %v1236
      %1238 = vmatmul.bf16.gmra.mxu0 %v1084
      %v1239 = vpop.f32.mrf.mxu0
      %v1240 = vadd.f32 0.0, %v1239
      %v1241 = vpop.f32.mrf.mxu0
      %v1242 = vadd.f32 0.0, %v1241
      %1243 = vmatmul.bf16.gmra.mxu0 %v1086
      %v1244 = vpop.f32.mrf.mxu0
      %v1245 = vadd.f32 0.0, %v1244
      %v1246 = vpop.f32.mrf.mxu0
      %v1247 = vadd.f32 0.0, %v1246
      %1248 = vdwg.mxu0
      %1249 = vmatpush.bf16.msra.mxu0 %v1183
      %1250 = vmatpush.bf16.msra.mxu0 %v1182
      %1251 = vmatpush.bf16.msra.mxu0 %v1181
      %1252 = vmatpush.bf16.msra.mxu0 %v1180
      %1253 = vmatpush.bf16.msra.mxu0 %v1179
      %1254 = vmatpush.bf16.msra.mxu0 %v1178
      %1255 = vmatpush.bf16.msra.mxu0 %v1177
      %1256 = vmatpush.bf16.msra.mxu0 %v1176
      %1257 = vmatmul.bf16.gmra.mxu0 %v1073
      %v1258 = vpop.f32.mrf.mxu0
      %v1259 = vadd.f32 %v1210, %v1258
      %v1260 = vpop.f32.mrf.mxu0
      %v1261 = vadd.f32 %v1212, %v1260
      %1262 = vmatmul.bf16.gmra.mxu0 %v1075
      %v1263 = vpop.f32.mrf.mxu0
      %v1264 = vadd.f32 %v1215, %v1263
      %v1265 = vpop.f32.mrf.mxu0
      %v1266 = vadd.f32 %v1217, %v1265
      %1267 = vmatmul.bf16.gmra.mxu0 %v1077
      %v1268 = vpop.f32.mrf.mxu0
      %v1269 = vadd.f32 %v1220, %v1268
      %v1270 = vpop.f32.mrf.mxu0
      %v1271 = vadd.f32 %v1222, %v1270
      %1272 = vmatmul.bf16.gmra.mxu0 %v1079
      %v1273 = vpop.f32.mrf.mxu0
      %v1274 = vadd.f32 %v1225, %v1273
      %v1275 = vpop.f32.mrf.mxu0
      %v1276 = vadd.f32 %v1227, %v1275
      %1277 = vmatmul.bf16.gmra.mxu0 %v1081
      %v1278 = vpop.f32.mrf.mxu0
      %v1279 = vadd.f32 %v1230, %v1278
      %v1280 = vpop.f32.mrf.mxu0
      %v1281 = vadd.f32 %v1232, %v1280
      %1282 = vmatmul.bf16.gmra.mxu0 %v1083
      %v1283 = vpop.f32.mrf.mxu0
      %v1284 = vadd.f32 %v1235, %v1283
      %v1285 = vpop.f32.mrf.mxu0
      %v1286 = vadd.f32 %v1237, %v1285
      %1287 = vmatmul.bf16.gmra.mxu0 %v1085
      %v1288 = vpop.f32.mrf.mxu0
      %v1289 = vadd.f32 %v1240, %v1288
      %v1290 = vpop.f32.mrf.mxu0
      %v1291 = vadd.f32 %v1242, %v1290
      %1292 = vmatmul.bf16.gmra.mxu0 %v1087
      %v1293 = vpop.f32.mrf.mxu0
      %v1294 = vadd.f32 %v1245, %v1293
      %v1295 = vpop.f32.mrf.mxu0
      %v1296 = vadd.f32 %v1247, %v1295
      %1297 = vdwg.mxu0
      %1298 = vrot.lane.b32.xlu0 %v1259, 127
      %v1299 = vpop.permute.xlu0 %1298
      %1300 = vrot.lane.b32.xlu0 %v1261, 127
      %v1301 = vpop.permute.xlu0 %1300
      %1302 = vrot.lane.b32.xlu0 %v1264, 127
      %v1303 = vpop.permute.xlu0 %1302
      %1304 = vrot.lane.b32.xlu0 %v1266, 127
      %v1305 = vpop.permute.xlu0 %1304
      %1306 = vrot.lane.b32.xlu0 %v1269, 127
      %v1307 = vpop.permute.xlu0 %1306
      %1308 = vrot.lane.b32.xlu0 %v1271, 127
      %v1309 = vpop.permute.xlu0 %1308
      %1310 = vrot.lane.b32.xlu0 %v1274, 127
      %v1311 = vpop.permute.xlu0 %1310
      %1312 = vrot.lane.b32.xlu0 %v1276, 127
      %v1313 = vpop.permute.xlu0 %1312
      %1314 = vrot.lane.b32.xlu0 %v1279, 127
      %v1315 = vpop.permute.xlu0 %1314
      %1316 = vrot.lane.b32.xlu0 %v1281, 127
      %v1317 = vpop.permute.xlu0 %1316
      %1318 = vrot.lane.b32.xlu0 %v1284, 127
      %v1319 = vpop.permute.xlu0 %1318
      %1320 = vrot.lane.b32.xlu0 %v1286, 127
      %v1321 = vpop.permute.xlu0 %1320
      %1322 = vrot.lane.b32.xlu0 %v1289, 127
      %v1323 = vpop.permute.xlu0 %1322
      %1324 = vrot.lane.b32.xlu0 %v1291, 127
      %v1325 = vpop.permute.xlu0 %1324
      %1326 = vrot.lane.b32.xlu0 %v1294, 127
      %v1327 = vpop.permute.xlu0 %1326
      %1328 = vrot.lane.b32.xlu0 %v1296, 127
      %v1329 = vpop.permute.xlu0 %1328
      %v1346 = vunpack.c.l.b16 %v959
      %v1347 = vunpack.c.h.b16 %v959
      %v1348 = vunpack.c.l.b16 %v960
      %v1349 = vunpack.c.h.b16 %v960
      %v1350 = vunpack.c.l.b16 %v961
      %v1351 = vunpack.c.h.b16 %v961
      %v1352 = vunpack.c.l.b16 %v962
      %v1353 = vunpack.c.h.b16 %v962
      %v1354 = vunpack.c.l.b16 %v963
      %v1355 = vunpack.c.h.b16 %v963
      %v1356 = vunpack.c.l.b16 %v964
      %v1357 = vunpack.c.h.b16 %v964
      %v1358 = vunpack.c.l.b16 %v965
      %v1359 = vunpack.c.h.b16 %v965
      %v1360 = vunpack.c.l.b16 %v966
      %v1361 = vunpack.c.h.b16 %v966
      %v1362 = vunpack.c.l.b16 %v967
      %v1363 = vunpack.c.h.b16 %v967
      %v1364 = vunpack.c.l.b16 %v968
      %v1365 = vunpack.c.h.b16 %v968
      %v1366 = vunpack.c.l.b16 %v969
      %v1367 = vunpack.c.h.b16 %v969
      %v1368 = vunpack.c.l.b16 %v970
      %v1369 = vunpack.c.h.b16 %v970
      %v1370 = vunpack.c.l.b16 %v971
      %v1371 = vunpack.c.h.b16 %v971
      %v1372 = vunpack.c.l.b16 %v972
      %v1373 = vunpack.c.h.b16 %v972
      %v1374 = vunpack.c.l.b16 %v973
      %v1375 = vunpack.c.h.b16 %v973
      %v1376 = vunpack.c.l.b16 %v974
      %v1377 = vunpack.c.h.b16 %v974
      %v1378 = vpack.c.b16 %v1348, %v1346
      %v1379 = vpack.c.b16 %v1349, %v1347
      %v1380 = vpack.c.b16 %v1352, %v1350
      %v1381 = vpack.c.b16 %v1353, %v1351
      %v1382 = vpack.c.b16 %v1356, %v1354
      %v1383 = vpack.c.b16 %v1357, %v1355
      %v1384 = vpack.c.b16 %v1360, %v1358
      %v1385 = vpack.c.b16 %v1361, %v1359
      %v1386 = vpack.c.b16 %v1364, %v1362
      %v1387 = vpack.c.b16 %v1365, %v1363
      %v1388 = vpack.c.b16 %v1368, %v1366
      %v1389 = vpack.c.b16 %v1369, %v1367
      %v1390 = vpack.c.b16 %v1372, %v1370
      %v1391 = vpack.c.b16 %v1373, %v1371
      %v1392 = vpack.c.b16 %v1376, %v1374
      %v1393 = vpack.c.b16 %v1377, %v1375
      %1410 = vmatpush.bf16.msra.mxu0 %v1175
      %1411 = vmatpush.bf16.msra.mxu0 %v1174
      %1412 = vmatpush.bf16.msra.mxu0 %v1173
      %1413 = vmatpush.bf16.msra.mxu0 %v1172
      %1414 = vmatpush.bf16.msra.mxu0 %v1171
      %1415 = vmatpush.bf16.msra.mxu0 %v1170
      %1416 = vmatpush.bf16.msra.mxu0 %v1169
      %1417 = vmatpush.bf16.msra.mxu0 %v1168
      %1418 = vmatmul.bf16.gmra.mxu0 %v1378
      %v1419 = vpop.f32.mrf.mxu0
      %v1420 = vadd.f32 %v1299, %v1419
      %v1421 = vpop.f32.mrf.mxu0
      %v1422 = vadd.f32 %v1301, %v1421
      %1423 = vmatmul.bf16.gmra.mxu0 %v1380
      %v1424 = vpop.f32.mrf.mxu0
      %v1425 = vadd.f32 %v1303, %v1424
      %v1426 = vpop.f32.mrf.mxu0
      %v1427 = vadd.f32 %v1305, %v1426
      %1428 = vmatmul.bf16.gmra.mxu0 %v1382
      %v1429 = vpop.f32.mrf.mxu0
      %v1430 = vadd.f32 %v1307, %v1429
      %v1431 = vpop.f32.mrf.mxu0
      %v1432 = vadd.f32 %v1309, %v1431
      %1433 = vmatmul.bf16.gmra.mxu0 %v1384
      %v1434 = vpop.f32.mrf.mxu0
      %v1435 = vadd.f32 %v1311, %v1434
      %v1436 = vpop.f32.mrf.mxu0
      %v1437 = vadd.f32 %v1313, %v1436
      %1438 = vmatmul.bf16.gmra.mxu0 %v1386
      %v1439 = vpop.f32.mrf.mxu0
      %v1440 = vadd.f32 %v1315, %v1439
      %v1441 = vpop.f32.mrf.mxu0
      %v1442 = vadd.f32 %v1317, %v1441
      %1443 = vmatmul.bf16.gmra.mxu0 %v1388
      %v1444 = vpop.f32.mrf.mxu0
      %v1445 = vadd.f32 %v1319, %v1444
      %v1446 = vpop.f32.mrf.mxu0
      %v1447 = vadd.f32 %v1321, %v1446
      %1448 = vmatmul.bf16.gmra.mxu0 %v1390
      %v1449 = vpop.f32.mrf.mxu0
      %v1450 = vadd.f32 %v1323, %v1449
      %v1451 = vpop.f32.mrf.mxu0
      %v1452 = vadd.f32 %v1325, %v1451
      %1453 = vmatmul.bf16.gmra.mxu0 %v1392
      %v1454 = vpop.f32.mrf.mxu0
      %v1455 = vadd.f32 %v1327, %v1454
      %v1456 = vpop.f32.mrf.mxu0
      %v1457 = vadd.f32 %v1329, %v1456
      %1458 = vdwg.mxu0
      %1459 = vmatpush.bf16.msra.mxu0 %v1183
      %1460 = vmatpush.bf16.msra.mxu0 %v1182
      %1461 = vmatpush.bf16.msra.mxu0 %v1181
      %1462 = vmatpush.bf16.msra.mxu0 %v1180
      %1463 = vmatpush.bf16.msra.mxu0 %v1179
      %1464 = vmatpush.bf16.msra.mxu0 %v1178
      %1465 = vmatpush.bf16.msra.mxu0 %v1177
      %1466 = vmatpush.bf16.msra.mxu0 %v1176
      %1467 = vmatmul.bf16.gmra.mxu0 %v1379
      %v1468 = vpop.f32.mrf.mxu0
      %v1469 = vadd.f32 %v1420, %v1468
      %v1470 = vpop.f32.mrf.mxu0
      %v1471 = vadd.f32 %v1422, %v1470
      %1472 = vmatmul.bf16.gmra.mxu0 %v1381
      %v1473 = vpop.f32.mrf.mxu0
      %v1474 = vadd.f32 %v1425, %v1473
      %v1475 = vpop.f32.mrf.mxu0
      %v1476 = vadd.f32 %v1427, %v1475
      %1477 = vmatmul.bf16.gmra.mxu0 %v1383
      %v1478 = vpop.f32.mrf.mxu0
      %v1479 = vadd.f32 %v1430, %v1478
      %v1480 = vpop.f32.mrf.mxu0
      %v1481 = vadd.f32 %v1432, %v1480
      %1482 = vmatmul.bf16.gmra.mxu0 %v1385
      %v1483 = vpop.f32.mrf.mxu0
      %v1484 = vadd.f32 %v1435, %v1483
      %v1485 = vpop.f32.mrf.mxu0
      %v1486 = vadd.f32 %v1437, %v1485
      %1487 = vmatmul.bf16.gmra.mxu0 %v1387
      %v1488 = vpop.f32.mrf.mxu0
      %v1489 = vadd.f32 %v1440, %v1488
      %v1490 = vpop.f32.mrf.mxu0
      %v1491 = vadd.f32 %v1442, %v1490
      %1492 = vmatmul.bf16.gmra.mxu0 %v1389
      %v1493 = vpop.f32.mrf.mxu0
      %v1494 = vadd.f32 %v1445, %v1493
      %v1495 = vpop.f32.mrf.mxu0
      %v1496 = vadd.f32 %v1447, %v1495
      %1497 = vmatmul.bf16.gmra.mxu0 %v1391
      %v1498 = vpop.f32.mrf.mxu0
      %v1499 = vadd.f32 %v1450, %v1498
      %v1500 = vpop.f32.mrf.mxu0
      %v1501 = vadd.f32 %v1452, %v1500
      %1502 = vmatmul.bf16.gmra.mxu0 %v1393
      %v1503 = vpop.f32.mrf.mxu0
      %v1504 = vadd.f32 %v1455, %v1503
      %v1505 = vpop.f32.mrf.mxu0
      %v1506 = vadd.f32 %v1457, %v1505
      %1507 = vdwg.mxu0
      %s1508 = scalar_lea.vmem %s213, 256
      %v1509 = vld [vmem:[%s1508] sm:$0xff]
      %v1510 = vld [vmem:[%s1508 + $0x8] sm:$0xff]
      %v1511 = vld [vmem:[%s1508 + $0x10] sm:$0xff]
      %v1512 = vld [vmem:[%s1508 + $0x18] sm:$0xff]
      %v1513 = vld [vmem:[%s1508 + $0x20] sm:$0xff]
      %v1514 = vld [vmem:[%s1508 + $0x28] sm:$0xff]
      %v1515 = vld [vmem:[%s1508 + $0x30] sm:$0xff]
      %v1516 = vld [vmem:[%s1508 + $0x38] sm:$0xff]
      %v1517 = vld [vmem:[%s1508 + $0x40] sm:$0xff]
      %v1518 = vld [vmem:[%s1508 + $0x48] sm:$0xff]
      %v1519 = vld [vmem:[%s1508 + $0x50] sm:$0xff]
      %v1520 = vld [vmem:[%s1508 + $0x58] sm:$0xff]
      %v1521 = vld [vmem:[%s1508 + $0x60] sm:$0xff]
      %v1522 = vld [vmem:[%s1508 + $0x68] sm:$0xff]
      %v1523 = vld [vmem:[%s1508 + $0x70] sm:$0xff]
      %v1524 = vld [vmem:[%s1508 + $0x78] sm:$0xff]
      %v1541 = vunpack.c.l.b16 %v1509
      %v1542 = vunpack.c.h.b16 %v1509
      %v1543 = vunpack.c.l.b16 %v1510
      %v1544 = vunpack.c.h.b16 %v1510
      %v1545 = vunpack.c.l.b16 %v1511
      %v1546 = vunpack.c.h.b16 %v1511
      %v1547 = vunpack.c.l.b16 %v1512
      %v1548 = vunpack.c.h.b16 %v1512
      %v1549 = vunpack.c.l.b16 %v1513
      %v1550 = vunpack.c.h.b16 %v1513
      %v1551 = vunpack.c.l.b16 %v1514
      %v1552 = vunpack.c.h.b16 %v1514
      %v1553 = vunpack.c.l.b16 %v1515
      %v1554 = vunpack.c.h.b16 %v1515
      %v1555 = vunpack.c.l.b16 %v1516
      %v1556 = vunpack.c.h.b16 %v1516
      %v1557 = vunpack.c.l.b16 %v1517
      %v1558 = vunpack.c.h.b16 %v1517
      %v1559 = vunpack.c.l.b16 %v1518
      %v1560 = vunpack.c.h.b16 %v1518
      %v1561 = vunpack.c.l.b16 %v1519
      %v1562 = vunpack.c.h.b16 %v1519
      %v1563 = vunpack.c.l.b16 %v1520
      %v1564 = vunpack.c.h.b16 %v1520
      %v1565 = vunpack.c.l.b16 %v1521
      %v1566 = vunpack.c.h.b16 %v1521
      %v1567 = vunpack.c.l.b16 %v1522
      %v1568 = vunpack.c.h.b16 %v1522
      %v1569 = vunpack.c.l.b16 %v1523
      %v1570 = vunpack.c.h.b16 %v1523
      %v1571 = vunpack.c.l.b16 %v1524
      %v1572 = vunpack.c.h.b16 %v1524
      %v1573 = vpack.c.b16 %v1543, %v1541
      %v1574 = vpack.c.b16 %v1544, %v1542
      %v1575 = vpack.c.b16 %v1547, %v1545
      %v1576 = vpack.c.b16 %v1548, %v1546
      %v1577 = vpack.c.b16 %v1551, %v1549
      %v1578 = vpack.c.b16 %v1552, %v1550
      %v1579 = vpack.c.b16 %v1555, %v1553
      %v1580 = vpack.c.b16 %v1556, %v1554
      %v1581 = vpack.c.b16 %v1559, %v1557
      %v1582 = vpack.c.b16 %v1560, %v1558
      %v1583 = vpack.c.b16 %v1563, %v1561
      %v1584 = vpack.c.b16 %v1564, %v1562
      %v1585 = vpack.c.b16 %v1567, %v1565
      %v1586 = vpack.c.b16 %v1568, %v1566
      %v1587 = vpack.c.b16 %v1571, %v1569
      %v1588 = vpack.c.b16 %v1572, %v1570
      %1605 = vmatpush.bf16.msra.mxu0 %v1175
      %1606 = vmatpush.bf16.msra.mxu0 %v1174
      %1607 = vmatpush.bf16.msra.mxu0 %v1173
      %1608 = vmatpush.bf16.msra.mxu0 %v1172
      %1609 = vmatpush.bf16.msra.mxu0 %v1171
      %1610 = vmatpush.bf16.msra.mxu0 %v1170
      %1611 = vmatpush.bf16.msra.mxu0 %v1169
      %1612 = vmatpush.bf16.msra.mxu0 %v1168
      %1613 = vmatmul.bf16.gmra.mxu0 %v1573
      %v1614 = vpop.f32.mrf.mxu0
      %v1615 = vadd.f32 0.0, %v1614
      %v1616 = vpop.f32.mrf.mxu0
      %v1617 = vadd.f32 0.0, %v1616
      %1618 = vmatmul.bf16.gmra.mxu0 %v1575
      %v1619 = vpop.f32.mrf.mxu0
      %v1620 = vadd.f32 0.0, %v1619
      %v1621 = vpop.f32.mrf.mxu0
      %v1622 = vadd.f32 0.0, %v1621
      %1623 = vmatmul.bf16.gmra.mxu0 %v1577
      %v1624 = vpop.f32.mrf.mxu0
      %v1625 = vadd.f32 0.0, %v1624
      %v1626 = vpop.f32.mrf.mxu0
      %v1627 = vadd.f32 0.0, %v1626
      %1628 = vmatmul.bf16.gmra.mxu0 %v1579
      %v1629 = vpop.f32.mrf.mxu0
      %v1630 = vadd.f32 0.0, %v1629
      %v1631 = vpop.f32.mrf.mxu0
      %v1632 = vadd.f32 0.0, %v1631
      %1633 = vmatmul.bf16.gmra.mxu0 %v1581
      %v1634 = vpop.f32.mrf.mxu0
      %v1635 = vadd.f32 0.0, %v1634
      %v1636 = vpop.f32.mrf.mxu0
      %v1637 = vadd.f32 0.0, %v1636
      %1638 = vmatmul.bf16.gmra.mxu0 %v1583
      %v1639 = vpop.f32.mrf.mxu0
      %v1640 = vadd.f32 0.0, %v1639
      %v1641 = vpop.f32.mrf.mxu0
      %v1642 = vadd.f32 0.0, %v1641
      %1643 = vmatmul.bf16.gmra.mxu0 %v1585
      %v1644 = vpop.f32.mrf.mxu0
      %v1645 = vadd.f32 0.0, %v1644
      %v1646 = vpop.f32.mrf.mxu0
      %v1647 = vadd.f32 0.0, %v1646
      %1648 = vmatmul.bf16.gmra.mxu0 %v1587
      %v1649 = vpop.f32.mrf.mxu0
      %v1650 = vadd.f32 0.0, %v1649
      %v1651 = vpop.f32.mrf.mxu0
      %v1652 = vadd.f32 0.0, %v1651
      %1653 = vdwg.mxu0
      %1654 = vmatpush.bf16.msra.mxu0 %v1183
      %1655 = vmatpush.bf16.msra.mxu0 %v1182
      %1656 = vmatpush.bf16.msra.mxu0 %v1181
      %1657 = vmatpush.bf16.msra.mxu0 %v1180
      %1658 = vmatpush.bf16.msra.mxu0 %v1179
      %1659 = vmatpush.bf16.msra.mxu0 %v1178
      %1660 = vmatpush.bf16.msra.mxu0 %v1177
      %1661 = vmatpush.bf16.msra.mxu0 %v1176
      %1662 = vmatmul.bf16.gmra.mxu0 %v1574
      %v1663 = vpop.f32.mrf.mxu0
      %v1664 = vadd.f32 %v1615, %v1663
      %v1665 = vpop.f32.mrf.mxu0
      %v1666 = vadd.f32 %v1617, %v1665
      %1667 = vmatmul.bf16.gmra.mxu0 %v1576
      %v1668 = vpop.f32.mrf.mxu0
      %v1669 = vadd.f32 %v1620, %v1668
      %v1670 = vpop.f32.mrf.mxu0
      %v1671 = vadd.f32 %v1622, %v1670
      %1672 = vmatmul.bf16.gmra.mxu0 %v1578
      %v1673 = vpop.f32.mrf.mxu0
      %v1674 = vadd.f32 %v1625, %v1673
      %v1675 = vpop.f32.mrf.mxu0
      %v1676 = vadd.f32 %v1627, %v1675
      %1677 = vmatmul.bf16.gmra.mxu0 %v1580
      %v1678 = vpop.f32.mrf.mxu0
      %v1679 = vadd.f32 %v1630, %v1678
      %v1680 = vpop.f32.mrf.mxu0
      %v1681 = vadd.f32 %v1632, %v1680
      %1682 = vmatmul.bf16.gmra.mxu0 %v1582
      %v1683 = vpop.f32.mrf.mxu0
      %v1684 = vadd.f32 %v1635, %v1683
      %v1685 = vpop.f32.mrf.mxu0
      %v1686 = vadd.f32 %v1637, %v1685
      %1687 = vmatmul.bf16.gmra.mxu0 %v1584
      %v1688 = vpop.f32.mrf.mxu0
      %v1689 = vadd.f32 %v1640, %v1688
      %v1690 = vpop.f32.mrf.mxu0
      %v1691 = vadd.f32 %v1642, %v1690
      %1692 = vmatmul.bf16.gmra.mxu0 %v1586
      %v1693 = vpop.f32.mrf.mxu0
      %v1694 = vadd.f32 %v1645, %v1693
      %v1695 = vpop.f32.mrf.mxu0
      %v1696 = vadd.f32 %v1647, %v1695
      %1697 = vmatmul.bf16.gmra.mxu0 %v1588
      %v1698 = vpop.f32.mrf.mxu0
      %v1699 = vadd.f32 %v1650, %v1698
      %v1700 = vpop.f32.mrf.mxu0
      %v1701 = vadd.f32 %v1652, %v1700
      %1702 = vdwg.mxu0
      %1703 = vrot.lane.b32.xlu0 %v1664, 119
      %v1704 = vpop.permute.xlu0 %1703
      %1705 = vrot.lane.b32.xlu0 %v1666, 119
      %v1706 = vpop.permute.xlu0 %1705
      %1707 = vrot.lane.b32.xlu0 %v1669, 119
      %v1708 = vpop.permute.xlu0 %1707
      %1709 = vrot.lane.b32.xlu0 %v1671, 119
      %v1710 = vpop.permute.xlu0 %1709
      %1711 = vrot.lane.b32.xlu0 %v1674, 119
      %v1712 = vpop.permute.xlu0 %1711
      %1713 = vrot.lane.b32.xlu0 %v1676, 119
      %v1714 = vpop.permute.xlu0 %1713
      %1715 = vrot.lane.b32.xlu0 %v1679, 119
      %v1716 = vpop.permute.xlu0 %1715
      %1717 = vrot.lane.b32.xlu0 %v1681, 119
      %v1718 = vpop.permute.xlu0 %1717
      %1719 = vrot.lane.b32.xlu0 %v1684, 119
      %v1720 = vpop.permute.xlu0 %1719
      %1721 = vrot.lane.b32.xlu0 %v1686, 119
      %v1722 = vpop.permute.xlu0 %1721
      %1723 = vrot.lane.b32.xlu0 %v1689, 119
      %v1724 = vpop.permute.xlu0 %1723
      %1725 = vrot.lane.b32.xlu0 %v1691, 119
      %v1726 = vpop.permute.xlu0 %1725
      %1727 = vrot.lane.b32.xlu0 %v1694, 119
      %v1728 = vpop.permute.xlu0 %1727
      %1729 = vrot.lane.b32.xlu0 %v1696, 119
      %v1730 = vpop.permute.xlu0 %1729
      %1731 = vrot.lane.b32.xlu0 %v1699, 119
      %v1732 = vpop.permute.xlu0 %1731
      %1733 = vrot.lane.b32.xlu0 %v1701, 119
      %v1734 = vpop.permute.xlu0 %1733
      %v1735 = vadd.f32 %v1469, %v1704
      %v1736 = vadd.f32 %v1471, %v1706
      %v1737 = vadd.f32 %v1474, %v1708
      %v1738 = vadd.f32 %v1476, %v1710
      %v1739 = vadd.f32 %v1479, %v1712
      %v1740 = vadd.f32 %v1481, %v1714
      %v1741 = vadd.f32 %v1484, %v1716
      %v1742 = vadd.f32 %v1486, %v1718
      %v1743 = vadd.f32 %v1489, %v1720
      %v1744 = vadd.f32 %v1491, %v1722
      %v1745 = vadd.f32 %v1494, %v1724
      %v1746 = vadd.f32 %v1496, %v1726
      %v1747 = vadd.f32 %v1499, %v1728
      %v1748 = vadd.f32 %v1501, %v1730
      %v1749 = vadd.f32 %v1504, %v1732
      %v1750 = vadd.f32 %v1506, %v1734
      %s1751 = scalar_lea.vmem %s213, 384
      %v1752 = vld [vmem:[%s1751] sm:$0xff]
      %v1753 = vld [vmem:[%s1751 + $0x8] sm:$0xff]
      %v1754 = vld [vmem:[%s1751 + $0x10] sm:$0xff]
      %v1755 = vld [vmem:[%s1751 + $0x18] sm:$0xff]
      %v1756 = vld [vmem:[%s1751 + $0x20] sm:$0xff]
      %v1757 = vld [vmem:[%s1751 + $0x28] sm:$0xff]
      %v1758 = vld [vmem:[%s1751 + $0x30] sm:$0xff]
      %v1759 = vld [vmem:[%s1751 + $0x38] sm:$0xff]
      %v1760 = vld [vmem:[%s1751 + $0x40] sm:$0xff]
      %v1761 = vld [vmem:[%s1751 + $0x48] sm:$0xff]
      %v1762 = vld [vmem:[%s1751 + $0x50] sm:$0xff]
      %v1763 = vld [vmem:[%s1751 + $0x58] sm:$0xff]
      %v1764 = vld [vmem:[%s1751 + $0x60] sm:$0xff]
      %v1765 = vld [vmem:[%s1751 + $0x68] sm:$0xff]
      %v1766 = vld [vmem:[%s1751 + $0x70] sm:$0xff]
      %v1767 = vld [vmem:[%s1751 + $0x78] sm:$0xff]
      %v1784 = vunpack.c.l.b16 %v1752
      %v1785 = vunpack.c.h.b16 %v1752
      %v1786 = vunpack.c.l.b16 %v1753
      %v1787 = vunpack.c.h.b16 %v1753
      %v1788 = vunpack.c.l.b16 %v1754
      %v1789 = vunpack.c.h.b16 %v1754
      %v1790 = vunpack.c.l.b16 %v1755
      %v1791 = vunpack.c.h.b16 %v1755
      %v1792 = vunpack.c.l.b16 %v1756
      %v1793 = vunpack.c.h.b16 %v1756
      %v1794 = vunpack.c.l.b16 %v1757
      %v1795 = vunpack.c.h.b16 %v1757
      %v1796 = vunpack.c.l.b16 %v1758
      %v1797 = vunpack.c.h.b16 %v1758
      %v1798 = vunpack.c.l.b16 %v1759
      %v1799 = vunpack.c.h.b16 %v1759
      %v1800 = vunpack.c.l.b16 %v1760
      %v1801 = vunpack.c.h.b16 %v1760
      %v1802 = vunpack.c.l.b16 %v1761
      %v1803 = vunpack.c.h.b16 %v1761
      %v1804 = vunpack.c.l.b16 %v1762
      %v1805 = vunpack.c.h.b16 %v1762
      %v1806 = vunpack.c.l.b16 %v1763
      %v1807 = vunpack.c.h.b16 %v1763
      %v1808 = vunpack.c.l.b16 %v1764
      %v1809 = vunpack.c.h.b16 %v1764
      %v1810 = vunpack.c.l.b16 %v1765
      %v1811 = vunpack.c.h.b16 %v1765
      %v1812 = vunpack.c.l.b16 %v1766
      %v1813 = vunpack.c.h.b16 %v1766
      %v1814 = vunpack.c.l.b16 %v1767
      %v1815 = vunpack.c.h.b16 %v1767
      %v1816 = vpack.c.b16 %v1786, %v1784
      %v1817 = vpack.c.b16 %v1787, %v1785
      %v1818 = vpack.c.b16 %v1790, %v1788
      %v1819 = vpack.c.b16 %v1791, %v1789
      %v1820 = vpack.c.b16 %v1794, %v1792
      %v1821 = vpack.c.b16 %v1795, %v1793
      %v1822 = vpack.c.b16 %v1798, %v1796
      %v1823 = vpack.c.b16 %v1799, %v1797
      %v1824 = vpack.c.b16 %v1802, %v1800
      %v1825 = vpack.c.b16 %v1803, %v1801
      %v1826 = vpack.c.b16 %v1806, %v1804
      %v1827 = vpack.c.b16 %v1807, %v1805
      %v1828 = vpack.c.b16 %v1810, %v1808
      %v1829 = vpack.c.b16 %v1811, %v1809
      %v1830 = vpack.c.b16 %v1814, %v1812
      %v1831 = vpack.c.b16 %v1815, %v1813
      %1848 = vmatpush.bf16.msra.mxu0 %v1175
      %1849 = vmatpush.bf16.msra.mxu0 %v1174
      %1850 = vmatpush.bf16.msra.mxu0 %v1173
      %1851 = vmatpush.bf16.msra.mxu0 %v1172
      %1852 = vmatpush.bf16.msra.mxu0 %v1171
      %1853 = vmatpush.bf16.msra.mxu0 %v1170
      %1854 = vmatpush.bf16.msra.mxu0 %v1169
      %1855 = vmatpush.bf16.msra.mxu0 %v1168
      %1856 = vmatmul.bf16.gmra.mxu0 %v1816
      %v1857 = vpop.f32.mrf.mxu0
      %v1858 = vadd.f32 0.0, %v1857
      %v1859 = vpop.f32.mrf.mxu0
      %v1860 = vadd.f32 0.0, %v1859
      %1861 = vmatmul.bf16.gmra.mxu0 %v1818
      %v1862 = vpop.f32.mrf.mxu0
      %v1863 = vadd.f32 0.0, %v1862
      %v1864 = vpop.f32.mrf.mxu0
      %v1865 = vadd.f32 0.0, %v1864
      %1866 = vmatmul.bf16.gmra.mxu0 %v1820
      %v1867 = vpop.f32.mrf.mxu0
      %v1868 = vadd.f32 0.0, %v1867
      %v1869 = vpop.f32.mrf.mxu0
      %v1870 = vadd.f32 0.0, %v1869
      %1871 = vmatmul.bf16.gmra.mxu0 %v1822
      %v1872 = vpop.f32.mrf.mxu0
      %v1873 = vadd.f32 0.0, %v1872
      %v1874 = vpop.f32.mrf.mxu0
      %v1875 = vadd.f32 0.0, %v1874
      %1876 = vmatmul.bf16.gmra.mxu0 %v1824
      %v1877 = vpop.f32.mrf.mxu0
      %v1878 = vadd.f32 0.0, %v1877
      %v1879 = vpop.f32.mrf.mxu0
      %v1880 = vadd.f32 0.0, %v1879
      %1881 = vmatmul.bf16.gmra.mxu0 %v1826
      %v1882 = vpop.f32.mrf.mxu0
      %v1883 = vadd.f32 0.0, %v1882
      %v1884 = vpop.f32.mrf.mxu0
      %v1885 = vadd.f32 0.0, %v1884
      %1886 = vmatmul.bf16.gmra.mxu0 %v1828
      %v1887 = vpop.f32.mrf.mxu0
      %v1888 = vadd.f32 0.0, %v1887
      %v1889 = vpop.f32.mrf.mxu0
      %v1890 = vadd.f32 0.0, %v1889
      %1891 = vmatmul.bf16.gmra.mxu0 %v1830
      %v1892 = vpop.f32.mrf.mxu0
      %v1893 = vadd.f32 0.0, %v1892
      %v1894 = vpop.f32.mrf.mxu0
      %v1895 = vadd.f32 0.0, %v1894
      %1896 = vdwg.mxu0
      %1897 = vmatpush.bf16.msra.mxu0 %v1183
      %1898 = vmatpush.bf16.msra.mxu0 %v1182
      %1899 = vmatpush.bf16.msra.mxu0 %v1181
      %1900 = vmatpush.bf16.msra.mxu0 %v1180
      %1901 = vmatpush.bf16.msra.mxu0 %v1179
      %1902 = vmatpush.bf16.msra.mxu0 %v1178
      %1903 = vmatpush.bf16.msra.mxu0 %v1177
      %1904 = vmatpush.bf16.msra.mxu0 %v1176
      %1905 = vmatmul.bf16.gmra.mxu0 %v1817
      %v1906 = vpop.f32.mrf.mxu0
      %v1907 = vadd.f32 %v1858, %v1906
      %v1908 = vpop.f32.mrf.mxu0
      %v1909 = vadd.f32 %v1860, %v1908
      %1910 = vmatmul.bf16.gmra.mxu0 %v1819
      %v1911 = vpop.f32.mrf.mxu0
      %v1912 = vadd.f32 %v1863, %v1911
      %v1913 = vpop.f32.mrf.mxu0
      %v1914 = vadd.f32 %v1865, %v1913
      %1915 = vmatmul.bf16.gmra.mxu0 %v1821
      %v1916 = vpop.f32.mrf.mxu0
      %v1917 = vadd.f32 %v1868, %v1916
      %v1918 = vpop.f32.mrf.mxu0
      %v1919 = vadd.f32 %v1870, %v1918
      %1920 = vmatmul.bf16.gmra.mxu0 %v1823
      %v1921 = vpop.f32.mrf.mxu0
      %v1922 = vadd.f32 %v1873, %v1921
      %v1923 = vpop.f32.mrf.mxu0
      %v1924 = vadd.f32 %v1875, %v1923
      %1925 = vmatmul.bf16.gmra.mxu0 %v1825
      %v1926 = vpop.f32.mrf.mxu0
      %v1927 = vadd.f32 %v1878, %v1926
      %v1928 = vpop.f32.mrf.mxu0
      %v1929 = vadd.f32 %v1880, %v1928
      %1930 = vmatmul.bf16.gmra.mxu0 %v1827
      %v1931 = vpop.f32.mrf.mxu0
      %v1932 = vadd.f32 %v1883, %v1931
      %v1933 = vpop.f32.mrf.mxu0
      %v1934 = vadd.f32 %v1885, %v1933
      %1935 = vmatmul.bf16.gmra.mxu0 %v1829
      %v1936 = vpop.f32.mrf.mxu0
      %v1937 = vadd.f32 %v1888, %v1936
      %v1938 = vpop.f32.mrf.mxu0
      %v1939 = vadd.f32 %v1890, %v1938
      %1940 = vmatmul.bf16.gmra.mxu0 %v1831
      %v1941 = vpop.f32.mrf.mxu0
      %v1942 = vadd.f32 %v1893, %v1941
      %v1943 = vpop.f32.mrf.mxu0
      %v1944 = vadd.f32 %v1895, %v1943
      %1945 = vdwg.mxu0
      %1946 = vrot.lane.b32.xlu0 %v1907, 118
      %v1947 = vpop.permute.xlu0 %1946
      %1948 = vrot.lane.b32.xlu0 %v1909, 118
      %v1949 = vpop.permute.xlu0 %1948
      %1950 = vrot.lane.b32.xlu0 %v1912, 118
      %v1951 = vpop.permute.xlu0 %1950
      %1952 = vrot.lane.b32.xlu0 %v1914, 118
      %v1953 = vpop.permute.xlu0 %1952
      %1954 = vrot.lane.b32.xlu0 %v1917, 118
      %v1955 = vpop.permute.xlu0 %1954
      %1956 = vrot.lane.b32.xlu0 %v1919, 118
      %v1957 = vpop.permute.xlu0 %1956
      %1958 = vrot.lane.b32.xlu0 %v1922, 118
      %v1959 = vpop.permute.xlu0 %1958
      %1960 = vrot.lane.b32.xlu0 %v1924, 118
      %v1961 = vpop.permute.xlu0 %1960
      %1962 = vrot.lane.b32.xlu0 %v1927, 118
      %v1963 = vpop.permute.xlu0 %1962
      %1964 = vrot.lane.b32.xlu0 %v1929, 118
      %v1965 = vpop.permute.xlu0 %1964
      %1966 = vrot.lane.b32.xlu0 %v1932, 118
      %v1967 = vpop.permute.xlu0 %1966
      %1968 = vrot.lane.b32.xlu0 %v1934, 118
      %v1969 = vpop.permute.xlu0 %1968
      %1970 = vrot.lane.b32.xlu0 %v1937, 118
      %v1971 = vpop.permute.xlu0 %1970
      %1972 = vrot.lane.b32.xlu0 %v1939, 118
      %v1973 = vpop.permute.xlu0 %1972
      %1974 = vrot.lane.b32.xlu0 %v1942, 118
      %v1975 = vpop.permute.xlu0 %1974
      %1976 = vrot.lane.b32.xlu0 %v1944, 118
      %v1977 = vpop.permute.xlu0 %1976
      %v1978 = vadd.f32 %v1735, %v1947
      %v1979 = vadd.f32 %v1736, %v1949
      %v1980 = vadd.f32 %v1737, %v1951
      %v1981 = vadd.f32 %v1738, %v1953
      %v1982 = vadd.f32 %v1739, %v1955
      %v1983 = vadd.f32 %v1740, %v1957
      %v1984 = vadd.f32 %v1741, %v1959
      %v1985 = vadd.f32 %v1742, %v1961
      %v1986 = vadd.f32 %v1743, %v1963
      %v1987 = vadd.f32 %v1744, %v1965
      %v1988 = vadd.f32 %v1745, %v1967
      %v1989 = vadd.f32 %v1746, %v1969
      %v1990 = vadd.f32 %v1747, %v1971
      %v1991 = vadd.f32 %v1748, %v1973
      %v1992 = vadd.f32 %v1749, %v1975
      %v1993 = vadd.f32 %v1750, %v1977
      %v1994 = vld [vmem:[%s1] sm:$0x1]
      %v1996 = vperm.slane %v1994, 0
      %v1998 = vmul.f32 %v1978, %v1996
      %v1999 = vmul.f32 %v1979, %v1996
      %v2000 = vmul.f32 %v1980, %v1996
      %v2001 = vmul.f32 %v1981, %v1996
      %v2002 = vmul.f32 %v1982, %v1996
      %v2003 = vmul.f32 %v1983, %v1996
      %v2004 = vmul.f32 %v1984, %v1996
      %v2005 = vmul.f32 %v1985, %v1996
      %v2006 = vmul.f32 %v1986, %v1996
      %v2007 = vmul.f32 %v1987, %v1996
      %v2008 = vmul.f32 %v1988, %v1996
      %v2009 = vmul.f32 %v1989, %v1996
      %v2010 = vmul.f32 %v1990, %v1996
      %v2011 = vmul.f32 %v1991, %v1996
      %v2012 = vmul.f32 %v1992, %v1996
      %v2013 = vmul.f32 %v1993, %v1996
      %2014 = vadd.xlane.f32.xlu0 %v1998
      %v2015 = vpop.xlane.xlu0 %2014
      %2016 = vadd.xlane.f32.xlu0 %v1999
      %v2017 = vpop.xlane.xlu0 %2016
      %2018 = vadd.xlane.f32.xlu0 %v2000
      %v2019 = vpop.xlane.xlu0 %2018
      %2020 = vadd.xlane.f32.xlu0 %v2001
      %v2021 = vpop.xlane.xlu0 %2020
      %2022 = vadd.xlane.f32.xlu0 %v2002
      %v2023 = vpop.xlane.xlu0 %2022
      %2024 = vadd.xlane.f32.xlu0 %v2003
      %v2025 = vpop.xlane.xlu0 %2024
      %2026 = vadd.xlane.f32.xlu0 %v2004
      %v2027 = vpop.xlane.xlu0 %2026
      %2028 = vadd.xlane.f32.xlu0 %v2005
      %v2029 = vpop.xlane.xlu0 %2028
      %2030 = vadd.xlane.f32.xlu0 %v2006
      %v2031 = vpop.xlane.xlu0 %2030
      %2032 = vadd.xlane.f32.xlu0 %v2007
      %v2033 = vpop.xlane.xlu0 %2032
      %2034 = vadd.xlane.f32.xlu0 %v2008
      %v2035 = vpop.xlane.xlu0 %2034
      %2036 = vadd.xlane.f32.xlu0 %v2009
      %v2037 = vpop.xlane.xlu0 %2036
      %2038 = vadd.xlane.f32.xlu0 %v2010
      %v2039 = vpop.xlane.xlu0 %2038
      %2040 = vadd.xlane.f32.xlu0 %v2011
      %v2041 = vpop.xlane.xlu0 %2040
      %2042 = vadd.xlane.f32.xlu0 %v2012
      %v2043 = vpop.xlane.xlu0 %2042
      %2044 = vadd.xlane.f32.xlu0 %v2013
      %v2045 = vpop.xlane.xlu0 %2044
      %v2046 = vmul.f32 %v1998, %v1978
      %v2047 = vmul.f32 %v1999, %v1979
      %v2048 = vmul.f32 %v2000, %v1980
      %v2049 = vmul.f32 %v2001, %v1981
      %v2050 = vmul.f32 %v2002, %v1982
      %v2051 = vmul.f32 %v2003, %v1983
      %v2052 = vmul.f32 %v2004, %v1984
      %v2053 = vmul.f32 %v2005, %v1985
      %v2054 = vmul.f32 %v2006, %v1986
      %v2055 = vmul.f32 %v2007, %v1987
      %v2056 = vmul.f32 %v2008, %v1988
      %v2057 = vmul.f32 %v2009, %v1989
      %v2058 = vmul.f32 %v2010, %v1990
      %v2059 = vmul.f32 %v2011, %v1991
      %v2060 = vmul.f32 %v2012, %v1992
      %v2061 = vmul.f32 %v2013, %v1993
      %2062 = vadd.xlane.f32.xlu0 %v2046
      %v2063 = vpop.xlane.xlu0 %2062
      %2064 = vadd.xlane.f32.xlu0 %v2047
      %v2065 = vpop.xlane.xlu0 %2064
      %2066 = vadd.xlane.f32.xlu0 %v2048
      %v2067 = vpop.xlane.xlu0 %2066
      %2068 = vadd.xlane.f32.xlu0 %v2049
      %v2069 = vpop.xlane.xlu0 %2068
      %2070 = vadd.xlane.f32.xlu0 %v2050
      %v2071 = vpop.xlane.xlu0 %2070
      %2072 = vadd.xlane.f32.xlu0 %v2051
      %v2073 = vpop.xlane.xlu0 %2072
      %2074 = vadd.xlane.f32.xlu0 %v2052
      %v2075 = vpop.xlane.xlu0 %2074
      %2076 = vadd.xlane.f32.xlu0 %v2053
      %v2077 = vpop.xlane.xlu0 %2076
      %2078 = vadd.xlane.f32.xlu0 %v2054
      %v2079 = vpop.xlane.xlu0 %2078
      %2080 = vadd.xlane.f32.xlu0 %v2055
      %v2081 = vpop.xlane.xlu0 %2080
      %2082 = vadd.xlane.f32.xlu0 %v2056
      %v2083 = vpop.xlane.xlu0 %2082
      %2084 = vadd.xlane.f32.xlu0 %v2057
      %v2085 = vpop.xlane.xlu0 %2084
      %2086 = vadd.xlane.f32.xlu0 %v2058
      %v2087 = vpop.xlane.xlu0 %2086
      %2088 = vadd.xlane.f32.xlu0 %v2059
      %v2089 = vpop.xlane.xlu0 %2088
      %2090 = vadd.xlane.f32.xlu0 %v2060
      %v2091 = vpop.xlane.xlu0 %2090
      %2092 = vadd.xlane.f32.xlu0 %v2061
      %v2093 = vpop.xlane.xlu0 %2092
      %v2094 = vmul.f32 %v2015, 0.015625
      %v2095 = vmul.f32 %v2017, 0.015625
      %v2096 = vmul.f32 %v2019, 0.015625
      %v2097 = vmul.f32 %v2021, 0.015625
      %v2098 = vmul.f32 %v2023, 0.015625
      %v2099 = vmul.f32 %v2025, 0.015625
      %v2100 = vmul.f32 %v2027, 0.015625
      %v2101 = vmul.f32 %v2029, 0.015625
      %v2102 = vmul.f32 %v2031, 0.015625
      %v2103 = vmul.f32 %v2033, 0.015625
      %v2104 = vmul.f32 %v2035, 0.015625
      %v2105 = vmul.f32 %v2037, 0.015625
      %v2106 = vmul.f32 %v2039, 0.015625
      %v2107 = vmul.f32 %v2041, 0.015625
      %v2108 = vmul.f32 %v2043, 0.015625
      %v2109 = vmul.f32 %v2045, 0.015625
      %v2110 = vmul.f32 %v2063, 0.015625
      %v2111 = vmul.f32 %v2065, 0.015625
      %v2112 = vmul.f32 %v2067, 0.015625
      %v2113 = vmul.f32 %v2069, 0.015625
      %v2114 = vmul.f32 %v2071, 0.015625
      %v2115 = vmul.f32 %v2073, 0.015625
      %v2116 = vmul.f32 %v2075, 0.015625
      %v2117 = vmul.f32 %v2077, 0.015625
      %v2118 = vmul.f32 %v2079, 0.015625
      %v2119 = vmul.f32 %v2081, 0.015625
      %v2120 = vmul.f32 %v2083, 0.015625
      %v2121 = vmul.f32 %v2085, 0.015625
      %v2122 = vmul.f32 %v2087, 0.015625
      %v2123 = vmul.f32 %v2089, 0.015625
      %v2124 = vmul.f32 %v2091, 0.015625
      %v2125 = vmul.f32 %v2093, 0.015625
      %v2126 = vmul.f32 %v2094, %v2094
      %v2127 = vmul.f32 %v2095, %v2095
      %v2128 = vmul.f32 %v2096, %v2096
      %v2129 = vmul.f32 %v2097, %v2097
      %v2130 = vmul.f32 %v2098, %v2098
      %v2131 = vmul.f32 %v2099, %v2099
      %v2132 = vmul.f32 %v2100, %v2100
      %v2133 = vmul.f32 %v2101, %v2101
      %v2134 = vmul.f32 %v2102, %v2102
      %v2135 = vmul.f32 %v2103, %v2103
      %v2136 = vmul.f32 %v2104, %v2104
      %v2137 = vmul.f32 %v2105, %v2105
      %v2138 = vmul.f32 %v2106, %v2106
      %v2139 = vmul.f32 %v2107, %v2107
      %v2140 = vmul.f32 %v2108, %v2108
      %v2141 = vmul.f32 %v2109, %v2109
      %v2142 = vsub.f32 %v2110, %v2126
      %v2143 = vsub.f32 %v2111, %v2127
      %v2144 = vsub.f32 %v2112, %v2128
      %v2145 = vsub.f32 %v2113, %v2129
      %v2146 = vsub.f32 %v2114, %v2130
      %v2147 = vsub.f32 %v2115, %v2131
      %v2148 = vsub.f32 %v2116, %v2132
      %v2149 = vsub.f32 %v2117, %v2133
      %v2150 = vsub.f32 %v2118, %v2134
      %v2151 = vsub.f32 %v2119, %v2135
      %v2152 = vsub.f32 %v2120, %v2136
      %v2153 = vsub.f32 %v2121, %v2137
      %v2154 = vsub.f32 %v2122, %v2138
      %v2155 = vsub.f32 %v2123, %v2139
      %v2156 = vsub.f32 %v2124, %v2140
      %v2157 = vsub.f32 %v2125, %v2141
      %v2158 = vmax.f32 %v2142, 0.0
      %v2159 = vmax.f32 %v2143, 0.0
      %v2160 = vmax.f32 %v2144, 0.0
      %v2161 = vmax.f32 %v2145, 0.0
      %v2162 = vmax.f32 %v2146, 0.0
      %v2163 = vmax.f32 %v2147, 0.0
      %v2164 = vmax.f32 %v2148, 0.0
      %v2165 = vmax.f32 %v2149, 0.0
      %v2166 = vmax.f32 %v2150, 0.0
      %v2167 = vmax.f32 %v2151, 0.0
      %v2168 = vmax.f32 %v2152, 0.0
      %v2169 = vmax.f32 %v2153, 0.0
      %v2170 = vmax.f32 %v2154, 0.0
      %v2171 = vmax.f32 %v2155, 0.0
      %v2172 = vmax.f32 %v2156, 0.0
      %v2173 = vmax.f32 %v2157, 0.0
      %v2174 = vsub.f32 %v1978, %v2094
      %v2175 = vsub.f32 %v1979, %v2095
      %v2176 = vsub.f32 %v1980, %v2096
      %v2177 = vsub.f32 %v1981, %v2097
      %v2178 = vsub.f32 %v1982, %v2098
      %v2179 = vsub.f32 %v1983, %v2099
      %v2180 = vsub.f32 %v1984, %v2100
      %v2181 = vsub.f32 %v1985, %v2101
      %v2182 = vsub.f32 %v1986, %v2102
      %v2183 = vsub.f32 %v1987, %v2103
      %v2184 = vsub.f32 %v1988, %v2104
      %v2185 = vsub.f32 %v1989, %v2105
      %v2186 = vsub.f32 %v1990, %v2106
      %v2187 = vsub.f32 %v1991, %v2107
      %v2188 = vsub.f32 %v1992, %v2108
      %v2189 = vsub.f32 %v1993, %v2109
      %v2190 = vadd.f32 %v2158, 1e-05
      %v2191 = vadd.f32 %v2159, 1e-05
      %v2192 = vadd.f32 %v2160, 1e-05
      %v2193 = vadd.f32 %v2161, 1e-05
      %v2194 = vadd.f32 %v2162, 1e-05
      %v2195 = vadd.f32 %v2163, 1e-05
      %v2196 = vadd.f32 %v2164, 1e-05
      %v2197 = vadd.f32 %v2165, 1e-05
      %v2198 = vadd.f32 %v2166, 1e-05
      %v2199 = vadd.f32 %v2167, 1e-05
      %v2200 = vadd.f32 %v2168, 1e-05
      %v2201 = vadd.f32 %v2169, 1e-05
      %v2202 = vadd.f32 %v2170, 1e-05
      %v2203 = vadd.f32 %v2171, 1e-05
      %v2204 = vadd.f32 %v2172, 1e-05
      %v2205 = vadd.f32 %v2173, 1e-05
      %v2206 = vrsqrt.pop %v2190
      %v2207 = vmul.f32 %v2206, %v2190
      %v2208 = vmul.f32 %v2207, %v2206
      %v2209 = vmul.f32 0.5, %v2208
      %v2210 = vsub.f32 1.5, %v2209
      %v2211 = vmul.f32 %v2206, %v2210
      %vm2212 = vweird.f32 %v2190
      %vm2213 = vweird.f32 %v2206
      %vm2214 = vmor %vm2212, %vm2213
      %v2215 = vsel %vm2214, %v2206, %v2211
      %v2216 = vrsqrt.pop %v2191
      %v2217 = vmul.f32 %v2216, %v2191
      %v2218 = vmul.f32 %v2217, %v2216
      %v2219 = vmul.f32 0.5, %v2218
      %v2220 = vsub.f32 1.5, %v2219
      %v2221 = vmul.f32 %v2216, %v2220
      %vm2222 = vweird.f32 %v2191
      %vm2223 = vweird.f32 %v2216
      %vm2224 = vmor %vm2222, %vm2223
      %v2225 = vsel %vm2224, %v2216, %v2221
      %v2226 = vrsqrt.pop %v2192
      %v2227 = vmul.f32 %v2226, %v2192
      %v2228 = vmul.f32 %v2227, %v2226
      %v2229 = vmul.f32 0.5, %v2228
      %v2230 = vsub.f32 1.5, %v2229
      %v2231 = vmul.f32 %v2226, %v2230
      %vm2232 = vweird.f32 %v2192
      %vm2233 = vweird.f32 %v2226
      %vm2234 = vmor %vm2232, %vm2233
      %v2235 = vsel %vm2234, %v2226, %v2231
      %v2236 = vrsqrt.pop %v2193
      %v2237 = vmul.f32 %v2236, %v2193
      %v2238 = vmul.f32 %v2237, %v2236
      %v2239 = vmul.f32 0.5, %v2238
      %v2240 = vsub.f32 1.5, %v2239
      %v2241 = vmul.f32 %v2236, %v2240
      %vm2242 = vweird.f32 %v2193
      %vm2243 = vweird.f32 %v2236
      %vm2244 = vmor %vm2242, %vm2243
      %v2245 = vsel %vm2244, %v2236, %v2241
      %v2246 = vrsqrt.pop %v2194
      %v2247 = vmul.f32 %v2246, %v2194
      %v2248 = vmul.f32 %v2247, %v2246
      %v2249 = vmul.f32 0.5, %v2248
      %v2250 = vsub.f32 1.5, %v2249
      %v2251 = vmul.f32 %v2246, %v2250
      %vm2252 = vweird.f32 %v2194
      %vm2253 = vweird.f32 %v2246
      %vm2254 = vmor %vm2252, %vm2253
      %v2255 = vsel %vm2254, %v2246, %v2251
      %v2256 = vrsqrt.pop %v2195
      %v2257 = vmul.f32 %v2256, %v2195
      %v2258 = vmul.f32 %v2257, %v2256
      %v2259 = vmul.f32 0.5, %v2258
      %v2260 = vsub.f32 1.5, %v2259
      %v2261 = vmul.f32 %v2256, %v2260
      %vm2262 = vweird.f32 %v2195
      %vm2263 = vweird.f32 %v2256
      %vm2264 = vmor %vm2262, %vm2263
      %v2265 = vsel %vm2264, %v2256, %v2261
      %v2266 = vrsqrt.pop %v2196
      %v2267 = vmul.f32 %v2266, %v2196
      %v2268 = vmul.f32 %v2267, %v2266
      %v2269 = vmul.f32 0.5, %v2268
      %v2270 = vsub.f32 1.5, %v2269
      %v2271 = vmul.f32 %v2266, %v2270
      %vm2272 = vweird.f32 %v2196
      %vm2273 = vweird.f32 %v2266
      %vm2274 = vmor %vm2272, %vm2273
      %v2275 = vsel %vm2274, %v2266, %v2271
      %v2276 = vrsqrt.pop %v2197
      %v2277 = vmul.f32 %v2276, %v2197
      %v2278 = vmul.f32 %v2277, %v2276
      %v2279 = vmul.f32 0.5, %v2278
      %v2280 = vsub.f32 1.5, %v2279
      %v2281 = vmul.f32 %v2276, %v2280
      %vm2282 = vweird.f32 %v2197
      %vm2283 = vweird.f32 %v2276
      %vm2284 = vmor %vm2282, %vm2283
      %v2285 = vsel %vm2284, %v2276, %v2281
      %v2286 = vrsqrt.pop %v2198
      %v2287 = vmul.f32 %v2286, %v2198
      %v2288 = vmul.f32 %v2287, %v2286
      %v2289 = vmul.f32 0.5, %v2288
      %v2290 = vsub.f32 1.5, %v2289
      %v2291 = vmul.f32 %v2286, %v2290
      %vm2292 = vweird.f32 %v2198
      %vm2293 = vweird.f32 %v2286
      %vm2294 = vmor %vm2292, %vm2293
      %v2295 = vsel %vm2294, %v2286, %v2291
      %v2296 = vrsqrt.pop %v2199
      %v2297 = vmul.f32 %v2296, %v2199
      %v2298 = vmul.f32 %v2297, %v2296
      %v2299 = vmul.f32 0.5, %v2298
      %v2300 = vsub.f32 1.5, %v2299
      %v2301 = vmul.f32 %v2296, %v2300
      %vm2302 = vweird.f32 %v2199
      %vm2303 = vweird.f32 %v2296
      %vm2304 = vmor %vm2302, %vm2303
      %v2305 = vsel %vm2304, %v2296, %v2301
      %v2306 = vrsqrt.pop %v2200
      %v2307 = vmul.f32 %v2306, %v2200
      %v2308 = vmul.f32 %v2307, %v2306
      %v2309 = vmul.f32 0.5, %v2308
      %v2310 = vsub.f32 1.5, %v2309
      %v2311 = vmul.f32 %v2306, %v2310
      %vm2312 = vweird.f32 %v2200
      %vm2313 = vweird.f32 %v2306
      %vm2314 = vmor %vm2312, %vm2313
      %v2315 = vsel %vm2314, %v2306, %v2311
      %v2316 = vrsqrt.pop %v2201
      %v2317 = vmul.f32 %v2316, %v2201
      %v2318 = vmul.f32 %v2317, %v2316
      %v2319 = vmul.f32 0.5, %v2318
      %v2320 = vsub.f32 1.5, %v2319
      %v2321 = vmul.f32 %v2316, %v2320
      %vm2322 = vweird.f32 %v2201
      %vm2323 = vweird.f32 %v2316
      %vm2324 = vmor %vm2322, %vm2323
      %v2325 = vsel %vm2324, %v2316, %v2321
      %v2326 = vrsqrt.pop %v2202
      %v2327 = vmul.f32 %v2326, %v2202
      %v2328 = vmul.f32 %v2327, %v2326
      %v2329 = vmul.f32 0.5, %v2328
      %v2330 = vsub.f32 1.5, %v2329
      %v2331 = vmul.f32 %v2326, %v2330
      %vm2332 = vweird.f32 %v2202
      %vm2333 = vweird.f32 %v2326
      %vm2334 = vmor %vm2332, %vm2333
      %v2335 = vsel %vm2334, %v2326, %v2331
      %v2336 = vrsqrt.pop %v2203
      %v2337 = vmul.f32 %v2336, %v2203
      %v2338 = vmul.f32 %v2337, %v2336
      %v2339 = vmul.f32 0.5, %v2338
      %v2340 = vsub.f32 1.5, %v2339
      %v2341 = vmul.f32 %v2336, %v2340
      %vm2342 = vweird.f32 %v2203
      %vm2343 = vweird.f32 %v2336
      %vm2344 = vmor %vm2342, %vm2343
      %v2345 = vsel %vm2344, %v2336, %v2341
      %v2346 = vrsqrt.pop %v2204
      %v2347 = vmul.f32 %v2346, %v2204
      %v2348 = vmul.f32 %v2347, %v2346
      %v2349 = vmul.f32 0.5, %v2348
      %v2350 = vsub.f32 1.5, %v2349
      %v2351 = vmul.f32 %v2346, %v2350
      %vm2352 = vweird.f32 %v2204
      %vm2353 = vweird.f32 %v2346
      %vm2354 = vmor %vm2352, %vm2353
      %v2355 = vsel %vm2354, %v2346, %v2351
      %v2356 = vrsqrt.pop %v2205
      %v2357 = vmul.f32 %v2356, %v2205
      %v2358 = vmul.f32 %v2357, %v2356
      %v2359 = vmul.f32 0.5, %v2358
      %v2360 = vsub.f32 1.5, %v2359
      %v2361 = vmul.f32 %v2356, %v2360
      %vm2362 = vweird.f32 %v2205
      %vm2363 = vweird.f32 %v2356
      %vm2364 = vmor %vm2362, %vm2363
      %v2365 = vsel %vm2364, %v2356, %v2361
      %v2366 = vmul.f32 %v2174, %v2215
      %v2367 = vmul.f32 %v2175, %v2225
      %v2368 = vmul.f32 %v2176, %v2235
      %v2369 = vmul.f32 %v2177, %v2245
      %v2370 = vmul.f32 %v2178, %v2255
      %v2371 = vmul.f32 %v2179, %v2265
      %v2372 = vmul.f32 %v2180, %v2275
      %v2373 = vmul.f32 %v2181, %v2285
      %v2374 = vmul.f32 %v2182, %v2295
      %v2375 = vmul.f32 %v2183, %v2305
      %v2376 = vmul.f32 %v2184, %v2315
      %v2377 = vmul.f32 %v2185, %v2325
      %v2378 = vmul.f32 %v2186, %v2335
      %v2379 = vmul.f32 %v2187, %v2345
      %v2380 = vmul.f32 %v2188, %v2355
      %v2381 = vmul.f32 %v2189, %v2365
      %vm2382 = vcmp.gt.f32.partialorder %v2366, 0.0
      %vm2383 = vcmp.gt.f32.partialorder %v2367, 0.0
      %vm2384 = vcmp.gt.f32.partialorder %v2368, 0.0
      %vm2385 = vcmp.gt.f32.partialorder %v2369, 0.0
      %vm2386 = vcmp.gt.f32.partialorder %v2370, 0.0
      %vm2387 = vcmp.gt.f32.partialorder %v2371, 0.0
      %vm2388 = vcmp.gt.f32.partialorder %v2372, 0.0
      %vm2389 = vcmp.gt.f32.partialorder %v2373, 0.0
      %vm2390 = vcmp.gt.f32.partialorder %v2374, 0.0
      %vm2391 = vcmp.gt.f32.partialorder %v2375, 0.0
      %vm2392 = vcmp.gt.f32.partialorder %v2376, 0.0
      %vm2393 = vcmp.gt.f32.partialorder %v2377, 0.0
      %vm2394 = vcmp.gt.f32.partialorder %v2378, 0.0
      %vm2395 = vcmp.gt.f32.partialorder %v2379, 0.0
      %vm2396 = vcmp.gt.f32.partialorder %v2380, 0.0
      %vm2397 = vcmp.gt.f32.partialorder %v2381, 0.0
      %v2398 = vmul.f32 %v2366, 0.2
      %v2399 = vmul.f32 %v2367, 0.2
      %v2400 = vmul.f32 %v2368, 0.2
      %v2401 = vmul.f32 %v2369, 0.2
      %v2402 = vmul.f32 %v2370, 0.2
      %v2403 = vmul.f32 %v2371, 0.2
      %v2404 = vmul.f32 %v2372, 0.2
      %v2405 = vmul.f32 %v2373, 0.2
      %v2406 = vmul.f32 %v2374, 0.2
      %v2407 = vmul.f32 %v2375, 0.2
      %v2408 = vmul.f32 %v2376, 0.2
      %v2409 = vmul.f32 %v2377, 0.2
      %v2410 = vmul.f32 %v2378, 0.2
      %v2411 = vmul.f32 %v2379, 0.2
      %v2412 = vmul.f32 %v2380, 0.2
      %v2413 = vmul.f32 %v2381, 0.2
      %v2414 = vsel %vm2382, %v2366, %v2398
      %v2415 = vsel %vm2383, %v2367, %v2399
      %v2416 = vsel %vm2384, %v2368, %v2400
      %v2417 = vsel %vm2385, %v2369, %v2401
      %v2418 = vsel %vm2386, %v2370, %v2402
      %v2419 = vsel %vm2387, %v2371, %v2403
      %v2420 = vsel %vm2388, %v2372, %v2404
      %v2421 = vsel %vm2389, %v2373, %v2405
      %v2422 = vsel %vm2390, %v2374, %v2406
      %v2423 = vsel %vm2391, %v2375, %v2407
      %v2424 = vsel %vm2392, %v2376, %v2408
      %v2425 = vsel %vm2393, %v2377, %v2409
      %v2426 = vsel %vm2394, %v2378, %v2410
      %v2427 = vsel %vm2395, %v2379, %v2411
      %v2428 = vsel %vm2396, %v2380, %v2412
      %v2429 = vsel %vm2397, %v2381, %v2413
      %2430 = vst [vmem:[%s223] sm:$0xff] %v2414
      %2431 = vst [vmem:[%s223 + $0x8] sm:$0xff] %v2415
      %2432 = vst [vmem:[%s223 + $0x10] sm:$0xff] %v2416
      %2433 = vst [vmem:[%s223 + $0x18] sm:$0xff] %v2417
      %2434 = vst [vmem:[%s223 + $0x20] sm:$0xff] %v2418
      %2435 = vst [vmem:[%s223 + $0x28] sm:$0xff] %v2419
      %2436 = vst [vmem:[%s223 + $0x30] sm:$0xff] %v2420
      %2437 = vst [vmem:[%s223 + $0x38] sm:$0xff] %v2421
      %2438 = vst [vmem:[%s223 + $0x40] sm:$0xff] %v2422
      %2439 = vst [vmem:[%s223 + $0x48] sm:$0xff] %v2423
      %2440 = vst [vmem:[%s223 + $0x50] sm:$0xff] %v2424
      %2441 = vst [vmem:[%s223 + $0x58] sm:$0xff] %v2425
      %2442 = vst [vmem:[%s223 + $0x60] sm:$0xff] %v2426
      %2443 = vst [vmem:[%s223 + $0x68] sm:$0xff] %v2427
      %2444 = vst [vmem:[%s223 + $0x70] sm:$0xff] %v2428
      %2445 = vst [vmem:[%s223 + $0x78] sm:$0xff] %v2429
      %s2446 = smul.u32 16, %s25
      %p2447 = scmp.lt.s32.totalorder %s24, 1
      %s2448 = scalar_select %p2447, %s24, 1
      %p2449 = scmp.lt.s32.totalorder %s2446, 15
      %s2450 = scalar_select %p2449, %s2446, 15
      %s2451 = smul.addr %s2448, 16
      %s2452 = sadd.s32 %s2450, %s2451
      %s2453 = smul.addr %s2452, 8
      %s2454 = scalar_lea.vmem %s4, %s2453
      // Predicated region
      $region33: #{forward.4} parent=31 // pred_check
        %p2455 = pneg %p125
      $region34: #{forward.4} parent=31 // pred_check_branch
        %2457 = sbr.rel (%p2455) target = $region36
      $region35: #{forward.4} parent=31 // pred_region
        %s2458 = smul.u32 16, %s25
      $region36: #{forward.4} parent=31 // pred_fallthru
        _
    $region32: #{forward.4} parent=5 // pred_fallthru
      _
    %p2459 = scmp.le.s32.totalorder 2, %s15
    // Predicated region
    $region37: #{forward.4} parent=5 // pred_check
      %p2460 = pneg %p2459
    $region38: #{forward.4} parent=5 // pred_check_branch
      %2462 = sbr.rel (%p2460) target = $region40
    $region39: #{forward.4} parent=5 // pred_region
      %s2463 = ssub.s32 %s15, 2
      // Predicated region
      $region41: #{forward.4} parent=39 // pred_check
        %p2464 = pneg %p131
      $region42: #{forward.4} parent=39 // pred_check_branch
        %2466 = sbr.rel (%p2464) target = $region44
      $region43: #{forward.4} parent=39 // pred_region
        %s2467 = smul.u32 16, %s27
        %p2468 = scmp.lt.s32.totalorder %s26, 1
        %s2469 = scalar_select %p2468, %s26, 1
        %p2470 = scmp.lt.s32.totalorder %s2467, 15
        %s2471 = scalar_select %p2470, %s2467, 15
        %s2472 = smul.addr %s2469, 16
        %s2473 = sadd.s32 %s2471, %s2472
        %s2474 = smul.addr %s2473, 8
        %s2475 = scalar_lea.vmem %s4, %s2474
      $region44: #{forward.4} parent=39 // pred_fallthru
        _
    $region40: #{forward.4} parent=5 // pred_fallthru
      _
  $region6: #{forward.4} parent=0 // loop_footer
    %s19 = sadd.s32 1, %s15
  $region7: #{forward.4} parent=0 // loop_footer_branch
    %14 = sbr.rel target = $region3
  $region8: #{forward.4} parent=0 // loop_exit
    _

</llo_original>
